<compile_context>
chip_gen: v7x
topology: tpu7x:2x2x1
jax: 0.10.0
libtpu: 0.0.40
codegen_flags: <defaults>
</compile_context>

<pallas_src>
import jax
import jax.numpy as jnp
from jax.experimental import pallas as pl
from jax.experimental.pallas import tpu as pltpu

HI = jax.lax.Precision.HIGHEST


# ----------------------------------------------------------------------------
# Pallas kernel: whole sequence in one invocation, no grid.
# ----------------------------------------------------------------------------
def lstm_qhead_kernel(obs_ref, act_ref, w_obs_ref, w_act_ref, w_hh_ref, b_ref,
                      wq_ref, h0_ref, c0_ref, bq_ref, q_ref, h_ref, c_ref):
    B, T, OBS = obs_ref.shape
    ACT = act_ref.shape[-1]
    H = h_ref.shape[-1]
    FOUR_H = 4 * H

    # ---- hoisted input projection (off the serial dependence chain) --------
    # rows ordered (b, t); one matmul per W_ih half, bias folded in.
    obs_flat = obs_ref[...].reshape(B * T, OBS)
    act_flat = act_ref[...].reshape(B * T, ACT)
    gates_x = (
        jnp.dot(obs_flat, w_obs_ref[...], precision=HI,
                preferred_element_type=jnp.float32)
        + jnp.dot(act_flat, w_act_ref[...], precision=HI,
                  preferred_element_type=jnp.float32)
        + b_ref[...]
    ).reshape(B, T, FOUR_H)

    w_hh = w_hh_ref[...]          # (H, 4H), g-columns pre-scaled by 2
    wq = wq_ref[...]              # (1, H)
    h = h0_ref[...]               # (B, H) carried in registers
    c = c0_ref[...]               # (B, H)

    q_cols = []
    # T is small and static -> fully unrolled; all slice indices are constants.
    for t in range(T):
        gates = gates_x[:, t, :] + jnp.dot(
            h, w_hh, precision=HI, preferred_element_type=jnp.float32)
        # Single full-width sigmoid covers i/f/g/o; tanh(g) = 2*sigmoid(2g) - 1
        # because the g-gate columns of the weights/bias were pre-scaled by 2.
        sig = jax.nn.sigmoid(gates)                     # (B, 4H), one EUP op
        i_g = sig[:, 0 * H:1 * H]
        f_g = sig[:, 1 * H:2 * H]
        g_g = 2.0 * sig[:, 2 * H:3 * H] - 1.0           # == tanh(g_original)
        o_g = sig[:, 3 * H:4 * H]
        c = f_g * c + i_g * g_g
        h = o_g * jnp.tanh(c)
        # Fused q-head contribution for this step (lane reduce; off the
        # critical path of the recurrence).
        q_cols.append(jnp.sum(h * wq, axis=-1, keepdims=True))   # (B, 1)

    h_ref[...] = h
    c_ref[...] = c
    q_ref[...] = jnp.concatenate(q_cols, axis=1) + bq_ref[0]     # (B, T)


# ----------------------------------------------------------------------------
# Wrapper: parameter prep (g-gate pre-scale, W_ih split) + pallas_call plumbing.
# ----------------------------------------------------------------------------
def rnn_critic_forward(obs_seq, action_seq, params, hidden_state=None):
    """obs_seq: (B, T, obs_dim), action_seq: (B, T, action_dim) -- batch_first."""
    obs = obs_seq.astype(jnp.float32)
    act = action_seq.astype(jnp.float32)
    B, T, OBS = obs.shape
    ACT = act.shape[-1]
    H = params["w_hh"].shape[0]

    if hidden_state is None:
        h0 = jnp.zeros((B, H), jnp.float32)
        c0 = jnp.zeros((B, H), jnp.float32)
    else:
        h0 = hidden_state[0].reshape(B, H).astype(jnp.float32)
        c0 = hidden_state[1].reshape(B, H).astype(jnp.float32)

    # One-time parameter prep (constant-folds under jit): scale the g-gate
    # (cell-candidate) columns by 2 so the kernel can use a single sigmoid over
    # the whole gate vreg, and split W_ih into obs/act row blocks so the
    # obs/act concat never materializes.
    g_scale = jnp.concatenate(
        [jnp.ones((1, 2 * H), jnp.float32),
         jnp.full((1, H), 2.0, jnp.float32),
         jnp.ones((1, H), jnp.float32)], axis=1)
    w_ih = params["w_ih"] * g_scale              # (D, 4H)
    w_hh = params["w_hh"] * g_scale              # (H, 4H)
    b = params["b"] * g_scale                    # (1, 4H) fused b_ih + b_hh
    w_obs, w_act = w_ih[:OBS], w_ih[OBS:]

    vmem = pl.BlockSpec(memory_space=pltpu.MemorySpace.VMEM)
    smem = pl.BlockSpec(memory_space=pltpu.MemorySpace.SMEM)

    q_bt, h_fin, c_fin = pl.pallas_call(
        lstm_qhead_kernel,
        out_shape=(
            jax.ShapeDtypeStruct((B, T), jnp.float32),   # per-step Q, (B, T)
            jax.ShapeDtypeStruct((B, H), jnp.float32),   # final h
            jax.ShapeDtypeStruct((B, H), jnp.float32),   # final c
        ),
        in_specs=[
            vmem,   # obs          (B, T, OBS)
            vmem,   # act          (B, T, ACT)
            vmem,   # W_ih[:OBS]   (OBS, 4H)
            vmem,   # W_ih[OBS:]   (ACT, 4H)
            vmem,   # W_hh         (H, 4H)
            vmem,   # fused bias   (1, 4H)
            vmem,   # q_head W row (1, H)
            vmem,   # h0           (B, H)
            vmem,   # c0           (B, H)
            smem,   # q_head bias  (1,) scalar
        ],
        out_specs=(vmem, vmem, vmem),
    )(obs, act, w_obs, w_act, w_hh, b, params["w_q"], h0, c0, params["b_q"])

    q_values = q_bt[:, :, None]                  # (B, T, 1) -- metadata only
    next_hidden = (h_fin[None], c_fin[None])     # each (1, B, H)
    return q_values, next_hidden


# ----------------------------------------------------------------------------
# Deterministic parameter init (mirrors torch.nn.LSTM / nn.Linear shapes,
# uniform(-1/sqrt(H), 1/sqrt(H)) like the PyTorch defaults).
# ----------------------------------------------------------------------------
def init_params(key, input_dim, hidden_size):
    k = 1.0 / jnp.sqrt(hidden_size)
    keys = jax.random.split(key, 6)
    # Stored pre-transposed for right-multiplication: x @ W_ih, h @ W_hh.
    w_ih = jax.random.uniform(keys[0], (input_dim, 4 * hidden_size),
                              jnp.float32, -k, k)
    w_hh = jax.random.uniform(keys[1], (hidden_size, 4 * hidden_size),
                              jnp.float32, -k, k)
    b_ih = jax.random.uniform(keys[2], (4 * hidden_size,), jnp.float32, -k, k)
    b_hh = jax.random.uniform(keys[3], (4 * hidden_size,), jnp.float32, -k, k)
    w_q = jax.random.uniform(keys[4], (1, hidden_size), jnp.float32, -k, k)
    b_q = jax.random.uniform(keys[5], (1,), jnp.float32, -k, k)
    return dict(w_ih=w_ih, w_hh=w_hh, b=(b_ih + b_hh)[None, :], w_q=w_q, b_q=b_q)


# ----------------------------------------------------------------------------
# Pure-JAX reference (lax.scan, fp32 matmul precision) for correctness.
# ----------------------------------------------------------------------------
def reference_forward(obs_seq, action_seq, params, hidden_state=None):
    x = jnp.concatenate([obs_seq, action_seq], axis=-1).astype(jnp.float32)
    B, T, D = x.shape
    H = params["w_hh"].shape[0]
    if hidden_state is None:
        h0 = jnp.zeros((B, H), jnp.float32)
        c0 = jnp.zeros((B, H), jnp.float32)
    else:
        h0 = hidden_state[0].reshape(B, H).astype(jnp.float32)
        c0 = hidden_state[1].reshape(B, H).astype(jnp.float32)

    def step(carry, x_t):
        h, c = carry
        gates = (jnp.dot(x_t, params["w_ih"], precision=HI)
                 + jnp.dot(h, params["w_hh"], precision=HI)
                 + params["b"][0])
        i_g = jax.nn.sigmoid(gates[:, :H])
        f_g = jax.nn.sigmoid(gates[:, H:2 * H])
        g_g = jnp.tanh(gates[:, 2 * H:3 * H])
        o_g = jax.nn.sigmoid(gates[:, 3 * H:])
        c_new = f_g * c + i_g * g_g
        h_new = o_g * jnp.tanh(c_new)
        return (h_new, c_new), h_new

    (h_f, c_f), hs = jax.lax.scan(step, (h0, c0), jnp.transpose(x, (1, 0, 2)))
    hs = jnp.transpose(hs, (1, 0, 2))                        # (B, T, H)
    q = jnp.sum(hs * params["w_q"][None], axis=-1, keepdims=True) + params["b_q"][0]
    return q, (h_f[None], c_f[None])


if __name__ == "__main__":
    # Small shapes implied by the module: batch=2, seq=8, obs=12, act=4, hidden=32
    B, T, OBS, ACT, H = 2, 8, 12, 4, 32
    key = jax.random.PRNGKey(0)
    k_obs, k_act, k_par = jax.random.split(key, 3)

    obs_seq = jax.random.normal(k_obs, (B, T, OBS), jnp.float32)
    action_seq = jax.random.normal(k_act, (B, T, ACT), jnp.float32)
    params = init_params(k_par, OBS + ACT, H)

    q, (h_n, c_n) = rnn_critic_forward(obs_seq, action_seq, params)
    jax.block_until_ready((q, h_n, c_n))

    q_ref, (h_ref, c_ref) = reference_forward(obs_seq, action_seq, params)
    assert q.shape == (B, T, 1) and h_n.shape == (1, B, H) and c_n.shape == (1, B, H)
    # Both run the gate matmuls at HIGHEST (f32) precision; tolerance leaves a
    # small margin for the tanh-via-sigmoid identity and EUP approximation.
    assert jnp.allclose(q, q_ref, rtol=2e-3, atol=2e-3)
    assert jnp.allclose(h_n, h_ref, rtol=2e-3, atol=2e-3)
    assert jnp.allclose(c_n, c_ref, rtol=2e-3, atol=2e-3)

    print("KERNEL_OK")
</pallas_src>

<mosaic_0001>
module attributes {stable_mosaic.version = 11 : i64} {
  func.func @lstm_qhead_kernel(%arg0: memref<2x8x12xf32, #tpu.memory_space<vmem>>, %arg1: memref<2x8x4xf32, #tpu.memory_space<vmem>>, %arg2: memref<12x128xf32, #tpu.memory_space<vmem>>, %arg3: memref<4x128xf32, #tpu.memory_space<vmem>>, %arg4: memref<32x128xf32, #tpu.memory_space<vmem>>, %arg5: memref<1x128xf32, #tpu.memory_space<vmem>>, %arg6: memref<1x32xf32, #tpu.memory_space<vmem>>, %arg7: memref<2x32xf32, #tpu.memory_space<vmem>>, %arg8: memref<2x32xf32, #tpu.memory_space<vmem>>, %arg9: memref<1xf32, #tpu.memory_space<smem>>, %arg10: memref<2x8xf32, #tpu.memory_space<vmem>>, %arg11: memref<2x32xf32, #tpu.memory_space<vmem>>, %arg12: memref<2x32xf32, #tpu.memory_space<vmem>>) attributes {dimension_semantics = [], scalar_prefetch = 0 : i64, scratch_operands = 0 : i64, tpu.core_type = #tpu.core_type<tc>} {
    %c0 = arith.constant 0 : index
    %c0_0 = arith.constant 0 : index
    %c0_1 = arith.constant 0 : index
    %0 = vector.load %arg0[%c0, %c0_0, %c0_1] : memref<2x8x12xf32, #tpu.memory_space<vmem>>, vector<2x8x12xf32>
    %1 = vector.shape_cast %0 : vector<2x8x12xf32> to vector<16x12xf32>
    %c0_2 = arith.constant 0 : index
    %c0_3 = arith.constant 0 : index
    %c0_4 = arith.constant 0 : index
    %2 = vector.load %arg1[%c0_2, %c0_3, %c0_4] : memref<2x8x4xf32, #tpu.memory_space<vmem>>, vector<2x8x4xf32>
    %3 = vector.shape_cast %2 : vector<2x8x4xf32> to vector<16x4xf32>
    %c0_5 = arith.constant 0 : index
    %c0_6 = arith.constant 0 : index
    %4 = vector.load %arg2[%c0_5, %c0_6] : memref<12x128xf32, #tpu.memory_space<vmem>>, vector<12x128xf32>
    %cst = arith.constant dense<0.000000e+00> : vector<16x128xf32>
    %5 = tpu.matmul %1, %4, %cst {dimension_numbers = #tpu.dot_dimension_numbers<[1], [0], [0], [1], [0, 0, 1, 1], [], []>, precision = #tpu.contract_precision<fp32>} : vector<16x12xf32>, vector<12x128xf32>, vector<16x128xf32> -> vector<16x128xf32>
    %c0_7 = arith.constant 0 : index
    %c0_8 = arith.constant 0 : index
    %6 = vector.load %arg3[%c0_7, %c0_8] : memref<4x128xf32, #tpu.memory_space<vmem>>, vector<4x128xf32>
    %cst_9 = arith.constant dense<0.000000e+00> : vector<16x128xf32>
    %7 = tpu.matmul %3, %6, %cst_9 {dimension_numbers = #tpu.dot_dimension_numbers<[1], [0], [0], [1], [0, 0, 1, 1], [], []>, precision = #tpu.contract_precision<fp32>} : vector<16x4xf32>, vector<4x128xf32>, vector<16x128xf32> -> vector<16x128xf32>
    %8 = arith.addf %5, %7 : vector<16x128xf32>
    %c0_10 = arith.constant 0 : index
    %c0_11 = arith.constant 0 : index
    %9 = vector.load %arg5[%c0_10, %c0_11] : memref<1x128xf32, #tpu.memory_space<vmem>>, vector<1x128xf32>
    %10 = vector.broadcast %9 : vector<1x128xf32> to vector<16x128xf32>
    %11 = arith.addf %8, %10 : vector<16x128xf32>
    %12 = vector.shape_cast %11 : vector<16x128xf32> to vector<2x8x128xf32>
    %c0_12 = arith.constant 0 : index
    %c0_13 = arith.constant 0 : index
    %13 = vector.load %arg4[%c0_12, %c0_13] : memref<32x128xf32, #tpu.memory_space<vmem>>, vector<32x128xf32>
    %c0_14 = arith.constant 0 : index
    %c0_15 = arith.constant 0 : index
    %14 = vector.load %arg6[%c0_14, %c0_15] : memref<1x32xf32, #tpu.memory_space<vmem>>, vector<1x32xf32>
    %c0_16 = arith.constant 0 : index
    %c0_17 = arith.constant 0 : index
    %15 = vector.load %arg7[%c0_16, %c0_17] : memref<2x32xf32, #tpu.memory_space<vmem>>, vector<2x32xf32>
    %c0_18 = arith.constant 0 : index
    %c0_19 = arith.constant 0 : index
    %16 = vector.load %arg8[%c0_18, %c0_19] : memref<2x32xf32, #tpu.memory_space<vmem>>, vector<2x32xf32>
    %17 = vector.extract_strided_slice %12 {offsets = [0, 0, 0], sizes = [2, 1, 128], strides = [1, 1, 1]} : vector<2x8x128xf32> to vector<2x1x128xf32>
    %18 = vector.shape_cast %17 : vector<2x1x128xf32> to vector<2x128xf32>
    %cst_20 = arith.constant dense<0.000000e+00> : vector<2x128xf32>
    %19 = tpu.matmul %15, %13, %cst_20 {dimension_numbers = #tpu.dot_dimension_numbers<[1], [0], [0], [1], [0, 0, 1, 1], [], []>, precision = #tpu.contract_precision<fp32>} : vector<2x32xf32>, vector<32x128xf32>, vector<2x128xf32> -> vector<2x128xf32>
    %20 = arith.addf %18, %19 : vector<2x128xf32>
    %21 = arith.negf %20 : vector<2x128xf32>
    %22 = math.exp %21 : vector<2x128xf32>
    %cst_21 = arith.constant 1.000000e+00 : f32
    %23 = vector.broadcast %cst_21 : f32 to vector<2x128xf32>
    %24 = arith.addf %23, %22 : vector<2x128xf32>
    %25 = arith.divf %23, %24 : vector<2x128xf32>
    %26 = vector.extract_strided_slice %25 {offsets = [0, 0], sizes = [2, 32], strides = [1, 1]} : vector<2x128xf32> to vector<2x32xf32>
    %27 = vector.extract_strided_slice %25 {offsets = [0, 32], sizes = [2, 32], strides = [1, 1]} : vector<2x128xf32> to vector<2x32xf32>
    %28 = vector.extract_strided_slice %25 {offsets = [0, 64], sizes = [2, 32], strides = [1, 1]} : vector<2x128xf32> to vector<2x32xf32>
    %cst_22 = arith.constant 2.000000e+00 : f32
    %29 = vector.broadcast %cst_22 : f32 to vector<2x32xf32>
    %30 = arith.mulf %29, %28 : vector<2x32xf32>
    %cst_23 = arith.constant 1.000000e+00 : f32
    %31 = vector.broadcast %cst_23 : f32 to vector<2x32xf32>
    %32 = arith.subf %30, %31 : vector<2x32xf32>
    %33 = vector.extract_strided_slice %25 {offsets = [0, 96], sizes = [2, 32], strides = [1, 1]} : vector<2x128xf32> to vector<2x32xf32>
    %34 = arith.mulf %27, %16 : vector<2x32xf32>
    %35 = arith.mulf %26, %32 : vector<2x32xf32>
    %36 = arith.addf %34, %35 : vector<2x32xf32>
    %37 = math.tanh %36 : vector<2x32xf32>
    %38 = arith.mulf %33, %37 : vector<2x32xf32>
    %39 = vector.broadcast %14 : vector<1x32xf32> to vector<2x32xf32>
    %40 = arith.mulf %38, %39 : vector<2x32xf32>
    %cst_24 = arith.constant dense<0.000000e+00> : vector<2xf32>
    %41 = vector.multi_reduction <add>, %40, %cst_24 [1] : vector<2x32xf32> to vector<2xf32>
    %42 = vector.shape_cast %41 : vector<2xf32> to vector<2x1xf32>
    %43 = vector.extract_strided_slice %12 {offsets = [0, 1, 0], sizes = [2, 1, 128], strides = [1, 1, 1]} : vector<2x8x128xf32> to vector<2x1x128xf32>
    %44 = vector.shape_cast %43 : vector<2x1x128xf32> to vector<2x128xf32>
    %cst_25 = arith.constant dense<0.000000e+00> : vector<2x128xf32>
    %45 = tpu.matmul %38, %13, %cst_25 {dimension_numbers = #tpu.dot_dimension_numbers<[1], [0], [0], [1], [0, 0, 1, 1], [], []>, precision = #tpu.contract_precision<fp32>} : vector<2x32xf32>, vector<32x128xf32>, vector<2x128xf32> -> vector<2x128xf32>
    %46 = arith.addf %44, %45 : vector<2x128xf32>
    %47 = arith.negf %46 : vector<2x128xf32>
    %48 = math.exp %47 : vector<2x128xf32>
    %cst_26 = arith.constant 1.000000e+00 : f32
    %49 = vector.broadcast %cst_26 : f32 to vector<2x128xf32>
    %50 = arith.addf %49, %48 : vector<2x128xf32>
    %51 = arith.divf %49, %50 : vector<2x128xf32>
    %52 = vector.extract_strided_slice %51 {offsets = [0, 0], sizes = [2, 32], strides = [1, 1]} : vector<2x128xf32> to vector<2x32xf32>
    %53 = vector.extract_strided_slice %51 {offsets = [0, 32], sizes = [2, 32], strides = [1, 1]} : vector<2x128xf32> to vector<2x32xf32>
    %54 = vector.extract_strided_slice %51 {offsets = [0, 64], sizes = [2, 32], strides = [1, 1]} : vector<2x128xf32> to vector<2x32xf32>
    %cst_27 = arith.constant 2.000000e+00 : f32
    %55 = vector.broadcast %cst_27 : f32 to vector<2x32xf32>
    %56 = arith.mulf %55, %54 : vector<2x32xf32>
    %cst_28 = arith.constant 1.000000e+00 : f32
    %57 = vector.broadcast %cst_28 : f32 to vector<2x32xf32>
    %58 = arith.subf %56, %57 : vector<2x32xf32>
    %59 = vector.extract_strided_slice %51 {offsets = [0, 96], sizes = [2, 32], strides = [1, 1]} : vector<2x128xf32> to vector<2x32xf32>
    %60 = arith.mulf %53, %36 : vector<2x32xf32>
    %61 = arith.mulf %52, %58 : vector<2x32xf32>
    %62 = arith.addf %60, %61 : vector<2x32xf32>
    %63 = math.tanh %62 : vector<2x32xf32>
    %64 = arith.mulf %59, %63 : vector<2x32xf32>
    %65 = vector.broadcast %14 : vector<1x32xf32> to vector<2x32xf32>
    %66 = arith.mulf %64, %65 : vector<2x32xf32>
    %cst_29 = arith.constant dense<0.000000e+00> : vector<2xf32>
    %67 = vector.multi_reduction <add>, %66, %cst_29 [1] : vector<2x32xf32> to vector<2xf32>
    %68 = vector.shape_cast %67 : vector<2xf32> to vector<2x1xf32>
    %69 = vector.extract_strided_slice %12 {offsets = [0, 2, 0], sizes = [2, 1, 128], strides = [1, 1, 1]} : vector<2x8x128xf32> to vector<2x1x128xf32>
    %70 = vector.shape_cast %69 : vector<2x1x128xf32> to vector<2x128xf32>
    %cst_30 = arith.constant dense<0.000000e+00> : vector<2x128xf32>
    %71 = tpu.matmul %64, %13, %cst_30 {dimension_numbers = #tpu.dot_dimension_numbers<[1], [0], [0], [1], [0, 0, 1, 1], [], []>, precision = #tpu.contract_precision<fp32>} : vector<2x32xf32>, vector<32x128xf32>, vector<2x128xf32> -> vector<2x128xf32>
    %72 = arith.addf %70, %71 : vector<2x128xf32>
    %73 = arith.negf %72 : vector<2x128xf32>
    %74 = math.exp %73 : vector<2x128xf32>
    %cst_31 = arith.constant 1.000000e+00 : f32
    %75 = vector.broadcast %cst_31 : f32 to vector<2x128xf32>
    %76 = arith.addf %75, %74 : vector<2x128xf32>
    %77 = arith.divf %75, %76 : vector<2x128xf32>
    %78 = vector.extract_strided_slice %77 {offsets = [0, 0], sizes = [2, 32], strides = [1, 1]} : vector<2x128xf32> to vector<2x32xf32>
    %79 = vector.extract_strided_slice %77 {offsets = [0, 32], sizes = [2, 32], strides = [1, 1]} : vector<2x128xf32> to vector<2x32xf32>
    %80 = vector.extract_strided_slice %77 {offsets = [0, 64], sizes = [2, 32], strides = [1, 1]} : vector<2x128xf32> to vector<2x32xf32>
    %cst_32 = arith.constant 2.000000e+00 : f32
    %81 = vector.broadcast %cst_32 : f32 to vector<2x32xf32>
    %82 = arith.mulf %81, %80 : vector<2x32xf32>
    %cst_33 = arith.constant 1.000000e+00 : f32
    %83 = vector.broadcast %cst_33 : f32 to vector<2x32xf32>
    %84 = arith.subf %82, %83 : vector<2x32xf32>
    %85 = vector.extract_strided_slice %77 {offsets = [0, 96], sizes = [2, 32], strides = [1, 1]} : vector<2x128xf32> to vector<2x32xf32>
    %86 = arith.mulf %79, %62 : vector<2x32xf32>
    %87 = arith.mulf %78, %84 : vector<2x32xf32>
    %88 = arith.addf %86, %87 : vector<2x32xf32>
    %89 = math.tanh %88 : vector<2x32xf32>
    %90 = arith.mulf %85, %89 : vector<2x32xf32>
    %91 = vector.broadcast %14 : vector<1x32xf32> to vector<2x32xf32>
    %92 = arith.mulf %90, %91 : vector<2x32xf32>
    %cst_34 = arith.constant dense<0.000000e+00> : vector<2xf32>
    %93 = vector.multi_reduction <add>, %92, %cst_34 [1] : vector<2x32xf32> to vector<2xf32>
    %94 = vector.shape_cast %93 : vector<2xf32> to vector<2x1xf32>
    %95 = vector.extract_strided_slice %12 {offsets = [0, 3, 0], sizes = [2, 1, 128], strides = [1, 1, 1]} : vector<2x8x128xf32> to vector<2x1x128xf32>
    %96 = vector.shape_cast %95 : vector<2x1x128xf32> to vector<2x128xf32>
    %cst_35 = arith.constant dense<0.000000e+00> : vector<2x128xf32>
    %97 = tpu.matmul %90, %13, %cst_35 {dimension_numbers = #tpu.dot_dimension_numbers<[1], [0], [0], [1], [0, 0, 1, 1], [], []>, precision = #tpu.contract_precision<fp32>} : vector<2x32xf32>, vector<32x128xf32>, vector<2x128xf32> -> vector<2x128xf32>
    %98 = arith.addf %96, %97 : vector<2x128xf32>
    %99 = arith.negf %98 : vector<2x128xf32>
    %100 = math.exp %99 : vector<2x128xf32>
    %cst_36 = arith.constant 1.000000e+00 : f32
    %101 = vector.broadcast %cst_36 : f32 to vector<2x128xf32>
    %102 = arith.addf %101, %100 : vector<2x128xf32>
    %103 = arith.divf %101, %102 : vector<2x128xf32>
    %104 = vector.extract_strided_slice %103 {offsets = [0, 0], sizes = [2, 32], strides = [1, 1]} : vector<2x128xf32> to vector<2x32xf32>
    %105 = vector.extract_strided_slice %103 {offsets = [0, 32], sizes = [2, 32], strides = [1, 1]} : vector<2x128xf32> to vector<2x32xf32>
    %106 = vector.extract_strided_slice %103 {offsets = [0, 64], sizes = [2, 32], strides = [1, 1]} : vector<2x128xf32> to vector<2x32xf32>
    %cst_37 = arith.constant 2.000000e+00 : f32
    %107 = vector.broadcast %cst_37 : f32 to vector<2x32xf32>
    %108 = arith.mulf %107, %106 : vector<2x32xf32>
    %cst_38 = arith.constant 1.000000e+00 : f32
    %109 = vector.broadcast %cst_38 : f32 to vector<2x32xf32>
    %110 = arith.subf %108, %109 : vector<2x32xf32>
    %111 = vector.extract_strided_slice %103 {offsets = [0, 96], sizes = [2, 32], strides = [1, 1]} : vector<2x128xf32> to vector<2x32xf32>
    %112 = arith.mulf %105, %88 : vector<2x32xf32>
    %113 = arith.mulf %104, %110 : vector<2x32xf32>
    %114 = arith.addf %112, %113 : vector<2x32xf32>
    %115 = math.tanh %114 : vector<2x32xf32>
    %116 = arith.mulf %111, %115 : vector<2x32xf32>
    %117 = vector.broadcast %14 : vector<1x32xf32> to vector<2x32xf32>
    %118 = arith.mulf %116, %117 : vector<2x32xf32>
    %cst_39 = arith.constant dense<0.000000e+00> : vector<2xf32>
    %119 = vector.multi_reduction <add>, %118, %cst_39 [1] : vector<2x32xf32> to vector<2xf32>
    %120 = vector.shape_cast %119 : vector<2xf32> to vector<2x1xf32>
    %121 = vector.extract_strided_slice %12 {offsets = [0, 4, 0], sizes = [2, 1, 128], strides = [1, 1, 1]} : vector<2x8x128xf32> to vector<2x1x128xf32>
    %122 = vector.shape_cast %121 : vector<2x1x128xf32> to vector<2x128xf32>
    %cst_40 = arith.constant dense<0.000000e+00> : vector<2x128xf32>
    %123 = tpu.matmul %116, %13, %cst_40 {dimension_numbers = #tpu.dot_dimension_numbers<[1], [0], [0], [1], [0, 0, 1, 1], [], []>, precision = #tpu.contract_precision<fp32>} : vector<2x32xf32>, vector<32x128xf32>, vector<2x128xf32> -> vector<2x128xf32>
    %124 = arith.addf %122, %123 : vector<2x128xf32>
    %125 = arith.negf %124 : vector<2x128xf32>
    %126 = math.exp %125 : vector<2x128xf32>
    %cst_41 = arith.constant 1.000000e+00 : f32
    %127 = vector.broadcast %cst_41 : f32 to vector<2x128xf32>
    %128 = arith.addf %127, %126 : vector<2x128xf32>
    %129 = arith.divf %127, %128 : vector<2x128xf32>
    %130 = vector.extract_strided_slice %129 {offsets = [0, 0], sizes = [2, 32], strides = [1, 1]} : vector<2x128xf32> to vector<2x32xf32>
    %131 = vector.extract_strided_slice %129 {offsets = [0, 32], sizes = [2, 32], strides = [1, 1]} : vector<2x128xf32> to vector<2x32xf32>
    %132 = vector.extract_strided_slice %129 {offsets = [0, 64], sizes = [2, 32], strides = [1, 1]} : vector<2x128xf32> to vector<2x32xf32>
    %cst_42 = arith.constant 2.000000e+00 : f32
    %133 = vector.broadcast %cst_42 : f32 to vector<2x32xf32>
    %134 = arith.mulf %133, %132 : vector<2x32xf32>
    %cst_43 = arith.constant 1.000000e+00 : f32
    %135 = vector.broadcast %cst_43 : f32 to vector<2x32xf32>
    %136 = arith.subf %134, %135 : vector<2x32xf32>
    %137 = vector.extract_strided_slice %129 {offsets = [0, 96], sizes = [2, 32], strides = [1, 1]} : vector<2x128xf32> to vector<2x32xf32>
    %138 = arith.mulf %131, %114 : vector<2x32xf32>
    %139 = arith.mulf %130, %136 : vector<2x32xf32>
    %140 = arith.addf %138, %139 : vector<2x32xf32>
    %141 = math.tanh %140 : vector<2x32xf32>
    %142 = arith.mulf %137, %141 : vector<2x32xf32>
    %143 = vector.broadcast %14 : vector<1x32xf32> to vector<2x32xf32>
    %144 = arith.mulf %142, %143 : vector<2x32xf32>
    %cst_44 = arith.constant dense<0.000000e+00> : vector<2xf32>
    %145 = vector.multi_reduction <add>, %144, %cst_44 [1] : vector<2x32xf32> to vector<2xf32>
    %146 = vector.shape_cast %145 : vector<2xf32> to vector<2x1xf32>
    %147 = vector.extract_strided_slice %12 {offsets = [0, 5, 0], sizes = [2, 1, 128], strides = [1, 1, 1]} : vector<2x8x128xf32> to vector<2x1x128xf32>
    %148 = vector.shape_cast %147 : vector<2x1x128xf32> to vector<2x128xf32>
    %cst_45 = arith.constant dense<0.000000e+00> : vector<2x128xf32>
    %149 = tpu.matmul %142, %13, %cst_45 {dimension_numbers = #tpu.dot_dimension_numbers<[1], [0], [0], [1], [0, 0, 1, 1], [], []>, precision = #tpu.contract_precision<fp32>} : vector<2x32xf32>, vector<32x128xf32>, vector<2x128xf32> -> vector<2x128xf32>
    %150 = arith.addf %148, %149 : vector<2x128xf32>
    %151 = arith.negf %150 : vector<2x128xf32>
    %152 = math.exp %151 : vector<2x128xf32>
    %cst_46 = arith.constant 1.000000e+00 : f32
    %153 = vector.broadcast %cst_46 : f32 to vector<2x128xf32>
    %154 = arith.addf %153, %152 : vector<2x128xf32>
    %155 = arith.divf %153, %154 : vector<2x128xf32>
    %156 = vector.extract_strided_slice %155 {offsets = [0, 0], sizes = [2, 32], strides = [1, 1]} : vector<2x128xf32> to vector<2x32xf32>
    %157 = vector.extract_strided_slice %155 {offsets = [0, 32], sizes = [2, 32], strides = [1, 1]} : vector<2x128xf32> to vector<2x32xf32>
    %158 = vector.extract_strided_slice %155 {offsets = [0, 64], sizes = [2, 32], strides = [1, 1]} : vector<2x128xf32> to vector<2x32xf32>
    %cst_47 = arith.constant 2.000000e+00 : f32
    %159 = vector.broadcast %cst_47 : f32 to vector<2x32xf32>
    %160 = arith.mulf %159, %158 : vector<2x32xf32>
    %cst_48 = arith.constant 1.000000e+00 : f32
    %161 = vector.broadcast %cst_48 : f32 to vector<2x32xf32>
    %162 = arith.subf %160, %161 : vector<2x32xf32>
    %163 = vector.extract_strided_slice %155 {offsets = [0, 96], sizes = [2, 32], strides = [1, 1]} : vector<2x128xf32> to vector<2x32xf32>
    %164 = arith.mulf %157, %140 : vector<2x32xf32>
    %165 = arith.mulf %156, %162 : vector<2x32xf32>
    %166 = arith.addf %164, %165 : vector<2x32xf32>
    %167 = math.tanh %166 : vector<2x32xf32>
    %168 = arith.mulf %163, %167 : vector<2x32xf32>
    %169 = vector.broadcast %14 : vector<1x32xf32> to vector<2x32xf32>
    %170 = arith.mulf %168, %169 : vector<2x32xf32>
    %cst_49 = arith.constant dense<0.000000e+00> : vector<2xf32>
    %171 = vector.multi_reduction <add>, %170, %cst_49 [1] : vector<2x32xf32> to vector<2xf32>
    %172 = vector.shape_cast %171 : vector<2xf32> to vector<2x1xf32>
    %173 = vector.extract_strided_slice %12 {offsets = [0, 6, 0], sizes = [2, 1, 128], strides = [1, 1, 1]} : vector<2x8x128xf32> to vector<2x1x128xf32>
    %174 = vector.shape_cast %173 : vector<2x1x128xf32> to vector<2x128xf32>
    %cst_50 = arith.constant dense<0.000000e+00> : vector<2x128xf32>
    %175 = tpu.matmul %168, %13, %cst_50 {dimension_numbers = #tpu.dot_dimension_numbers<[1], [0], [0], [1], [0, 0, 1, 1], [], []>, precision = #tpu.contract_precision<fp32>} : vector<2x32xf32>, vector<32x128xf32>, vector<2x128xf32> -> vector<2x128xf32>
    %176 = arith.addf %174, %175 : vector<2x128xf32>
    %177 = arith.negf %176 : vector<2x128xf32>
    %178 = math.exp %177 : vector<2x128xf32>
    %cst_51 = arith.constant 1.000000e+00 : f32
    %179 = vector.broadcast %cst_51 : f32 to vector<2x128xf32>
    %180 = arith.addf %179, %178 : vector<2x128xf32>
    %181 = arith.divf %179, %180 : vector<2x128xf32>
    %182 = vector.extract_strided_slice %181 {offsets = [0, 0], sizes = [2, 32], strides = [1, 1]} : vector<2x128xf32> to vector<2x32xf32>
    %183 = vector.extract_strided_slice %181 {offsets = [0, 32], sizes = [2, 32], strides = [1, 1]} : vector<2x128xf32> to vector<2x32xf32>
    %184 = vector.extract_strided_slice %181 {offsets = [0, 64], sizes = [2, 32], strides = [1, 1]} : vector<2x128xf32> to vector<2x32xf32>
    %cst_52 = arith.constant 2.000000e+00 : f32
    %185 = vector.broadcast %cst_52 : f32 to vector<2x32xf32>
    %186 = arith.mulf %185, %184 : vector<2x32xf32>
    %cst_53 = arith.constant 1.000000e+00 : f32
    %187 = vector.broadcast %cst_53 : f32 to vector<2x32xf32>
    %188 = arith.subf %186, %187 : vector<2x32xf32>
    %189 = vector.extract_strided_slice %181 {offsets = [0, 96], sizes = [2, 32], strides = [1, 1]} : vector<2x128xf32> to vector<2x32xf32>
    %190 = arith.mulf %183, %166 : vector<2x32xf32>
    %191 = arith.mulf %182, %188 : vector<2x32xf32>
    %192 = arith.addf %190, %191 : vector<2x32xf32>
    %193 = math.tanh %192 : vector<2x32xf32>
    %194 = arith.mulf %189, %193 : vector<2x32xf32>
    %195 = vector.broadcast %14 : vector<1x32xf32> to vector<2x32xf32>
    %196 = arith.mulf %194, %195 : vector<2x32xf32>
    %cst_54 = arith.constant dense<0.000000e+00> : vector<2xf32>
    %197 = vector.multi_reduction <add>, %196, %cst_54 [1] : vector<2x32xf32> to vector<2xf32>
    %198 = vector.shape_cast %197 : vector<2xf32> to vector<2x1xf32>
    %199 = vector.extract_strided_slice %12 {offsets = [0, 7, 0], sizes = [2, 1, 128], strides = [1, 1, 1]} : vector<2x8x128xf32> to vector<2x1x128xf32>
    %200 = vector.shape_cast %199 : vector<2x1x128xf32> to vector<2x128xf32>
    %cst_55 = arith.constant dense<0.000000e+00> : vector<2x128xf32>
    %201 = tpu.matmul %194, %13, %cst_55 {dimension_numbers = #tpu.dot_dimension_numbers<[1], [0], [0], [1], [0, 0, 1, 1], [], []>, precision = #tpu.contract_precision<fp32>} : vector<2x32xf32>, vector<32x128xf32>, vector<2x128xf32> -> vector<2x128xf32>
    %202 = arith.addf %200, %201 : vector<2x128xf32>
    %203 = arith.negf %202 : vector<2x128xf32>
    %204 = math.exp %203 : vector<2x128xf32>
    %cst_56 = arith.constant 1.000000e+00 : f32
    %205 = vector.broadcast %cst_56 : f32 to vector<2x128xf32>
    %206 = arith.addf %205, %204 : vector<2x128xf32>
    %207 = arith.divf %205, %206 : vector<2x128xf32>
    %208 = vector.extract_strided_slice %207 {offsets = [0, 0], sizes = [2, 32], strides = [1, 1]} : vector<2x128xf32> to vector<2x32xf32>
    %209 = vector.extract_strided_slice %207 {offsets = [0, 32], sizes = [2, 32], strides = [1, 1]} : vector<2x128xf32> to vector<2x32xf32>
    %210 = vector.extract_strided_slice %207 {offsets = [0, 64], sizes = [2, 32], strides = [1, 1]} : vector<2x128xf32> to vector<2x32xf32>
    %cst_57 = arith.constant 2.000000e+00 : f32
    %211 = vector.broadcast %cst_57 : f32 to vector<2x32xf32>
    %212 = arith.mulf %211, %210 : vector<2x32xf32>
    %cst_58 = arith.constant 1.000000e+00 : f32
    %213 = vector.broadcast %cst_58 : f32 to vector<2x32xf32>
    %214 = arith.subf %212, %213 : vector<2x32xf32>
    %215 = vector.extract_strided_slice %207 {offsets = [0, 96], sizes = [2, 32], strides = [1, 1]} : vector<2x128xf32> to vector<2x32xf32>
    %216 = arith.mulf %209, %192 : vector<2x32xf32>
    %217 = arith.mulf %208, %214 : vector<2x32xf32>
    %218 = arith.addf %216, %217 : vector<2x32xf32>
    %219 = math.tanh %218 : vector<2x32xf32>
    %220 = arith.mulf %215, %219 : vector<2x32xf32>
    %221 = vector.broadcast %14 : vector<1x32xf32> to vector<2x32xf32>
    %222 = arith.mulf %220, %221 : vector<2x32xf32>
    %cst_59 = arith.constant dense<0.000000e+00> : vector<2xf32>
    %223 = vector.multi_reduction <add>, %222, %cst_59 [1] : vector<2x32xf32> to vector<2xf32>
    %224 = vector.shape_cast %223 : vector<2xf32> to vector<2x1xf32>
    %c0_60 = arith.constant 0 : index
    %c0_61 = arith.constant 0 : index
    %225 = vector.load %arg11[%c0_60, %c0_61] : memref<2x32xf32, #tpu.memory_space<vmem>>, vector<2x32xf32>
    tpu.vector_store %arg11[%c0_60, %c0_61], %220 {strides = array<i32>} : memref<2x32xf32, #tpu.memory_space<vmem>>, vector<2x32xf32>,
    %c0_62 = arith.constant 0 : index
    %c0_63 = arith.constant 0 : index
    %226 = vector.load %arg12[%c0_62, %c0_63] : memref<2x32xf32, #tpu.memory_space<vmem>>, vector<2x32xf32>
    tpu.vector_store %arg12[%c0_62, %c0_63], %218 {strides = array<i32>} : memref<2x32xf32, #tpu.memory_space<vmem>>, vector<2x32xf32>,
    %227 = tpu.concatenate %42, %68, %94, %120, %146, %172, %198, %224 in 1 : vector<2x1xf32>, vector<2x1xf32>, vector<2x1xf32>, vector<2x1xf32>, vector<2x1xf32>, vector<2x1xf32>, vector<2x1xf32>, vector<2x1xf32> -> vector<2x8xf32>
    %c0_64 = arith.constant 0 : index
    %228 = memref.load %arg9[%c0_64] : memref<1xf32, #tpu.memory_space<smem>>
    %229 = vector.broadcast %228 : f32 to vector<2x8xf32>
    %230 = arith.addf %227, %229 : vector<2x8xf32>
    %c0_65 = arith.constant 0 : index
    %c0_66 = arith.constant 0 : index
    %231 = vector.load %arg10[%c0_65, %c0_66] : memref<2x8xf32, #tpu.memory_space<vmem>>, vector<2x8xf32>
    tpu.vector_store %arg10[%c0_65, %c0_66], %230 {strides = array<i32>} : memref<2x8xf32, #tpu.memory_space<vmem>>, vector<2x8xf32>,
    return
  }
}

</mosaic_0001>

<llo_original>
// kernel: tpu_custom_call.1
$region0: #{tpu_custom_call.1}
  #allocation0 [shape = 'u32[]', space=smem, size = 0x4, offset = 0x4, fixed_abs, tag = 'smem constant byte address 0x4 - core index']
  #allocation1 [shape = 'u32[144,128]{1,0:T(1,128)}', space=vmem, size = 0x12000, scoped, tag = 'internal scratch']
  #allocation2 [shape = 'f32[1]{0:T(128)S(6)}', space=smem, size = 0x200, scoped, tag = 'scoped memory for tpu_custom_call.1']
  %s0 = inlined_call_operand.hbm [shape: f32[2,8,12], index: 0, kind: input, shape index: {}]
  %s1 = inlined_call_operand.vmem [shape: f32[2,8,4], index: 1, kind: input, shape index: {}]
  %s2 = inlined_call_operand.hbm [shape: f32[12,128], index: 2, kind: input, shape index: {}]
  %s3 = inlined_call_operand.vmem [shape: f32[4,128], index: 3, kind: input, shape index: {}]
  %s4 = inlined_call_operand.vmem [shape: f32[32,128], index: 4, kind: input, shape index: {}]
  %s5 = inlined_call_operand.vmem [shape: f32[1,128], index: 5, kind: input, shape index: {}]
  %s6 = inlined_call_operand.vmem [shape: f32[1,32], index: 6, kind: input, shape index: {}]
  %s7 = inlined_call_operand.vmem [shape: f32[2,32], index: 7, kind: input, shape index: {}]
  %s8 = inlined_call_operand.vmem [shape: f32[2,32], index: 8, kind: input, shape index: {}]
  %s9 = inlined_call_operand.<no memory space> [shape: f32[1], index: 9, kind: input, shape index: {}]
  %s10 = inlined_call_operand.hbm [shape: f32[2,8], index: 10, kind: output, shape index: {0}]
  %s11 = inlined_call_operand.hbm [shape: f32[2,32], index: 11, kind: output, shape index: {1}]
  %s12 = inlined_call_operand.hbm [shape: f32[2,32], index: 12, kind: output, shape index: {2}]
  %13 = xla_tuple %s10, %s11, %s12
  %s14 = sld [smem:[#allocation0]]
  $region74: #{tpu_custom_call.1} parent=0
    _
  %s16 = ssub.s32 1, %s14
  %s17 = scalar_select 0, %s16, %s14
  %18 = sst [smem:[#allocation2]] %s9
  $region1: #{tpu_custom_call.1} parent=0
    #allocation3 [shape = 'u8[8192]{0}', space=vmem, size = 0x2000, scoped, tag = 'input window, operand 0, single buffered']
    #allocation4 [shape = 's32[1]{0}', space=sflag, size = 0x4, scoped, tag = 'scoped memory for tpu_custom_call.1']
    #allocation5 [shape = 's32[1]{0}', space=sflag, size = 0x4, scoped, tag = 'scoped memory for tpu_custom_call.1']
    #allocation6 [shape = 'u8[8192]{0}', space=vmem, size = 0x2000, scoped, tag = 'input window, operand 2, single buffered']
    #allocation7 [shape = 's32[1]{0}', space=sflag, size = 0x4, scoped, tag = 'scoped memory for tpu_custom_call.1']
    #allocation8 [shape = 'u8[1024]{0}', space=vmem, size = 0x400, scoped, tag = 'output window, operand 0, single buffered']
    #allocation9 [shape = 'u8[1024]{0}', space=vmem, size = 0x400, scoped, tag = 'output window, operand 1, single buffered']
    #allocation10 [shape = 's32[1]{0}', space=sflag, size = 0x4, scoped, tag = 'scoped memory for tpu_custom_call.1']
    #allocation11 [shape = 'u8[1024]{0}', space=vmem, size = 0x400, scoped, tag = 'output window, operand 2, single buffered']
    %19 = vsyncpa [#allocation4], 0
    %20 = vsyncpa [#allocation7], 0
    %21 = vsyncpa [#allocation5], 0
    %22 = vsyncpa [#allocation10], 0
    // Predicated region
    $region2: #{tpu_custom_call.1} parent=1 // pred_check
      _
    $region3: #{tpu_custom_call.1} parent=1 // pred_check_branch
      %24 = sbr.rel (0) target = $region5
    $region4: #{tpu_custom_call.1} parent=1 // pred_region
      %s26 = ssub.s32 256, 256
      %27 = vsyncadd [#allocation4], %s26
      %s28 = sshll.u32 [#allocation3], 4
      %s29 = int_to_ptr.vmem [resolvable:$true] %s28
      %34 = dma.hbm_to_vmem [thread:$0]  %s0, 256, %s29, [#allocation4], 128, 128, 8
    $region5: #{tpu_custom_call.1} parent=1 // pred_fallthru
      _
    // Predicated region
    $region6: #{tpu_custom_call.1} parent=1 // pred_check
      _
    $region7: #{tpu_custom_call.1} parent=1 // pred_check_branch
      %36 = sbr.rel (0) target = $region9
    $region8: #{tpu_custom_call.1} parent=1 // pred_region
      _
    $region9: #{tpu_custom_call.1} parent=1 // pred_fallthru
      _
    // Predicated region
    $region10: #{tpu_custom_call.1} parent=1 // pred_check
      _
    $region11: #{tpu_custom_call.1} parent=1 // pred_check_branch
      %38 = sbr.rel (0) target = $region13
    $region12: #{tpu_custom_call.1} parent=1 // pred_region
      %s40 = ssub.s32 256, 256
      %41 = vsyncadd [#allocation7], %s40
      %s42 = sshll.u32 [#allocation6], 4
      %s43 = int_to_ptr.vmem [resolvable:$true] %s42
      %48 = dma.hbm_to_vmem [thread:$0]  %s2, 256, %s43, [#allocation7], 128, 128, 8
    $region13: #{tpu_custom_call.1} parent=1 // pred_fallthru
      _
    // Predicated region
    $region14: #{tpu_custom_call.1} parent=1 // pred_check
      _
    $region15: #{tpu_custom_call.1} parent=1 // pred_check_branch
      %50 = sbr.rel (0) target = $region17
    $region16: #{tpu_custom_call.1} parent=1 // pred_region
      _
    $region17: #{tpu_custom_call.1} parent=1 // pred_fallthru
      _
    // Predicated region
    $region18: #{tpu_custom_call.1} parent=1 // pred_check
      _
    $region19: #{tpu_custom_call.1} parent=1 // pred_check_branch
      %52 = sbr.rel (0) target = $region21
    $region20: #{tpu_custom_call.1} parent=1 // pred_region
      _
    $region21: #{tpu_custom_call.1} parent=1 // pred_fallthru
      _
    // Predicated region
    $region22: #{tpu_custom_call.1} parent=1 // pred_check
      _
    $region23: #{tpu_custom_call.1} parent=1 // pred_check_branch
      %54 = sbr.rel (0) target = $region25
    $region24: #{tpu_custom_call.1} parent=1 // pred_region
      _
    $region25: #{tpu_custom_call.1} parent=1 // pred_fallthru
      _
    // Predicated region
    $region26: #{tpu_custom_call.1} parent=1 // pred_check
      _
    $region27: #{tpu_custom_call.1} parent=1 // pred_check_branch
      %56 = sbr.rel (0) target = $region29
    $region28: #{tpu_custom_call.1} parent=1 // pred_region
      _
    $region29: #{tpu_custom_call.1} parent=1 // pred_fallthru
      _
    // Predicated region
    $region30: #{tpu_custom_call.1} parent=1 // pred_check
      _
    $region31: #{tpu_custom_call.1} parent=1 // pred_check_branch
      %58 = sbr.rel (0) target = $region33
    $region32: #{tpu_custom_call.1} parent=1 // pred_region
      _
    $region33: #{tpu_custom_call.1} parent=1 // pred_fallthru
      _
    // Predicated region
    $region34: #{tpu_custom_call.1} parent=1 // pred_check
      _
    $region35: #{tpu_custom_call.1} parent=1 // pred_check_branch
      %60 = sbr.rel (0) target = $region37
    $region36: #{tpu_custom_call.1} parent=1 // pred_region
      _
    $region37: #{tpu_custom_call.1} parent=1 // pred_fallthru
      _
    // Predicated region
    $region38: #{tpu_custom_call.1} parent=1 // pred_check
      _
    $region39: #{tpu_custom_call.1} parent=1 // pred_check_branch
      %62 = sbr.rel (0) target = $region41
    $region40: #{tpu_custom_call.1} parent=1 // pred_region
      _
    $region41: #{tpu_custom_call.1} parent=1 // pred_fallthru
      _
    // Predicated region
    $region42: #{tpu_custom_call.1} parent=1 // pred_check
      _
    $region43: #{tpu_custom_call.1} parent=1 // pred_check_branch
      %64 = sbr.rel (0) target = $region45
    $region44: #{tpu_custom_call.1} parent=1 // pred_region
      %65 = dma.done [#allocation4], 256
    $region45: #{tpu_custom_call.1} parent=1 // pred_fallthru
      _
    // Predicated region
    $region46: #{tpu_custom_call.1} parent=1 // pred_check
      _
    $region47: #{tpu_custom_call.1} parent=1 // pred_check_branch
      %67 = sbr.rel (0) target = $region49
    $region48: #{tpu_custom_call.1} parent=1 // pred_region
      %68 = dma.done [#allocation7], 256
    $region49: #{tpu_custom_call.1} parent=1 // pred_fallthru
      _
    %v69 = vld [vmem:[#allocation3] sm:$0xff]
    %v70 = vld [vmem:[#allocation3 + $0x8] sm:$0xff]
    %v71 = vld [vmem:[%s1] sm:$0xff]
    %v72 = vld [vmem:[%s1 + $0x8] sm:$0xff]
    %v73 = vld [vmem:[#allocation6] sm:$0xff]
    %v74 = vld [vmem:[#allocation6 + $0x8] sm:$0xf]
    %v75 = vld [vmem:[%s3] sm:$0xf]
    %vm76 = vcmask 31744
    %v78 = vsel %vm76, %v71, 0
    %v81 = vsel %vm76, %v72, 0
    %vm83 = vcmask 1043456
    %v85 = vsel %vm83, %v75, 0
    %87 = vmatprep.subr.mxu0 0.0
    %v88 = vand.u32 %v85, 4294901760
    %89 = vmatpush1.msra.mxu0 %v88
    %90 = vmatprep.subr.mxu0 0.0
    %91 = vmatpush1.msra.mxu0 0.0
    %92 = vmatprep.subr.mxu0 0.0
    %93 = vmatpush1.msra.mxu0 0.0
    %94 = vmatprep.subr.mxu0 0.0
    %95 = vmatpush1.msra.mxu0 0.0
    %96 = vmatprep.subr.mxu0 0.0
    %97 = vmatpush1.msra.mxu0 0.0
    %98 = vmatprep.subr.mxu0 0.0
    %99 = vmatpush1.msra.mxu0 0.0
    %100 = vmatprep.subr.mxu0 0.0
    %101 = vmatpush1.msra.mxu0 0.0
    %102 = vmatprep.subr.mxu0 0.0
    %103 = vmatpush1.msra.mxu0 0.0
    %104 = vmatprep.subr.mxu0 0.0
    %105 = vmatpush1.msra.mxu0 0.0
    %106 = vmatprep.subr.mxu0 0.0
    %107 = vmatpush1.msra.mxu0 0.0
    %108 = vmatprep.subr.mxu0 0.0
    %109 = vmatpush1.msra.mxu0 0.0
    %110 = vmatprep.subr.mxu0 0.0
    %111 = vmatpush1.msra.mxu0 0.0
    %112 = vmatprep.subr.mxu0 0.0
    %113 = vmatpush1.msra.mxu0 0.0
    %114 = vmatprep.subr.mxu0 0.0
    %115 = vmatpush1.msra.mxu0 0.0
    %116 = vmatprep.subr.mxu0 0.0
    %117 = vmatpush1.msra.mxu0 0.0
    %118 = vmatprep.subr.mxu0 0.0
    %119 = vmatpush1.msra.mxu0 0.0
    %120 = vmatprep.subr.mxu0 0.0
    %121 = vmatpush1.msra.mxu0 0.0
    %122 = vmatprep.subr.mxu0 0.0
    %123 = vmatpush1.msra.mxu0 0.0
    %124 = vmatprep.subr.mxu0 0.0
    %125 = vmatpush1.msra.mxu0 0.0
    %126 = vmatprep.subr.mxu0 0.0
    %127 = vmatpush1.msra.mxu0 0.0
    %128 = vmatprep.subr.mxu0 0.0
    %129 = vmatpush1.msra.mxu0 0.0
    %130 = vmatprep.subr.mxu0 0.0
    %131 = vmatpush1.msra.mxu0 0.0
    %132 = vmatprep.subr.mxu0 0.0
    %133 = vmatpush1.msra.mxu0 0.0
    %134 = vmatprep.subr.mxu0 0.0
    %135 = vmatpush1.msra.mxu0 0.0
    %136 = vmatprep.subr.mxu0 0.0
    %137 = vmatpush1.msra.mxu0 0.0
    %138 = vmatprep.subr.mxu0 0.0
    %139 = vmatpush1.msra.mxu0 0.0
    %140 = vmatprep.subr.mxu0 0.0
    %141 = vmatpush1.msra.mxu0 0.0
    %142 = vmatprep.subr.mxu0 0.0
    %143 = vmatpush1.msra.mxu0 0.0
    %144 = vmatprep.subr.mxu0 0.0
    %145 = vmatpush1.msra.mxu0 0.0
    %146 = vmatprep.subr.mxu0 0.0
    %147 = vmatpush1.msra.mxu0 0.0
    %148 = vmatprep.subr.mxu0 0.0
    %149 = vmatpush1.msra.mxu0 0.0
    %150 = vmatprep.subr.mxu0 0.0
    %151 = vmatpush1.msra.mxu0 0.0
    %152 = vmatprep.mubr.f32.mxu0 0.0
    %v153 = vand.u32 %v78, 4294901760
    %v154 = vsub.f32 %v78, %v153
    %v155 = vand.u32 %v154, 4294901760
    %v156 = vsub.f32 %v154, %v155
    %v157 = vand.u32 %v156, 4294901760
    %158 = vmatmul.mubr.f32.gmra.mrb[0].mxu0 %v157
    %v159 = vpop.f32.mrb[0].mxu0
    %v160 = vadd.f32 0.0, %v159
    %v161 = vpop.f32.mrb[0].mxu0
    %162 = vmatprep.mubr.f32.mxu0 0.0
    %v163 = vand.u32 %v81, 4294901760
    %v164 = vsub.f32 %v81, %v163
    %v165 = vand.u32 %v164, 4294901760
    %v166 = vsub.f32 %v164, %v165
    %v167 = vand.u32 %v166, 4294901760
    %168 = vmatmul.mubr.f32.gmra.mrb[0].mxu0 %v167
    %v169 = vpop.f32.mrb[0].mxu0
    %v170 = vadd.f32 0.0, %v169
    %v171 = vpop.f32.mrb[0].mxu0
    %172 = vdwg.mxu0
    %173 = vmatprep.subr.mxu0 0.0
    %v174 = vand.u32 %v85, 4294901760
    %v175 = vsub.f32 %v85, %v174
    %v176 = vand.u32 %v175, 4294901760
    %v177 = vsub.f32 %v175, %v176
    %v178 = vand.u32 %v177, 4294901760
    %179 = vmatpush1.msra.mxu0 %v178
    %180 = vmatprep.subr.mxu0 0.0
    %181 = vmatpush1.msra.mxu0 0.0
    %182 = vmatprep.subr.mxu0 0.0
    %183 = vmatpush1.msra.mxu0 0.0
    %184 = vmatprep.subr.mxu0 0.0
    %185 = vmatpush1.msra.mxu0 0.0
    %186 = vmatprep.subr.mxu0 0.0
    %187 = vmatpush1.msra.mxu0 0.0
    %188 = vmatprep.subr.mxu0 0.0
    %189 = vmatpush1.msra.mxu0 0.0
    %190 = vmatprep.subr.mxu0 0.0
    %191 = vmatpush1.msra.mxu0 0.0
    %192 = vmatprep.subr.mxu0 0.0
    %193 = vmatpush1.msra.mxu0 0.0
    %194 = vmatprep.subr.mxu0 0.0
    %195 = vmatpush1.msra.mxu0 0.0
    %196 = vmatprep.subr.mxu0 0.0
    %197 = vmatpush1.msra.mxu0 0.0
    %198 = vmatprep.subr.mxu0 0.0
    %199 = vmatpush1.msra.mxu0 0.0
    %200 = vmatprep.subr.mxu0 0.0
    %201 = vmatpush1.msra.mxu0 0.0
    %202 = vmatprep.subr.mxu0 0.0
    %203 = vmatpush1.msra.mxu0 0.0
    %204 = vmatprep.subr.mxu0 0.0
    %205 = vmatpush1.msra.mxu0 0.0
    %206 = vmatprep.subr.mxu0 0.0
    %207 = vmatpush1.msra.mxu0 0.0
    %208 = vmatprep.subr.mxu0 0.0
    %209 = vmatpush1.msra.mxu0 0.0
    %210 = vmatprep.subr.mxu0 0.0
    %211 = vmatpush1.msra.mxu0 0.0
    %212 = vmatprep.subr.mxu0 0.0
    %213 = vmatpush1.msra.mxu0 0.0
    %214 = vmatprep.subr.mxu0 0.0
    %215 = vmatpush1.msra.mxu0 0.0
    %216 = vmatprep.subr.mxu0 0.0
    %217 = vmatpush1.msra.mxu0 0.0
    %218 = vmatprep.subr.mxu0 0.0
    %219 = vmatpush1.msra.mxu0 0.0
    %220 = vmatprep.subr.mxu0 0.0
    %221 = vmatpush1.msra.mxu0 0.0
    %222 = vmatprep.subr.mxu0 0.0
    %223 = vmatpush1.msra.mxu0 0.0
    %224 = vmatprep.subr.mxu0 0.0
    %225 = vmatpush1.msra.mxu0 0.0
    %226 = vmatprep.subr.mxu0 0.0
    %227 = vmatpush1.msra.mxu0 0.0
    %228 = vmatprep.subr.mxu0 0.0
    %229 = vmatpush1.msra.mxu0 0.0
    %230 = vmatprep.subr.mxu0 0.0
    %231 = vmatpush1.msra.mxu0 0.0
    %232 = vmatprep.subr.mxu0 0.0
    %233 = vmatpush1.msra.mxu0 0.0
    %234 = vmatprep.subr.mxu0 0.0
    %235 = vmatpush1.msra.mxu0 0.0
    %236 = vmatprep.subr.mxu0 0.0
    %237 = vmatpush1.msra.mxu0 0.0
    %238 = vmatprep.subr.mxu0 0.0
    %239 = vmatpush1.msra.mxu0 0.0
    %240 = vmatprep.subr.mxu0 0.0
    %241 = vmatpush1.msra.mxu0 0.0
    %242 = vmatprep.mubr.f32.mxu0 0.0
    %v243 = vand.u32 %v78, 4294901760
    %244 = vmatmul.mubr.f32.gmra.mrb[0].mxu0 %v243
    %v245 = vpop.f32.mrb[0].mxu0
    %v246 = vadd.f32 %v160, %v245
    %v247 = vpop.f32.mrb[0].mxu0
    %248 = vmatprep.mubr.f32.mxu0 0.0
    %v249 = vand.u32 %v81, 4294901760
    %250 = vmatmul.mubr.f32.gmra.mrb[0].mxu0 %v249
    %v251 = vpop.f32.mrb[0].mxu0
    %v252 = vadd.f32 %v170, %v251
    %v253 = vpop.f32.mrb[0].mxu0
    %254 = vdwg.mxu0
    %255 = vmatprep.subr.mxu0 0.0
    %v256 = vand.u32 %v85, 4294901760
    %v257 = vsub.f32 %v85, %v256
    %258 = vmatpush1.msra.mxu0 %v257
    %259 = vmatprep.subr.mxu0 0.0
    %260 = vmatpush1.msra.mxu0 0.0
    %261 = vmatprep.subr.mxu0 0.0
    %262 = vmatpush1.msra.mxu0 0.0
    %263 = vmatprep.subr.mxu0 0.0
    %264 = vmatpush1.msra.mxu0 0.0
    %265 = vmatprep.subr.mxu0 0.0
    %266 = vmatpush1.msra.mxu0 0.0
    %267 = vmatprep.subr.mxu0 0.0
    %268 = vmatpush1.msra.mxu0 0.0
    %269 = vmatprep.subr.mxu0 0.0
    %270 = vmatpush1.msra.mxu0 0.0
    %271 = vmatprep.subr.mxu0 0.0
    %272 = vmatpush1.msra.mxu0 0.0
    %273 = vmatprep.subr.mxu0 0.0
    %274 = vmatpush1.msra.mxu0 0.0
    %275 = vmatprep.subr.mxu0 0.0
    %276 = vmatpush1.msra.mxu0 0.0
    %277 = vmatprep.subr.mxu0 0.0
    %278 = vmatpush1.msra.mxu0 0.0
    %279 = vmatprep.subr.mxu0 0.0
    %280 = vmatpush1.msra.mxu0 0.0
    %281 = vmatprep.subr.mxu0 0.0
    %282 = vmatpush1.msra.mxu0 0.0
    %283 = vmatprep.subr.mxu0 0.0
    %284 = vmatpush1.msra.mxu0 0.0
    %285 = vmatprep.subr.mxu0 0.0
    %286 = vmatpush1.msra.mxu0 0.0
    %287 = vmatprep.subr.mxu0 0.0
    %288 = vmatpush1.msra.mxu0 0.0
    %289 = vmatprep.subr.mxu0 0.0
    %290 = vmatpush1.msra.mxu0 0.0
    %291 = vmatprep.subr.mxu0 0.0
    %292 = vmatpush1.msra.mxu0 0.0
    %293 = vmatprep.subr.mxu0 0.0
    %294 = vmatpush1.msra.mxu0 0.0
    %295 = vmatprep.subr.mxu0 0.0
    %296 = vmatpush1.msra.mxu0 0.0
    %297 = vmatprep.subr.mxu0 0.0
    %298 = vmatpush1.msra.mxu0 0.0
    %299 = vmatprep.subr.mxu0 0.0
    %300 = vmatpush1.msra.mxu0 0.0
    %301 = vmatprep.subr.mxu0 0.0
    %302 = vmatpush1.msra.mxu0 0.0
    %303 = vmatprep.subr.mxu0 0.0
    %304 = vmatpush1.msra.mxu0 0.0
    %305 = vmatprep.subr.mxu0 0.0
    %306 = vmatpush1.msra.mxu0 0.0
    %307 = vmatprep.subr.mxu0 0.0
    %308 = vmatpush1.msra.mxu0 0.0
    %309 = vmatprep.subr.mxu0 0.0
    %310 = vmatpush1.msra.mxu0 0.0
    %311 = vmatprep.subr.mxu0 0.0
    %312 = vmatpush1.msra.mxu0 0.0
    %313 = vmatprep.subr.mxu0 0.0
    %314 = vmatpush1.msra.mxu0 0.0
    %315 = vmatprep.subr.mxu0 0.0
    %316 = vmatpush1.msra.mxu0 0.0
    %317 = vmatprep.subr.mxu0 0.0
    %318 = vmatpush1.msra.mxu0 0.0
    %319 = vmatprep.subr.mxu0 0.0
    %320 = vmatpush1.msra.mxu0 0.0
    %321 = vmatprep.mubr.f32.mxu0 0.0
    %v322 = vand.u32 %v78, 4294901760
    %v323 = vsub.f32 %v78, %v322
    %324 = vmatmul.mubr.f32.gmra.mrb[0].mxu0 %v323
    %v325 = vpop.f32.mrb[0].mxu0
    %v326 = vadd.f32 %v246, %v325
    %v327 = vpop.f32.mrb[0].mxu0
    %328 = vmatprep.mubr.f32.mxu0 0.0
    %v329 = vand.u32 %v81, 4294901760
    %v330 = vsub.f32 %v81, %v329
    %331 = vmatmul.mubr.f32.gmra.mrb[0].mxu0 %v330
    %v332 = vpop.f32.mrb[0].mxu0
    %v333 = vadd.f32 %v252, %v332
    %v334 = vpop.f32.mrb[0].mxu0
    %335 = vdwg.mxu0
    %336 = vmatprep.subr.mxu0 0.0
    %v337 = vand.u32 %v85, 4294901760
    %338 = vmatpush1.msra.mxu0 %v337
    %339 = vmatprep.subr.mxu0 0.0
    %340 = vmatpush1.msra.mxu0 0.0
    %341 = vmatprep.subr.mxu0 0.0
    %342 = vmatpush1.msra.mxu0 0.0
    %343 = vmatprep.subr.mxu0 0.0
    %344 = vmatpush1.msra.mxu0 0.0
    %345 = vmatprep.subr.mxu0 0.0
    %346 = vmatpush1.msra.mxu0 0.0
    %347 = vmatprep.subr.mxu0 0.0
    %348 = vmatpush1.msra.mxu0 0.0
    %349 = vmatprep.subr.mxu0 0.0
    %350 = vmatpush1.msra.mxu0 0.0
    %351 = vmatprep.subr.mxu0 0.0
    %352 = vmatpush1.msra.mxu0 0.0
    %353 = vmatprep.subr.mxu0 0.0
    %354 = vmatpush1.msra.mxu0 0.0
    %355 = vmatprep.subr.mxu0 0.0
    %356 = vmatpush1.msra.mxu0 0.0
    %357 = vmatprep.subr.mxu0 0.0
    %358 = vmatpush1.msra.mxu0 0.0
    %359 = vmatprep.subr.mxu0 0.0
    %360 = vmatpush1.msra.mxu0 0.0
    %361 = vmatprep.subr.mxu0 0.0
    %362 = vmatpush1.msra.mxu0 0.0
    %363 = vmatprep.subr.mxu0 0.0
    %364 = vmatpush1.msra.mxu0 0.0
    %365 = vmatprep.subr.mxu0 0.0
    %366 = vmatpush1.msra.mxu0 0.0
    %367 = vmatprep.subr.mxu0 0.0
    %368 = vmatpush1.msra.mxu0 0.0
    %369 = vmatprep.subr.mxu0 0.0
    %370 = vmatpush1.msra.mxu0 0.0
    %371 = vmatprep.subr.mxu0 0.0
    %372 = vmatpush1.msra.mxu0 0.0
    %373 = vmatprep.subr.mxu0 0.0
    %374 = vmatpush1.msra.mxu0 0.0
    %375 = vmatprep.subr.mxu0 0.0
    %376 = vmatpush1.msra.mxu0 0.0
    %377 = vmatprep.subr.mxu0 0.0
    %378 = vmatpush1.msra.mxu0 0.0
    %379 = vmatprep.subr.mxu0 0.0
    %380 = vmatpush1.msra.mxu0 0.0
    %381 = vmatprep.subr.mxu0 0.0
    %382 = vmatpush1.msra.mxu0 0.0
    %383 = vmatprep.subr.mxu0 0.0
    %384 = vmatpush1.msra.mxu0 0.0
    %385 = vmatprep.subr.mxu0 0.0
    %386 = vmatpush1.msra.mxu0 0.0
    %387 = vmatprep.subr.mxu0 0.0
    %388 = vmatpush1.msra.mxu0 0.0
    %389 = vmatprep.subr.mxu0 0.0
    %390 = vmatpush1.msra.mxu0 0.0
    %391 = vmatprep.subr.mxu0 0.0
    %392 = vmatpush1.msra.mxu0 0.0
    %393 = vmatprep.subr.mxu0 0.0
    %394 = vmatpush1.msra.mxu0 0.0
    %395 = vmatprep.subr.mxu0 0.0
    %396 = vmatpush1.msra.mxu0 0.0
    %397 = vmatprep.subr.mxu0 0.0
    %398 = vmatpush1.msra.mxu0 0.0
    %399 = vmatprep.subr.mxu0 0.0
    %400 = vmatpush1.msra.mxu0 0.0
    %401 = vmatprep.mubr.f32.mxu0 0.0
    %v402 = vand.u32 %v78, 4294901760
    %v403 = vsub.f32 %v78, %v402
    %v404 = vand.u32 %v403, 4294901760
    %405 = vmatmul.mubr.f32.gmra.mrb[0].mxu0 %v404
    %v406 = vpop.f32.mrb[0].mxu0
    %v407 = vadd.f32 %v326, %v406
    %v408 = vpop.f32.mrb[0].mxu0
    %409 = vmatprep.mubr.f32.mxu0 0.0
    %v410 = vand.u32 %v81, 4294901760
    %v411 = vsub.f32 %v81, %v410
    %v412 = vand.u32 %v411, 4294901760
    %413 = vmatmul.mubr.f32.gmra.mrb[0].mxu0 %v412
    %v414 = vpop.f32.mrb[0].mxu0
    %v415 = vadd.f32 %v333, %v414
    %v416 = vpop.f32.mrb[0].mxu0
    %417 = vdwg.mxu0
    %418 = vmatprep.subr.mxu0 0.0
    %v419 = vand.u32 %v85, 4294901760
    %v420 = vsub.f32 %v85, %v419
    %v421 = vand.u32 %v420, 4294901760
    %422 = vmatpush1.msra.mxu0 %v421
    %423 = vmatprep.subr.mxu0 0.0
    %424 = vmatpush1.msra.mxu0 0.0
    %425 = vmatprep.subr.mxu0 0.0
    %426 = vmatpush1.msra.mxu0 0.0
    %427 = vmatprep.subr.mxu0 0.0
    %428 = vmatpush1.msra.mxu0 0.0
    %429 = vmatprep.subr.mxu0 0.0
    %430 = vmatpush1.msra.mxu0 0.0
    %431 = vmatprep.subr.mxu0 0.0
    %432 = vmatpush1.msra.mxu0 0.0
    %433 = vmatprep.subr.mxu0 0.0
    %434 = vmatpush1.msra.mxu0 0.0
    %435 = vmatprep.subr.mxu0 0.0
    %436 = vmatpush1.msra.mxu0 0.0
    %437 = vmatprep.subr.mxu0 0.0
    %438 = vmatpush1.msra.mxu0 0.0
    %439 = vmatprep.subr.mxu0 0.0
    %440 = vmatpush1.msra.mxu0 0.0
    %441 = vmatprep.subr.mxu0 0.0
    %442 = vmatpush1.msra.mxu0 0.0
    %443 = vmatprep.subr.mxu0 0.0
    %444 = vmatpush1.msra.mxu0 0.0
    %445 = vmatprep.subr.mxu0 0.0
    %446 = vmatpush1.msra.mxu0 0.0
    %447 = vmatprep.subr.mxu0 0.0
    %448 = vmatpush1.msra.mxu0 0.0
    %449 = vmatprep.subr.mxu0 0.0
    %450 = vmatpush1.msra.mxu0 0.0
    %451 = vmatprep.subr.mxu0 0.0
    %452 = vmatpush1.msra.mxu0 0.0
    %453 = vmatprep.subr.mxu0 0.0
    %454 = vmatpush1.msra.mxu0 0.0
    %455 = vmatprep.subr.mxu0 0.0
    %456 = vmatpush1.msra.mxu0 0.0
    %457 = vmatprep.subr.mxu0 0.0
    %458 = vmatpush1.msra.mxu0 0.0
    %459 = vmatprep.subr.mxu0 0.0
    %460 = vmatpush1.msra.mxu0 0.0
    %461 = vmatprep.subr.mxu0 0.0
    %462 = vmatpush1.msra.mxu0 0.0
    %463 = vmatprep.subr.mxu0 0.0
    %464 = vmatpush1.msra.mxu0 0.0
    %465 = vmatprep.subr.mxu0 0.0
    %466 = vmatpush1.msra.mxu0 0.0
    %467 = vmatprep.subr.mxu0 0.0
    %468 = vmatpush1.msra.mxu0 0.0
    %469 = vmatprep.subr.mxu0 0.0
    %470 = vmatpush1.msra.mxu0 0.0
    %471 = vmatprep.subr.mxu0 0.0
    %472 = vmatpush1.msra.mxu0 0.0
    %473 = vmatprep.subr.mxu0 0.0
    %474 = vmatpush1.msra.mxu0 0.0
    %475 = vmatprep.subr.mxu0 0.0
    %476 = vmatpush1.msra.mxu0 0.0
    %477 = vmatprep.subr.mxu0 0.0
    %478 = vmatpush1.msra.mxu0 0.0
    %479 = vmatprep.subr.mxu0 0.0
    %480 = vmatpush1.msra.mxu0 0.0
    %481 = vmatprep.subr.mxu0 0.0
    %482 = vmatpush1.msra.mxu0 0.0
    %483 = vmatprep.subr.mxu0 0.0
    %484 = vmatpush1.msra.mxu0 0.0
    %485 = vmatprep.mubr.f32.mxu0 0.0
    %v486 = vand.u32 %v78, 4294901760
    %487 = vmatmul.mubr.f32.gmra.mrb[0].mxu0 %v486
    %v488 = vpop.f32.mrb[0].mxu0
    %v489 = vadd.f32 %v407, %v488
    %v490 = vpop.f32.mrb[0].mxu0
    %491 = vmatprep.mubr.f32.mxu0 0.0
    %v492 = vand.u32 %v81, 4294901760
    %493 = vmatmul.mubr.f32.gmra.mrb[0].mxu0 %v492
    %v494 = vpop.f32.mrb[0].mxu0
    %v495 = vadd.f32 %v415, %v494
    %v496 = vpop.f32.mrb[0].mxu0
    %497 = vdwg.mxu0
    %498 = vmatprep.subr.mxu0 0.0
    %v499 = vand.u32 %v85, 4294901760
    %500 = vmatpush1.msra.mxu0 %v499
    %501 = vmatprep.subr.mxu0 0.0
    %502 = vmatpush1.msra.mxu0 0.0
    %503 = vmatprep.subr.mxu0 0.0
    %504 = vmatpush1.msra.mxu0 0.0
    %505 = vmatprep.subr.mxu0 0.0
    %506 = vmatpush1.msra.mxu0 0.0
    %507 = vmatprep.subr.mxu0 0.0
    %508 = vmatpush1.msra.mxu0 0.0
    %509 = vmatprep.subr.mxu0 0.0
    %510 = vmatpush1.msra.mxu0 0.0
    %511 = vmatprep.subr.mxu0 0.0
    %512 = vmatpush1.msra.mxu0 0.0
    %513 = vmatprep.subr.mxu0 0.0
    %514 = vmatpush1.msra.mxu0 0.0
    %515 = vmatprep.subr.mxu0 0.0
    %516 = vmatpush1.msra.mxu0 0.0
    %517 = vmatprep.subr.mxu0 0.0
    %518 = vmatpush1.msra.mxu0 0.0
    %519 = vmatprep.subr.mxu0 0.0
    %520 = vmatpush1.msra.mxu0 0.0
    %521 = vmatprep.subr.mxu0 0.0
    %522 = vmatpush1.msra.mxu0 0.0
    %523 = vmatprep.subr.mxu0 0.0
    %524 = vmatpush1.msra.mxu0 0.0
    %525 = vmatprep.subr.mxu0 0.0
    %526 = vmatpush1.msra.mxu0 0.0
    %527 = vmatprep.subr.mxu0 0.0
    %528 = vmatpush1.msra.mxu0 0.0
    %529 = vmatprep.subr.mxu0 0.0
    %530 = vmatpush1.msra.mxu0 0.0
    %531 = vmatprep.subr.mxu0 0.0
    %532 = vmatpush1.msra.mxu0 0.0
    %533 = vmatprep.subr.mxu0 0.0
    %534 = vmatpush1.msra.mxu0 0.0
    %535 = vmatprep.subr.mxu0 0.0
    %536 = vmatpush1.msra.mxu0 0.0
    %537 = vmatprep.subr.mxu0 0.0
    %538 = vmatpush1.msra.mxu0 0.0
    %539 = vmatprep.subr.mxu0 0.0
    %540 = vmatpush1.msra.mxu0 0.0
    %541 = vmatprep.subr.mxu0 0.0
    %542 = vmatpush1.msra.mxu0 0.0
    %543 = vmatprep.subr.mxu0 0.0
    %544 = vmatpush1.msra.mxu0 0.0
    %545 = vmatprep.subr.mxu0 0.0
    %546 = vmatpush1.msra.mxu0 0.0
    %547 = vmatprep.subr.mxu0 0.0
    %548 = vmatpush1.msra.mxu0 0.0
    %549 = vmatprep.subr.mxu0 0.0
    %550 = vmatpush1.msra.mxu0 0.0
    %551 = vmatprep.subr.mxu0 0.0
    %552 = vmatpush1.msra.mxu0 0.0
    %553 = vmatprep.subr.mxu0 0.0
    %554 = vmatpush1.msra.mxu0 0.0
    %555 = vmatprep.subr.mxu0 0.0
    %556 = vmatpush1.msra.mxu0 0.0
    %557 = vmatprep.subr.mxu0 0.0
    %558 = vmatpush1.msra.mxu0 0.0
    %559 = vmatprep.subr.mxu0 0.0
    %560 = vmatpush1.msra.mxu0 0.0
    %561 = vmatprep.subr.mxu0 0.0
    %562 = vmatpush1.msra.mxu0 0.0
    %563 = vmatprep.mubr.f32.mxu0 0.0
    %v564 = vand.u32 %v78, 4294901760
    %565 = vmatmul.mubr.f32.gmra.mrb[0].mxu0 %v564
    %v566 = vpop.f32.mrb[0].mxu0
    %v567 = vadd.f32 %v489, %v566
    %v568 = vpop.f32.mrb[0].mxu0
    %569 = vmatprep.mubr.f32.mxu0 0.0
    %v570 = vand.u32 %v81, 4294901760
    %571 = vmatmul.mubr.f32.gmra.mrb[0].mxu0 %v570
    %v572 = vpop.f32.mrb[0].mxu0
    %v573 = vadd.f32 %v495, %v572
    %v574 = vpop.f32.mrb[0].mxu0
    %575 = vdwg.mxu0
    %vm576 = vcmask 97280
    %v578 = vsel %vm576, %v69, 0
    %v581 = vsel %vm576, %v70, 0
    %v584 = vsel %vm83, %v74, 0
    %586 = vmatprep.subr.mxu0 0.0
    %v587 = vand.u32 %v73, 4294901760
    %588 = vmatpush1.msra.mxu0 %v587
    %589 = vmatprep.subr.mxu0 0.0
    %v590 = vand.u32 %v584, 4294901760
    %591 = vmatpush1.msra.mxu0 %v590
    %592 = vmatprep.subr.mxu0 0.0
    %593 = vmatpush1.msra.mxu0 0.0
    %594 = vmatprep.subr.mxu0 0.0
    %595 = vmatpush1.msra.mxu0 0.0
    %596 = vmatprep.subr.mxu0 0.0
    %597 = vmatpush1.msra.mxu0 0.0
    %598 = vmatprep.subr.mxu0 0.0
    %599 = vmatpush1.msra.mxu0 0.0
    %600 = vmatprep.subr.mxu0 0.0
    %601 = vmatpush1.msra.mxu0 0.0
    %602 = vmatprep.subr.mxu0 0.0
    %603 = vmatpush1.msra.mxu0 0.0
    %604 = vmatprep.subr.mxu0 0.0
    %605 = vmatpush1.msra.mxu0 0.0
    %606 = vmatprep.subr.mxu0 0.0
    %607 = vmatpush1.msra.mxu0 0.0
    %608 = vmatprep.subr.mxu0 0.0
    %609 = vmatpush1.msra.mxu0 0.0
    %610 = vmatprep.subr.mxu0 0.0
    %611 = vmatpush1.msra.mxu0 0.0
    %612 = vmatprep.subr.mxu0 0.0
    %613 = vmatpush1.msra.mxu0 0.0
    %614 = vmatprep.subr.mxu0 0.0
    %615 = vmatpush1.msra.mxu0 0.0
    %616 = vmatprep.subr.mxu0 0.0
    %617 = vmatpush1.msra.mxu0 0.0
    %618 = vmatprep.subr.mxu0 0.0
    %619 = vmatpush1.msra.mxu0 0.0
    %620 = vmatprep.subr.mxu0 0.0
    %621 = vmatpush1.msra.mxu0 0.0
    %622 = vmatprep.subr.mxu0 0.0
    %623 = vmatpush1.msra.mxu0 0.0
    %624 = vmatprep.subr.mxu0 0.0
    %625 = vmatpush1.msra.mxu0 0.0
    %626 = vmatprep.subr.mxu0 0.0
    %627 = vmatpush1.msra.mxu0 0.0
    %628 = vmatprep.subr.mxu0 0.0
    %629 = vmatpush1.msra.mxu0 0.0
    %630 = vmatprep.subr.mxu0 0.0
    %631 = vmatpush1.msra.mxu0 0.0
    %632 = vmatprep.subr.mxu0 0.0
    %633 = vmatpush1.msra.mxu0 0.0
    %634 = vmatprep.subr.mxu0 0.0
    %635 = vmatpush1.msra.mxu0 0.0
    %636 = vmatprep.subr.mxu0 0.0
    %637 = vmatpush1.msra.mxu0 0.0
    %638 = vmatprep.subr.mxu0 0.0
    %639 = vmatpush1.msra.mxu0 0.0
    %640 = vmatprep.subr.mxu0 0.0
    %641 = vmatpush1.msra.mxu0 0.0
    %642 = vmatprep.subr.mxu0 0.0
    %643 = vmatpush1.msra.mxu0 0.0
    %644 = vmatprep.subr.mxu0 0.0
    %645 = vmatpush1.msra.mxu0 0.0
    %646 = vmatprep.subr.mxu0 0.0
    %647 = vmatpush1.msra.mxu0 0.0
    %648 = vmatprep.subr.mxu0 0.0
    %649 = vmatpush1.msra.mxu0 0.0
    %650 = vmatprep.subr.mxu0 0.0
    %651 = vmatpush1.msra.mxu0 0.0
    %652 = vmatprep.mubr.f32.mxu0 0.0
    %v653 = vand.u32 %v578, 4294901760
    %v654 = vsub.f32 %v578, %v653
    %v655 = vand.u32 %v654, 4294901760
    %v656 = vsub.f32 %v654, %v655
    %v657 = vand.u32 %v656, 4294901760
    %658 = vmatmul.mubr.f32.gmra.mrb[0].mxu0 %v657
    %v659 = vpop.f32.mrb[0].mxu0
    %v660 = vadd.f32 %v567, %v659
    %v661 = vpop.f32.mrb[0].mxu0
    %662 = vmatprep.mubr.f32.mxu0 0.0
    %v663 = vand.u32 %v581, 4294901760
    %v664 = vsub.f32 %v581, %v663
    %v665 = vand.u32 %v664, 4294901760
    %v666 = vsub.f32 %v664, %v665
    %v667 = vand.u32 %v666, 4294901760
    %668 = vmatmul.mubr.f32.gmra.mrb[0].mxu0 %v667
    %v669 = vpop.f32.mrb[0].mxu0
    %v670 = vadd.f32 %v573, %v669
    %v671 = vpop.f32.mrb[0].mxu0
    %672 = vdwg.mxu0
    %673 = vmatprep.subr.mxu0 0.0
    %v674 = vand.u32 %v73, 4294901760
    %v675 = vsub.f32 %v73, %v674
    %v676 = vand.u32 %v675, 4294901760
    %v677 = vsub.f32 %v675, %v676
    %v678 = vand.u32 %v677, 4294901760
    %679 = vmatpush1.msra.mxu0 %v678
    %680 = vmatprep.subr.mxu0 0.0
    %v681 = vand.u32 %v584, 4294901760
    %v682 = vsub.f32 %v584, %v681
    %v683 = vand.u32 %v682, 4294901760
    %v684 = vsub.f32 %v682, %v683
    %v685 = vand.u32 %v684, 4294901760
    %686 = vmatpush1.msra.mxu0 %v685
    %687 = vmatprep.subr.mxu0 0.0
    %688 = vmatpush1.msra.mxu0 0.0
    %689 = vmatprep.subr.mxu0 0.0
    %690 = vmatpush1.msra.mxu0 0.0
    %691 = vmatprep.subr.mxu0 0.0
    %692 = vmatpush1.msra.mxu0 0.0
    %693 = vmatprep.subr.mxu0 0.0
    %694 = vmatpush1.msra.mxu0 0.0
    %695 = vmatprep.subr.mxu0 0.0
    %696 = vmatpush1.msra.mxu0 0.0
    %697 = vmatprep.subr.mxu0 0.0
    %698 = vmatpush1.msra.mxu0 0.0
    %699 = vmatprep.subr.mxu0 0.0
    %700 = vmatpush1.msra.mxu0 0.0
    %701 = vmatprep.subr.mxu0 0.0
    %702 = vmatpush1.msra.mxu0 0.0
    %703 = vmatprep.subr.mxu0 0.0
    %704 = vmatpush1.msra.mxu0 0.0
    %705 = vmatprep.subr.mxu0 0.0
    %706 = vmatpush1.msra.mxu0 0.0
    %707 = vmatprep.subr.mxu0 0.0
    %708 = vmatpush1.msra.mxu0 0.0
    %709 = vmatprep.subr.mxu0 0.0
    %710 = vmatpush1.msra.mxu0 0.0
    %711 = vmatprep.subr.mxu0 0.0
    %712 = vmatpush1.msra.mxu0 0.0
    %713 = vmatprep.subr.mxu0 0.0
    %714 = vmatpush1.msra.mxu0 0.0
    %715 = vmatprep.subr.mxu0 0.0
    %716 = vmatpush1.msra.mxu0 0.0
    %717 = vmatprep.subr.mxu0 0.0
    %718 = vmatpush1.msra.mxu0 0.0
    %719 = vmatprep.subr.mxu0 0.0
    %720 = vmatpush1.msra.mxu0 0.0
    %721 = vmatprep.subr.mxu0 0.0
    %722 = vmatpush1.msra.mxu0 0.0
    %723 = vmatprep.subr.mxu0 0.0
    %724 = vmatpush1.msra.mxu0 0.0
    %725 = vmatprep.subr.mxu0 0.0
    %726 = vmatpush1.msra.mxu0 0.0
    %727 = vmatprep.subr.mxu0 0.0
    %728 = vmatpush1.msra.mxu0 0.0
    %729 = vmatprep.subr.mxu0 0.0
    %730 = vmatpush1.msra.mxu0 0.0
    %731 = vmatprep.subr.mxu0 0.0
    %732 = vmatpush1.msra.mxu0 0.0
    %733 = vmatprep.subr.mxu0 0.0
    %734 = vmatpush1.msra.mxu0 0.0
    %735 = vmatprep.subr.mxu0 0.0
    %736 = vmatpush1.msra.mxu0 0.0
    %737 = vmatprep.subr.mxu0 0.0
    %738 = vmatpush1.msra.mxu0 0.0
    %739 = vmatprep.subr.mxu0 0.0
    %740 = vmatpush1.msra.mxu0 0.0
    %741 = vmatprep.subr.mxu0 0.0
    %742 = vmatpush1.msra.mxu0 0.0
    %743 = vmatprep.subr.mxu0 0.0
    %744 = vmatpush1.msra.mxu0 0.0
    %745 = vmatprep.subr.mxu0 0.0
    %746 = vmatpush1.msra.mxu0 0.0
    %747 = vmatprep.mubr.f32.mxu0 0.0
    %v748 = vand.u32 %v578, 4294901760
    %749 = vmatmul.mubr.f32.gmra.mrb[0].mxu0 %v748
    %v750 = vpop.f32.mrb[0].mxu0
    %v751 = vadd.f32 %v660, %v750
    %v752 = vpop.f32.mrb[0].mxu0
    %753 = vmatprep.mubr.f32.mxu0 0.0
    %v754 = vand.u32 %v581, 4294901760
    %755 = vmatmul.mubr.f32.gmra.mrb[0].mxu0 %v754
    %v756 = vpop.f32.mrb[0].mxu0
    %v757 = vadd.f32 %v670, %v756
    %v758 = vpop.f32.mrb[0].mxu0
    %759 = vdwg.mxu0
    %760 = vmatprep.subr.mxu0 0.0
    %v761 = vand.u32 %v73, 4294901760
    %v762 = vsub.f32 %v73, %v761
    %763 = vmatpush1.msra.mxu0 %v762
    %764 = vmatprep.subr.mxu0 0.0
    %v765 = vand.u32 %v584, 4294901760
    %v766 = vsub.f32 %v584, %v765
    %767 = vmatpush1.msra.mxu0 %v766
    %768 = vmatprep.subr.mxu0 0.0
    %769 = vmatpush1.msra.mxu0 0.0
    %770 = vmatprep.subr.mxu0 0.0
    %771 = vmatpush1.msra.mxu0 0.0
    %772 = vmatprep.subr.mxu0 0.0
    %773 = vmatpush1.msra.mxu0 0.0
    %774 = vmatprep.subr.mxu0 0.0
    %775 = vmatpush1.msra.mxu0 0.0
    %776 = vmatprep.subr.mxu0 0.0
    %777 = vmatpush1.msra.mxu0 0.0
    %778 = vmatprep.subr.mxu0 0.0
    %779 = vmatpush1.msra.mxu0 0.0
    %780 = vmatprep.subr.mxu0 0.0
    %781 = vmatpush1.msra.mxu0 0.0
    %782 = vmatprep.subr.mxu0 0.0
    %783 = vmatpush1.msra.mxu0 0.0
    %784 = vmatprep.subr.mxu0 0.0
    %785 = vmatpush1.msra.mxu0 0.0
    %786 = vmatprep.subr.mxu0 0.0
    %787 = vmatpush1.msra.mxu0 0.0
    %788 = vmatprep.subr.mxu0 0.0
    %789 = vmatpush1.msra.mxu0 0.0
    %790 = vmatprep.subr.mxu0 0.0
    %791 = vmatpush1.msra.mxu0 0.0
    %792 = vmatprep.subr.mxu0 0.0
    %793 = vmatpush1.msra.mxu0 0.0
    %794 = vmatprep.subr.mxu0 0.0
    %795 = vmatpush1.msra.mxu0 0.0
    %796 = vmatprep.subr.mxu0 0.0
    %797 = vmatpush1.msra.mxu0 0.0
    %798 = vmatprep.subr.mxu0 0.0
    %799 = vmatpush1.msra.mxu0 0.0
    %800 = vmatprep.subr.mxu0 0.0
    %801 = vmatpush1.msra.mxu0 0.0
    %802 = vmatprep.subr.mxu0 0.0
    %803 = vmatpush1.msra.mxu0 0.0
    %804 = vmatprep.subr.mxu0 0.0
    %805 = vmatpush1.msra.mxu0 0.0
    %806 = vmatprep.subr.mxu0 0.0
    %807 = vmatpush1.msra.mxu0 0.0
    %808 = vmatprep.subr.mxu0 0.0
    %809 = vmatpush1.msra.mxu0 0.0
    %810 = vmatprep.subr.mxu0 0.0
    %811 = vmatpush1.msra.mxu0 0.0
    %812 = vmatprep.subr.mxu0 0.0
    %813 = vmatpush1.msra.mxu0 0.0
    %814 = vmatprep.subr.mxu0 0.0
    %815 = vmatpush1.msra.mxu0 0.0
    %816 = vmatprep.subr.mxu0 0.0
    %817 = vmatpush1.msra.mxu0 0.0
    %818 = vmatprep.subr.mxu0 0.0
    %819 = vmatpush1.msra.mxu0 0.0
    %820 = vmatprep.subr.mxu0 0.0
    %821 = vmatpush1.msra.mxu0 0.0
    %822 = vmatprep.subr.mxu0 0.0
    %823 = vmatpush1.msra.mxu0 0.0
    %824 = vmatprep.subr.mxu0 0.0
    %825 = vmatpush1.msra.mxu0 0.0
    %826 = vmatprep.subr.mxu0 0.0
    %827 = vmatpush1.msra.mxu0 0.0
    %828 = vmatprep.mubr.f32.mxu0 0.0
    %v829 = vand.u32 %v578, 4294901760
    %v830 = vsub.f32 %v578, %v829
    %831 = vmatmul.mubr.f32.gmra.mrb[0].mxu0 %v830
    %v832 = vpop.f32.mrb[0].mxu0
    %v833 = vadd.f32 %v751, %v832
    %v834 = vpop.f32.mrb[0].mxu0
    %835 = vmatprep.mubr.f32.mxu0 0.0
    %v836 = vand.u32 %v581, 4294901760
    %v837 = vsub.f32 %v581, %v836
    %838 = vmatmul.mubr.f32.gmra.mrb[0].mxu0 %v837
    %v839 = vpop.f32.mrb[0].mxu0
    %v840 = vadd.f32 %v757, %v839
    %v841 = vpop.f32.mrb[0].mxu0
    %842 = vdwg.mxu0
    %843 = vmatprep.subr.mxu0 0.0
    %v844 = vand.u32 %v73, 4294901760
    %845 = vmatpush1.msra.mxu0 %v844
    %846 = vmatprep.subr.mxu0 0.0
    %v847 = vand.u32 %v584, 4294901760
    %848 = vmatpush1.msra.mxu0 %v847
    %849 = vmatprep.subr.mxu0 0.0
    %850 = vmatpush1.msra.mxu0 0.0
    %851 = vmatprep.subr.mxu0 0.0
    %852 = vmatpush1.msra.mxu0 0.0
    %853 = vmatprep.subr.mxu0 0.0
    %854 = vmatpush1.msra.mxu0 0.0
    %855 = vmatprep.subr.mxu0 0.0
    %856 = vmatpush1.msra.mxu0 0.0
    %857 = vmatprep.subr.mxu0 0.0
    %858 = vmatpush1.msra.mxu0 0.0
    %859 = vmatprep.subr.mxu0 0.0
    %860 = vmatpush1.msra.mxu0 0.0
    %861 = vmatprep.subr.mxu0 0.0
    %862 = vmatpush1.msra.mxu0 0.0
    %863 = vmatprep.subr.mxu0 0.0
    %864 = vmatpush1.msra.mxu0 0.0
    %865 = vmatprep.subr.mxu0 0.0
    %866 = vmatpush1.msra.mxu0 0.0
    %867 = vmatprep.subr.mxu0 0.0
    %868 = vmatpush1.msra.mxu0 0.0
    %869 = vmatprep.subr.mxu0 0.0
    %870 = vmatpush1.msra.mxu0 0.0
    %871 = vmatprep.subr.mxu0 0.0
    %872 = vmatpush1.msra.mxu0 0.0
    %873 = vmatprep.subr.mxu0 0.0
    %874 = vmatpush1.msra.mxu0 0.0
    %875 = vmatprep.subr.mxu0 0.0
    %876 = vmatpush1.msra.mxu0 0.0
    %877 = vmatprep.subr.mxu0 0.0
    %878 = vmatpush1.msra.mxu0 0.0
    %879 = vmatprep.subr.mxu0 0.0
    %880 = vmatpush1.msra.mxu0 0.0
    %881 = vmatprep.subr.mxu0 0.0
    %882 = vmatpush1.msra.mxu0 0.0
    %883 = vmatprep.subr.mxu0 0.0
    %884 = vmatpush1.msra.mxu0 0.0
    %885 = vmatprep.subr.mxu0 0.0
    %886 = vmatpush1.msra.mxu0 0.0
    %887 = vmatprep.subr.mxu0 0.0
    %888 = vmatpush1.msra.mxu0 0.0
    %889 = vmatprep.subr.mxu0 0.0
    %890 = vmatpush1.msra.mxu0 0.0
    %891 = vmatprep.subr.mxu0 0.0
    %892 = vmatpush1.msra.mxu0 0.0
    %893 = vmatprep.subr.mxu0 0.0
    %894 = vmatpush1.msra.mxu0 0.0
    %895 = vmatprep.subr.mxu0 0.0
    %896 = vmatpush1.msra.mxu0 0.0
    %897 = vmatprep.subr.mxu0 0.0
    %898 = vmatpush1.msra.mxu0 0.0
    %899 = vmatprep.subr.mxu0 0.0
    %900 = vmatpush1.msra.mxu0 0.0
    %901 = vmatprep.subr.mxu0 0.0
    %902 = vmatpush1.msra.mxu0 0.0
    %903 = vmatprep.subr.mxu0 0.0
    %904 = vmatpush1.msra.mxu0 0.0
    %905 = vmatprep.subr.mxu0 0.0
    %906 = vmatpush1.msra.mxu0 0.0
    %907 = vmatprep.subr.mxu0 0.0
    %908 = vmatpush1.msra.mxu0 0.0
    %909 = vmatprep.mubr.f32.mxu0 0.0
    %v910 = vand.u32 %v578, 4294901760
    %v911 = vsub.f32 %v578, %v910
    %v912 = vand.u32 %v911, 4294901760
    %913 = vmatmul.mubr.f32.gmra.mrb[0].mxu0 %v912
    %v914 = vpop.f32.mrb[0].mxu0
    %v915 = vadd.f32 %v833, %v914
    %v916 = vpop.f32.mrb[0].mxu0
    %917 = vmatprep.mubr.f32.mxu0 0.0
    %v918 = vand.u32 %v581, 4294901760
    %v919 = vsub.f32 %v581, %v918
    %v920 = vand.u32 %v919, 4294901760
    %921 = vmatmul.mubr.f32.gmra.mrb[0].mxu0 %v920
    %v922 = vpop.f32.mrb[0].mxu0
    %v923 = vadd.f32 %v840, %v922
    %v924 = vpop.f32.mrb[0].mxu0
    %925 = vdwg.mxu0
    %926 = vmatprep.subr.mxu0 0.0
    %v927 = vand.u32 %v73, 4294901760
    %v928 = vsub.f32 %v73, %v927
    %v929 = vand.u32 %v928, 4294901760
    %930 = vmatpush1.msra.mxu0 %v929
    %931 = vmatprep.subr.mxu0 0.0
    %v932 = vand.u32 %v584, 4294901760
    %v933 = vsub.f32 %v584, %v932
    %v934 = vand.u32 %v933, 4294901760
    %935 = vmatpush1.msra.mxu0 %v934
    %936 = vmatprep.subr.mxu0 0.0
    %937 = vmatpush1.msra.mxu0 0.0
    %938 = vmatprep.subr.mxu0 0.0
    %939 = vmatpush1.msra.mxu0 0.0
    %940 = vmatprep.subr.mxu0 0.0
    %941 = vmatpush1.msra.mxu0 0.0
    %942 = vmatprep.subr.mxu0 0.0
    %943 = vmatpush1.msra.mxu0 0.0
    %944 = vmatprep.subr.mxu0 0.0
    %945 = vmatpush1.msra.mxu0 0.0
    %946 = vmatprep.subr.mxu0 0.0
    %947 = vmatpush1.msra.mxu0 0.0
    %948 = vmatprep.subr.mxu0 0.0
    %949 = vmatpush1.msra.mxu0 0.0
    %950 = vmatprep.subr.mxu0 0.0
    %951 = vmatpush1.msra.mxu0 0.0
    %952 = vmatprep.subr.mxu0 0.0
    %953 = vmatpush1.msra.mxu0 0.0
    %954 = vmatprep.subr.mxu0 0.0
    %955 = vmatpush1.msra.mxu0 0.0
    %956 = vmatprep.subr.mxu0 0.0
    %957 = vmatpush1.msra.mxu0 0.0
    %958 = vmatprep.subr.mxu0 0.0
    %959 = vmatpush1.msra.mxu0 0.0
    %960 = vmatprep.subr.mxu0 0.0
    %961 = vmatpush1.msra.mxu0 0.0
    %962 = vmatprep.subr.mxu0 0.0
    %963 = vmatpush1.msra.mxu0 0.0
    %964 = vmatprep.subr.mxu0 0.0
    %965 = vmatpush1.msra.mxu0 0.0
    %966 = vmatprep.subr.mxu0 0.0
    %967 = vmatpush1.msra.mxu0 0.0
    %968 = vmatprep.subr.mxu0 0.0
    %969 = vmatpush1.msra.mxu0 0.0
    %970 = vmatprep.subr.mxu0 0.0
    %971 = vmatpush1.msra.mxu0 0.0
    %972 = vmatprep.subr.mxu0 0.0
    %973 = vmatpush1.msra.mxu0 0.0
    %974 = vmatprep.subr.mxu0 0.0
    %975 = vmatpush1.msra.mxu0 0.0
    %976 = vmatprep.subr.mxu0 0.0
    %977 = vmatpush1.msra.mxu0 0.0
    %978 = vmatprep.subr.mxu0 0.0
    %979 = vmatpush1.msra.mxu0 0.0
    %980 = vmatprep.subr.mxu0 0.0
    %981 = vmatpush1.msra.mxu0 0.0
    %982 = vmatprep.subr.mxu0 0.0
    %983 = vmatpush1.msra.mxu0 0.0
    %984 = vmatprep.subr.mxu0 0.0
    %985 = vmatpush1.msra.mxu0 0.0
    %986 = vmatprep.subr.mxu0 0.0
    %987 = vmatpush1.msra.mxu0 0.0
    %988 = vmatprep.subr.mxu0 0.0
    %989 = vmatpush1.msra.mxu0 0.0
    %990 = vmatprep.subr.mxu0 0.0
    %991 = vmatpush1.msra.mxu0 0.0
    %992 = vmatprep.subr.mxu0 0.0
    %993 = vmatpush1.msra.mxu0 0.0
    %994 = vmatprep.subr.mxu0 0.0
    %995 = vmatpush1.msra.mxu0 0.0
    %996 = vmatprep.mubr.f32.mxu0 0.0
    %v997 = vand.u32 %v578, 4294901760
    %998 = vmatmul.mubr.f32.gmra.mrb[0].mxu0 %v997
    %v999 = vpop.f32.mrb[0].mxu0
    %v1000 = vadd.f32 %v915, %v999
    %v1001 = vpop.f32.mrb[0].mxu0
    %1002 = vmatprep.mubr.f32.mxu0 0.0
    %v1003 = vand.u32 %v581, 4294901760
    %1004 = vmatmul.mubr.f32.gmra.mrb[0].mxu0 %v1003
    %v1005 = vpop.f32.mrb[0].mxu0
    %v1006 = vadd.f32 %v923, %v1005
    %v1007 = vpop.f32.mrb[0].mxu0
    %1008 = vdwg.mxu0
    %1009 = vmatprep.subr.mxu0 0.0
    %v1010 = vand.u32 %v73, 4294901760
    %1011 = vmatpush1.msra.mxu0 %v1010
    %1012 = vmatprep.subr.mxu0 0.0
    %v1013 = vand.u32 %v584, 4294901760
    %1014 = vmatpush1.msra.mxu0 %v1013
    %1015 = vmatprep.subr.mxu0 0.0
    %1016 = vmatpush1.msra.mxu0 0.0
    %1017 = vmatprep.subr.mxu0 0.0
    %1018 = vmatpush1.msra.mxu0 0.0
    %1019 = vmatprep.subr.mxu0 0.0
    %1020 = vmatpush1.msra.mxu0 0.0
    %1021 = vmatprep.subr.mxu0 0.0
    %1022 = vmatpush1.msra.mxu0 0.0
    %1023 = vmatprep.subr.mxu0 0.0
    %1024 = vmatpush1.msra.mxu0 0.0
    %1025 = vmatprep.subr.mxu0 0.0
    %1026 = vmatpush1.msra.mxu0 0.0
    %1027 = vmatprep.subr.mxu0 0.0
    %1028 = vmatpush1.msra.mxu0 0.0
    %1029 = vmatprep.subr.mxu0 0.0
    %1030 = vmatpush1.msra.mxu0 0.0
    %1031 = vmatprep.subr.mxu0 0.0
    %1032 = vmatpush1.msra.mxu0 0.0
    %1033 = vmatprep.subr.mxu0 0.0
    %1034 = vmatpush1.msra.mxu0 0.0
    %1035 = vmatprep.subr.mxu0 0.0
    %1036 = vmatpush1.msra.mxu0 0.0
    %1037 = vmatprep.subr.mxu0 0.0
    %1038 = vmatpush1.msra.mxu0 0.0
    %1039 = vmatprep.subr.mxu0 0.0
    %1040 = vmatpush1.msra.mxu0 0.0
    %1041 = vmatprep.subr.mxu0 0.0
    %1042 = vmatpush1.msra.mxu0 0.0
    %1043 = vmatprep.subr.mxu0 0.0
    %1044 = vmatpush1.msra.mxu0 0.0
    %1045 = vmatprep.subr.mxu0 0.0
    %1046 = vmatpush1.msra.mxu0 0.0
    %1047 = vmatprep.subr.mxu0 0.0
    %1048 = vmatpush1.msra.mxu0 0.0
    %1049 = vmatprep.subr.mxu0 0.0
    %1050 = vmatpush1.msra.mxu0 0.0
    %1051 = vmatprep.subr.mxu0 0.0
    %1052 = vmatpush1.msra.mxu0 0.0
    %1053 = vmatprep.subr.mxu0 0.0
    %1054 = vmatpush1.msra.mxu0 0.0
    %1055 = vmatprep.subr.mxu0 0.0
    %1056 = vmatpush1.msra.mxu0 0.0
    %1057 = vmatprep.subr.mxu0 0.0
    %1058 = vmatpush1.msra.mxu0 0.0
    %1059 = vmatprep.subr.mxu0 0.0
    %1060 = vmatpush1.msra.mxu0 0.0
    %1061 = vmatprep.subr.mxu0 0.0
    %1062 = vmatpush1.msra.mxu0 0.0
    %1063 = vmatprep.subr.mxu0 0.0
    %1064 = vmatpush1.msra.mxu0 0.0
    %1065 = vmatprep.subr.mxu0 0.0
    %1066 = vmatpush1.msra.mxu0 0.0
    %1067 = vmatprep.subr.mxu0 0.0
    %1068 = vmatpush1.msra.mxu0 0.0
    %1069 = vmatprep.subr.mxu0 0.0
    %1070 = vmatpush1.msra.mxu0 0.0
    %1071 = vmatprep.subr.mxu0 0.0
    %1072 = vmatpush1.msra.mxu0 0.0
    %1073 = vmatprep.subr.mxu0 0.0
    %1074 = vmatpush1.msra.mxu0 0.0
    %1075 = vmatprep.mubr.f32.mxu0 0.0
    %v1076 = vand.u32 %v578, 4294901760
    %1077 = vmatmul.mubr.f32.gmra.mrb[0].mxu0 %v1076
    %v1078 = vpop.f32.mrb[0].mxu0
    %v1079 = vadd.f32 %v1000, %v1078
    %v1080 = vpop.f32.mrb[0].mxu0
    %1081 = vmatprep.mubr.f32.mxu0 0.0
    %v1082 = vand.u32 %v581, 4294901760
    %1083 = vmatmul.mubr.f32.gmra.mrb[0].mxu0 %v1082
    %v1084 = vpop.f32.mrb[0].mxu0
    %v1085 = vadd.f32 %v1006, %v1084
    %v1086 = vpop.f32.mrb[0].mxu0
    %1087 = vdwg.mxu0
    %v1088 = vld [vmem:[%s5] sm:$0x1]
    %v1090 = vlaneseq
    %v1091 = vshrl.u32 %v1090, 7
    %v1092 = vsub.s32 0, %v1091
    %v1093 = vrot.slane %v1088, %v1092
    %v1095 = vadd.f32 %v1079, %v1093
    %v1096 = vadd.f32 %v1085, %v1093
    %v1097 = vld [vmem:[%s4] sm:$0xff]
    %v1098 = vld [vmem:[%s4 + $0x8] sm:$0xff]
    %v1099 = vld [vmem:[%s4 + $0x10] sm:$0xff]
    %v1100 = vld [vmem:[%s4 + $0x18] sm:$0xff]
    %v1101 = vld [vmem:[%s6] sm:$0x1]
    %v1102 = vld [vmem:[%s7] sm:$0x3]
    %v1103 = vld [vmem:[%s8] sm:$0x3]
    %vm1104 = vcmask 261120
    %v1106 = vsel %vm1104, %v1102, 0
    %1108 = vmatprep.subr.mxu0 0.0
    %v1109 = vand.u32 %v1097, 4294901760
    %1110 = vmatpush1.msra.mxu0 %v1109
    %1111 = vmatprep.subr.mxu0 0.0
    %v1112 = vand.u32 %v1098, 4294901760
    %1113 = vmatpush1.msra.mxu0 %v1112
    %1114 = vmatprep.subr.mxu0 0.0
    %v1115 = vand.u32 %v1099, 4294901760
    %1116 = vmatpush1.msra.mxu0 %v1115
    %1117 = vmatprep.subr.mxu0 0.0
    %v1118 = vand.u32 %v1100, 4294901760
    %1119 = vmatpush1.msra.mxu0 %v1118
    %1120 = vmatprep.subr.mxu0 0.0
    %1121 = vmatpush1.msra.mxu0 0.0
    %1122 = vmatprep.subr.mxu0 0.0
    %1123 = vmatpush1.msra.mxu0 0.0
    %1124 = vmatprep.subr.mxu0 0.0
    %1125 = vmatpush1.msra.mxu0 0.0
    %1126 = vmatprep.subr.mxu0 0.0
    %1127 = vmatpush1.msra.mxu0 0.0
    %1128 = vmatprep.subr.mxu0 0.0
    %1129 = vmatpush1.msra.mxu0 0.0
    %1130 = vmatprep.subr.mxu0 0.0
    %1131 = vmatpush1.msra.mxu0 0.0
    %1132 = vmatprep.subr.mxu0 0.0
    %1133 = vmatpush1.msra.mxu0 0.0
    %1134 = vmatprep.subr.mxu0 0.0
    %1135 = vmatpush1.msra.mxu0 0.0
    %1136 = vmatprep.subr.mxu0 0.0
    %1137 = vmatpush1.msra.mxu0 0.0
    %1138 = vmatprep.subr.mxu0 0.0
    %1139 = vmatpush1.msra.mxu0 0.0
    %1140 = vmatprep.subr.mxu0 0.0
    %1141 = vmatpush1.msra.mxu0 0.0
    %1142 = vmatprep.subr.mxu0 0.0
    %1143 = vmatpush1.msra.mxu0 0.0
    %1144 = vmatprep.subr.mxu0 0.0
    %1145 = vmatpush1.msra.mxu0 0.0
    %1146 = vmatprep.subr.mxu0 0.0
    %1147 = vmatpush1.msra.mxu0 0.0
    %1148 = vmatprep.subr.mxu0 0.0
    %1149 = vmatpush1.msra.mxu0 0.0
    %1150 = vmatprep.subr.mxu0 0.0
    %1151 = vmatpush1.msra.mxu0 0.0
    %1152 = vmatprep.subr.mxu0 0.0
    %1153 = vmatpush1.msra.mxu0 0.0
    %1154 = vmatprep.subr.mxu0 0.0
    %1155 = vmatpush1.msra.mxu0 0.0
    %1156 = vmatprep.subr.mxu0 0.0
    %1157 = vmatpush1.msra.mxu0 0.0
    %1158 = vmatprep.subr.mxu0 0.0
    %1159 = vmatpush1.msra.mxu0 0.0
    %1160 = vmatprep.subr.mxu0 0.0
    %1161 = vmatpush1.msra.mxu0 0.0
    %1162 = vmatprep.subr.mxu0 0.0
    %1163 = vmatpush1.msra.mxu0 0.0
    %1164 = vmatprep.subr.mxu0 0.0
    %1165 = vmatpush1.msra.mxu0 0.0
    %1166 = vmatprep.subr.mxu0 0.0
    %1167 = vmatpush1.msra.mxu0 0.0
    %1168 = vmatprep.subr.mxu0 0.0
    %1169 = vmatpush1.msra.mxu0 0.0
    %1170 = vmatprep.subr.mxu0 0.0
    %1171 = vmatpush1.msra.mxu0 0.0
    %1172 = vmatprep.subr.mxu0 0.0
    %1173 = vmatpush1.msra.mxu0 0.0
    %1174 = vmatprep.subr.mxu0 0.0
    %1175 = vmatpush1.msra.mxu0 0.0
    %1176 = vmatprep.mubr.f32.mxu0 0.0
    %v1177 = vand.u32 %v1106, 4294901760
    %v1178 = vsub.f32 %v1106, %v1177
    %v1179 = vand.u32 %v1178, 4294901760
    %v1180 = vsub.f32 %v1178, %v1179
    %v1181 = vand.u32 %v1180, 4294901760
    %1182 = vmatmul.mubr.f32.gmra.mrb[0].mxu0 %v1181
    %v1183 = vpop.f32.mrb[0].mxu0
    %v1184 = vadd.f32 0.0, %v1183
    %v1185 = vpop.f32.mrb[0].mxu0
    %1186 = vdwg.mxu0
    %1187 = vmatprep.subr.mxu0 0.0
    %v1188 = vand.u32 %v1097, 4294901760
    %v1189 = vsub.f32 %v1097, %v1188
    %v1190 = vand.u32 %v1189, 4294901760
    %v1191 = vsub.f32 %v1189, %v1190
    %v1192 = vand.u32 %v1191, 4294901760
    %1193 = vmatpush1.msra.mxu0 %v1192
    %1194 = vmatprep.subr.mxu0 0.0
    %v1195 = vand.u32 %v1098, 4294901760
    %v1196 = vsub.f32 %v1098, %v1195
    %v1197 = vand.u32 %v1196, 4294901760
    %v1198 = vsub.f32 %v1196, %v1197
    %v1199 = vand.u32 %v1198, 4294901760
    %1200 = vmatpush1.msra.mxu0 %v1199
    %1201 = vmatprep.subr.mxu0 0.0
    %v1202 = vand.u32 %v1099, 4294901760
    %v1203 = vsub.f32 %v1099, %v1202
    %v1204 = vand.u32 %v1203, 4294901760
    %v1205 = vsub.f32 %v1203, %v1204
    %v1206 = vand.u32 %v1205, 4294901760
    %1207 = vmatpush1.msra.mxu0 %v1206
    %1208 = vmatprep.subr.mxu0 0.0
    %v1209 = vand.u32 %v1100, 4294901760
    %v1210 = vsub.f32 %v1100, %v1209
    %v1211 = vand.u32 %v1210, 4294901760
    %v1212 = vsub.f32 %v1210, %v1211
    %v1213 = vand.u32 %v1212, 4294901760
    %1214 = vmatpush1.msra.mxu0 %v1213
    %1215 = vmatprep.subr.mxu0 0.0
    %1216 = vmatpush1.msra.mxu0 0.0
    %1217 = vmatprep.subr.mxu0 0.0
    %1218 = vmatpush1.msra.mxu0 0.0
    %1219 = vmatprep.subr.mxu0 0.0
    %1220 = vmatpush1.msra.mxu0 0.0
    %1221 = vmatprep.subr.mxu0 0.0
    %1222 = vmatpush1.msra.mxu0 0.0
    %1223 = vmatprep.subr.mxu0 0.0
    %1224 = vmatpush1.msra.mxu0 0.0
    %1225 = vmatprep.subr.mxu0 0.0
    %1226 = vmatpush1.msra.mxu0 0.0
    %1227 = vmatprep.subr.mxu0 0.0
    %1228 = vmatpush1.msra.mxu0 0.0
    %1229 = vmatprep.subr.mxu0 0.0
    %1230 = vmatpush1.msra.mxu0 0.0
    %1231 = vmatprep.subr.mxu0 0.0
    %1232 = vmatpush1.msra.mxu0 0.0
    %1233 = vmatprep.subr.mxu0 0.0
    %1234 = vmatpush1.msra.mxu0 0.0
    %1235 = vmatprep.subr.mxu0 0.0
    %1236 = vmatpush1.msra.mxu0 0.0
    %1237 = vmatprep.subr.mxu0 0.0
    %1238 = vmatpush1.msra.mxu0 0.0
    %1239 = vmatprep.subr.mxu0 0.0
    %1240 = vmatpush1.msra.mxu0 0.0
    %1241 = vmatprep.subr.mxu0 0.0
    %1242 = vmatpush1.msra.mxu0 0.0
    %1243 = vmatprep.subr.mxu0 0.0
    %1244 = vmatpush1.msra.mxu0 0.0
    %1245 = vmatprep.subr.mxu0 0.0
    %1246 = vmatpush1.msra.mxu0 0.0
    %1247 = vmatprep.subr.mxu0 0.0
    %1248 = vmatpush1.msra.mxu0 0.0
    %1249 = vmatprep.subr.mxu0 0.0
    %1250 = vmatpush1.msra.mxu0 0.0
    %1251 = vmatprep.subr.mxu0 0.0
    %1252 = vmatpush1.msra.mxu0 0.0
    %1253 = vmatprep.subr.mxu0 0.0
    %1254 = vmatpush1.msra.mxu0 0.0
    %1255 = vmatprep.subr.mxu0 0.0
    %1256 = vmatpush1.msra.mxu0 0.0
    %1257 = vmatprep.subr.mxu0 0.0
    %1258 = vmatpush1.msra.mxu0 0.0
    %1259 = vmatprep.subr.mxu0 0.0
    %1260 = vmatpush1.msra.mxu0 0.0
    %1261 = vmatprep.subr.mxu0 0.0
    %1262 = vmatpush1.msra.mxu0 0.0
    %1263 = vmatprep.subr.mxu0 0.0
    %1264 = vmatpush1.msra.mxu0 0.0
    %1265 = vmatprep.subr.mxu0 0.0
    %1266 = vmatpush1.msra.mxu0 0.0
    %1267 = vmatprep.subr.mxu0 0.0
    %1268 = vmatpush1.msra.mxu0 0.0
    %1269 = vmatprep.subr.mxu0 0.0
    %1270 = vmatpush1.msra.mxu0 0.0
    %1271 = vmatprep.mubr.f32.mxu0 0.0
    %v1272 = vand.u32 %v1106, 4294901760
    %1273 = vmatmul.mubr.f32.gmra.mrb[0].mxu0 %v1272
    %v1274 = vpop.f32.mrb[0].mxu0
    %v1275 = vadd.f32 %v1184, %v1274
    %v1276 = vpop.f32.mrb[0].mxu0
    %1277 = vdwg.mxu0
    %1278 = vmatprep.subr.mxu0 0.0
    %v1279 = vand.u32 %v1097, 4294901760
    %v1280 = vsub.f32 %v1097, %v1279
    %1281 = vmatpush1.msra.mxu0 %v1280
    %1282 = vmatprep.subr.mxu0 0.0
    %v1283 = vand.u32 %v1098, 4294901760
    %v1284 = vsub.f32 %v1098, %v1283
    %1285 = vmatpush1.msra.mxu0 %v1284
    %1286 = vmatprep.subr.mxu0 0.0
    %v1287 = vand.u32 %v1099, 4294901760
    %v1288 = vsub.f32 %v1099, %v1287
    %1289 = vmatpush1.msra.mxu0 %v1288
    %1290 = vmatprep.subr.mxu0 0.0
    %v1291 = vand.u32 %v1100, 4294901760
    %v1292 = vsub.f32 %v1100, %v1291
    %1293 = vmatpush1.msra.mxu0 %v1292
    %1294 = vmatprep.subr.mxu0 0.0
    %1295 = vmatpush1.msra.mxu0 0.0
    %1296 = vmatprep.subr.mxu0 0.0
    %1297 = vmatpush1.msra.mxu0 0.0
    %1298 = vmatprep.subr.mxu0 0.0
    %1299 = vmatpush1.msra.mxu0 0.0
    %1300 = vmatprep.subr.mxu0 0.0
    %1301 = vmatpush1.msra.mxu0 0.0
    %1302 = vmatprep.subr.mxu0 0.0
    %1303 = vmatpush1.msra.mxu0 0.0
    %1304 = vmatprep.subr.mxu0 0.0
    %1305 = vmatpush1.msra.mxu0 0.0
    %1306 = vmatprep.subr.mxu0 0.0
    %1307 = vmatpush1.msra.mxu0 0.0
    %1308 = vmatprep.subr.mxu0 0.0
    %1309 = vmatpush1.msra.mxu0 0.0
    %1310 = vmatprep.subr.mxu0 0.0
    %1311 = vmatpush1.msra.mxu0 0.0
    %1312 = vmatprep.subr.mxu0 0.0
    %1313 = vmatpush1.msra.mxu0 0.0
    %1314 = vmatprep.subr.mxu0 0.0
    %1315 = vmatpush1.msra.mxu0 0.0
    %1316 = vmatprep.subr.mxu0 0.0
    %1317 = vmatpush1.msra.mxu0 0.0
    %1318 = vmatprep.subr.mxu0 0.0
    %1319 = vmatpush1.msra.mxu0 0.0
    %1320 = vmatprep.subr.mxu0 0.0
    %1321 = vmatpush1.msra.mxu0 0.0
    %1322 = vmatprep.subr.mxu0 0.0
    %1323 = vmatpush1.msra.mxu0 0.0
    %1324 = vmatprep.subr.mxu0 0.0
    %1325 = vmatpush1.msra.mxu0 0.0
    %1326 = vmatprep.subr.mxu0 0.0
    %1327 = vmatpush1.msra.mxu0 0.0
    %1328 = vmatprep.subr.mxu0 0.0
    %1329 = vmatpush1.msra.mxu0 0.0
    %1330 = vmatprep.subr.mxu0 0.0
    %1331 = vmatpush1.msra.mxu0 0.0
    %1332 = vmatprep.subr.mxu0 0.0
    %1333 = vmatpush1.msra.mxu0 0.0
    %1334 = vmatprep.subr.mxu0 0.0
    %1335 = vmatpush1.msra.mxu0 0.0
    %1336 = vmatprep.subr.mxu0 0.0
    %1337 = vmatpush1.msra.mxu0 0.0
    %1338 = vmatprep.subr.mxu0 0.0
    %1339 = vmatpush1.msra.mxu0 0.0
    %1340 = vmatprep.subr.mxu0 0.0
    %1341 = vmatpush1.msra.mxu0 0.0
    %1342 = vmatprep.subr.mxu0 0.0
    %1343 = vmatpush1.msra.mxu0 0.0
    %1344 = vmatprep.subr.mxu0 0.0
    %1345 = vmatpush1.msra.mxu0 0.0
    %1346 = vmatprep.subr.mxu0 0.0
    %1347 = vmatpush1.msra.mxu0 0.0
    %1348 = vmatprep.subr.mxu0 0.0
    %1349 = vmatpush1.msra.mxu0 0.0
    %1350 = vmatprep.mubr.f32.mxu0 0.0
    %v1351 = vand.u32 %v1106, 4294901760
    %v1352 = vsub.f32 %v1106, %v1351
    %1353 = vmatmul.mubr.f32.gmra.mrb[0].mxu0 %v1352
    %v1354 = vpop.f32.mrb[0].mxu0
    %v1355 = vadd.f32 %v1275, %v1354
    %v1356 = vpop.f32.mrb[0].mxu0
    %1357 = vdwg.mxu0
    %1358 = vmatprep.subr.mxu0 0.0
    %v1359 = vand.u32 %v1097, 4294901760
    %1360 = vmatpush1.msra.mxu0 %v1359
    %1361 = vmatprep.subr.mxu0 0.0
    %v1362 = vand.u32 %v1098, 4294901760
    %1363 = vmatpush1.msra.mxu0 %v1362
    %1364 = vmatprep.subr.mxu0 0.0
    %v1365 = vand.u32 %v1099, 4294901760
    %1366 = vmatpush1.msra.mxu0 %v1365
    %1367 = vmatprep.subr.mxu0 0.0
    %v1368 = vand.u32 %v1100, 4294901760
    %1369 = vmatpush1.msra.mxu0 %v1368
    %1370 = vmatprep.subr.mxu0 0.0
    %1371 = vmatpush1.msra.mxu0 0.0
    %1372 = vmatprep.subr.mxu0 0.0
    %1373 = vmatpush1.msra.mxu0 0.0
    %1374 = vmatprep.subr.mxu0 0.0
    %1375 = vmatpush1.msra.mxu0 0.0
    %1376 = vmatprep.subr.mxu0 0.0
    %1377 = vmatpush1.msra.mxu0 0.0
    %1378 = vmatprep.subr.mxu0 0.0
    %1379 = vmatpush1.msra.mxu0 0.0
    %1380 = vmatprep.subr.mxu0 0.0
    %1381 = vmatpush1.msra.mxu0 0.0
    %1382 = vmatprep.subr.mxu0 0.0
    %1383 = vmatpush1.msra.mxu0 0.0
    %1384 = vmatprep.subr.mxu0 0.0
    %1385 = vmatpush1.msra.mxu0 0.0
    %1386 = vmatprep.subr.mxu0 0.0
    %1387 = vmatpush1.msra.mxu0 0.0
    %1388 = vmatprep.subr.mxu0 0.0
    %1389 = vmatpush1.msra.mxu0 0.0
    %1390 = vmatprep.subr.mxu0 0.0
    %1391 = vmatpush1.msra.mxu0 0.0
    %1392 = vmatprep.subr.mxu0 0.0
    %1393 = vmatpush1.msra.mxu0 0.0
    %1394 = vmatprep.subr.mxu0 0.0
    %1395 = vmatpush1.msra.mxu0 0.0
    %1396 = vmatprep.subr.mxu0 0.0
    %1397 = vmatpush1.msra.mxu0 0.0
    %1398 = vmatprep.subr.mxu0 0.0
    %1399 = vmatpush1.msra.mxu0 0.0
    %1400 = vmatprep.subr.mxu0 0.0
    %1401 = vmatpush1.msra.mxu0 0.0
    %1402 = vmatprep.subr.mxu0 0.0
    %1403 = vmatpush1.msra.mxu0 0.0
    %1404 = vmatprep.subr.mxu0 0.0
    %1405 = vmatpush1.msra.mxu0 0.0
    %1406 = vmatprep.subr.mxu0 0.0
    %1407 = vmatpush1.msra.mxu0 0.0
    %1408 = vmatprep.subr.mxu0 0.0
    %1409 = vmatpush1.msra.mxu0 0.0
    %1410 = vmatprep.subr.mxu0 0.0
    %1411 = vmatpush1.msra.mxu0 0.0
    %1412 = vmatprep.subr.mxu0 0.0
    %1413 = vmatpush1.msra.mxu0 0.0
    %1414 = vmatprep.subr.mxu0 0.0
    %1415 = vmatpush1.msra.mxu0 0.0
    %1416 = vmatprep.subr.mxu0 0.0
    %1417 = vmatpush1.msra.mxu0 0.0
    %1418 = vmatprep.subr.mxu0 0.0
    %1419 = vmatpush1.msra.mxu0 0.0
    %1420 = vmatprep.subr.mxu0 0.0
    %1421 = vmatpush1.msra.mxu0 0.0
    %1422 = vmatprep.subr.mxu0 0.0
    %1423 = vmatpush1.msra.mxu0 0.0
    %1424 = vmatprep.subr.mxu0 0.0
    %1425 = vmatpush1.msra.mxu0 0.0
    %1426 = vmatprep.mubr.f32.mxu0 0.0
    %v1427 = vand.u32 %v1106, 4294901760
    %v1428 = vsub.f32 %v1106, %v1427
    %v1429 = vand.u32 %v1428, 4294901760
    %1430 = vmatmul.mubr.f32.gmra.mrb[0].mxu0 %v1429
    %v1431 = vpop.f32.mrb[0].mxu0
    %v1432 = vadd.f32 %v1355, %v1431
    %v1433 = vpop.f32.mrb[0].mxu0
    %1434 = vdwg.mxu0
    %1435 = vmatprep.subr.mxu0 0.0
    %v1436 = vand.u32 %v1097, 4294901760
    %v1437 = vsub.f32 %v1097, %v1436
    %v1438 = vand.u32 %v1437, 4294901760
    %1439 = vmatpush1.msra.mxu0 %v1438
    %1440 = vmatprep.subr.mxu0 0.0
    %v1441 = vand.u32 %v1098, 4294901760
    %v1442 = vsub.f32 %v1098, %v1441
    %v1443 = vand.u32 %v1442, 4294901760
    %1444 = vmatpush1.msra.mxu0 %v1443
    %1445 = vmatprep.subr.mxu0 0.0
    %v1446 = vand.u32 %v1099, 4294901760
    %v1447 = vsub.f32 %v1099, %v1446
    %v1448 = vand.u32 %v1447, 4294901760
    %1449 = vmatpush1.msra.mxu0 %v1448
    %1450 = vmatprep.subr.mxu0 0.0
    %v1451 = vand.u32 %v1100, 4294901760
    %v1452 = vsub.f32 %v1100, %v1451
    %v1453 = vand.u32 %v1452, 4294901760
    %1454 = vmatpush1.msra.mxu0 %v1453
    %1455 = vmatprep.subr.mxu0 0.0
    %1456 = vmatpush1.msra.mxu0 0.0
    %1457 = vmatprep.subr.mxu0 0.0
    %1458 = vmatpush1.msra.mxu0 0.0
    %1459 = vmatprep.subr.mxu0 0.0
    %1460 = vmatpush1.msra.mxu0 0.0
    %1461 = vmatprep.subr.mxu0 0.0
    %1462 = vmatpush1.msra.mxu0 0.0
    %1463 = vmatprep.subr.mxu0 0.0
    %1464 = vmatpush1.msra.mxu0 0.0
    %1465 = vmatprep.subr.mxu0 0.0
    %1466 = vmatpush1.msra.mxu0 0.0
    %1467 = vmatprep.subr.mxu0 0.0
    %1468 = vmatpush1.msra.mxu0 0.0
    %1469 = vmatprep.subr.mxu0 0.0
    %1470 = vmatpush1.msra.mxu0 0.0
    %1471 = vmatprep.subr.mxu0 0.0
    %1472 = vmatpush1.msra.mxu0 0.0
    %1473 = vmatprep.subr.mxu0 0.0
    %1474 = vmatpush1.msra.mxu0 0.0
    %1475 = vmatprep.subr.mxu0 0.0
    %1476 = vmatpush1.msra.mxu0 0.0
    %1477 = vmatprep.subr.mxu0 0.0
    %1478 = vmatpush1.msra.mxu0 0.0
    %1479 = vmatprep.subr.mxu0 0.0
    %1480 = vmatpush1.msra.mxu0 0.0
    %1481 = vmatprep.subr.mxu0 0.0
    %1482 = vmatpush1.msra.mxu0 0.0
    %1483 = vmatprep.subr.mxu0 0.0
    %1484 = vmatpush1.msra.mxu0 0.0
    %1485 = vmatprep.subr.mxu0 0.0
    %1486 = vmatpush1.msra.mxu0 0.0
    %1487 = vmatprep.subr.mxu0 0.0
    %1488 = vmatpush1.msra.mxu0 0.0
    %1489 = vmatprep.subr.mxu0 0.0
    %1490 = vmatpush1.msra.mxu0 0.0
    %1491 = vmatprep.subr.mxu0 0.0
    %1492 = vmatpush1.msra.mxu0 0.0
    %1493 = vmatprep.subr.mxu0 0.0
    %1494 = vmatpush1.msra.mxu0 0.0
    %1495 = vmatprep.subr.mxu0 0.0
    %1496 = vmatpush1.msra.mxu0 0.0
    %1497 = vmatprep.subr.mxu0 0.0
    %1498 = vmatpush1.msra.mxu0 0.0
    %1499 = vmatprep.subr.mxu0 0.0
    %1500 = vmatpush1.msra.mxu0 0.0
    %1501 = vmatprep.subr.mxu0 0.0
    %1502 = vmatpush1.msra.mxu0 0.0
    %1503 = vmatprep.subr.mxu0 0.0
    %1504 = vmatpush1.msra.mxu0 0.0
    %1505 = vmatprep.subr.mxu0 0.0
    %1506 = vmatpush1.msra.mxu0 0.0
    %1507 = vmatprep.subr.mxu0 0.0
    %1508 = vmatpush1.msra.mxu0 0.0
    %1509 = vmatprep.subr.mxu0 0.0
    %1510 = vmatpush1.msra.mxu0 0.0
    %1511 = vmatprep.mubr.f32.mxu0 0.0
    %v1512 = vand.u32 %v1106, 4294901760
    %1513 = vmatmul.mubr.f32.gmra.mrb[0].mxu0 %v1512
    %v1514 = vpop.f32.mrb[0].mxu0
    %v1515 = vadd.f32 %v1432, %v1514
    %v1516 = vpop.f32.mrb[0].mxu0
    %1517 = vdwg.mxu0
    %1518 = vmatprep.subr.mxu0 0.0
    %v1519 = vand.u32 %v1097, 4294901760
    %1520 = vmatpush1.msra.mxu0 %v1519
    %1521 = vmatprep.subr.mxu0 0.0
    %v1522 = vand.u32 %v1098, 4294901760
    %1523 = vmatpush1.msra.mxu0 %v1522
    %1524 = vmatprep.subr.mxu0 0.0
    %v1525 = vand.u32 %v1099, 4294901760
    %1526 = vmatpush1.msra.mxu0 %v1525
    %1527 = vmatprep.subr.mxu0 0.0
    %v1528 = vand.u32 %v1100, 4294901760
    %1529 = vmatpush1.msra.mxu0 %v1528
    %1530 = vmatprep.subr.mxu0 0.0
    %1531 = vmatpush1.msra.mxu0 0.0
    %1532 = vmatprep.subr.mxu0 0.0
    %1533 = vmatpush1.msra.mxu0 0.0
    %1534 = vmatprep.subr.mxu0 0.0
    %1535 = vmatpush1.msra.mxu0 0.0
    %1536 = vmatprep.subr.mxu0 0.0
    %1537 = vmatpush1.msra.mxu0 0.0
    %1538 = vmatprep.subr.mxu0 0.0
    %1539 = vmatpush1.msra.mxu0 0.0
    %1540 = vmatprep.subr.mxu0 0.0
    %1541 = vmatpush1.msra.mxu0 0.0
    %1542 = vmatprep.subr.mxu0 0.0
    %1543 = vmatpush1.msra.mxu0 0.0
    %1544 = vmatprep.subr.mxu0 0.0
    %1545 = vmatpush1.msra.mxu0 0.0
    %1546 = vmatprep.subr.mxu0 0.0
    %1547 = vmatpush1.msra.mxu0 0.0
    %1548 = vmatprep.subr.mxu0 0.0
    %1549 = vmatpush1.msra.mxu0 0.0
    %1550 = vmatprep.subr.mxu0 0.0
    %1551 = vmatpush1.msra.mxu0 0.0
    %1552 = vmatprep.subr.mxu0 0.0
    %1553 = vmatpush1.msra.mxu0 0.0
    %1554 = vmatprep.subr.mxu0 0.0
    %1555 = vmatpush1.msra.mxu0 0.0
    %1556 = vmatprep.subr.mxu0 0.0
    %1557 = vmatpush1.msra.mxu0 0.0
    %1558 = vmatprep.subr.mxu0 0.0
    %1559 = vmatpush1.msra.mxu0 0.0
    %1560 = vmatprep.subr.mxu0 0.0
    %1561 = vmatpush1.msra.mxu0 0.0
    %1562 = vmatprep.subr.mxu0 0.0
    %1563 = vmatpush1.msra.mxu0 0.0
    %1564 = vmatprep.subr.mxu0 0.0
    %1565 = vmatpush1.msra.mxu0 0.0
    %1566 = vmatprep.subr.mxu0 0.0
    %1567 = vmatpush1.msra.mxu0 0.0
    %1568 = vmatprep.subr.mxu0 0.0
    %1569 = vmatpush1.msra.mxu0 0.0
    %1570 = vmatprep.subr.mxu0 0.0
    %1571 = vmatpush1.msra.mxu0 0.0
    %1572 = vmatprep.subr.mxu0 0.0
    %1573 = vmatpush1.msra.mxu0 0.0
    %1574 = vmatprep.subr.mxu0 0.0
    %1575 = vmatpush1.msra.mxu0 0.0
    %1576 = vmatprep.subr.mxu0 0.0
    %1577 = vmatpush1.msra.mxu0 0.0
    %1578 = vmatprep.subr.mxu0 0.0
    %1579 = vmatpush1.msra.mxu0 0.0
    %1580 = vmatprep.subr.mxu0 0.0
    %1581 = vmatpush1.msra.mxu0 0.0
    %1582 = vmatprep.subr.mxu0 0.0
    %1583 = vmatpush1.msra.mxu0 0.0
    %1584 = vmatprep.subr.mxu0 0.0
    %1585 = vmatpush1.msra.mxu0 0.0
    %1586 = vmatprep.mubr.f32.mxu0 0.0
    %v1587 = vand.u32 %v1106, 4294901760
    %1588 = vmatmul.mubr.f32.gmra.mrb[0].mxu0 %v1587
    %v1589 = vpop.f32.mrb[0].mxu0
    %v1590 = vadd.f32 %v1515, %v1589
    %v1591 = vpop.f32.mrb[0].mxu0
    %1592 = vdwg.mxu0
    %v1594 = vrot.slane %v1590, 1
    %v1597 = vadd.f32 %v1095, %v1590
    %v1598 = vadd.f32 %v1096, %v1594
    %v1599 = vxor.u32 %v1597, 2147483648
    %v1600 = vxor.u32 %v1598, 2147483648
    %v1601 = vmul.f32 %v1599, 1.442695
    %v1602 = vpow.pop %v1601
    %v1603 = vmul.f32 %v1600, 1.442695
    %v1604 = vpow.pop %v1603
    %v1605 = vadd.f32 %v1602, 1.0
    %v1606 = vadd.f32 %v1604, 1.0
    %v1607 = vrcp.pop %v1605
    %v1608 = vmul.f32 1.0, %v1607
    %v1609 = vrcp.pop %v1606
    %v1610 = vmul.f32 1.0, %v1609
    %v1611 = vmul.f32 %v1608, 2.0
    %v1612 = vmul.f32 %v1610, 2.0
    %v1613 = vsub.f32 %v1611, 1.0
    %v1614 = vsub.f32 %v1612, 1.0
    %v1616 = vrot.slane %v1103, 1
    %1617 = vrot.lane.b32.xlu0 %v1103, 32
    %v1618 = vpop.permute.xlu0 %1617
    %1619 = vrot.lane.b32.xlu0 %v1616, 32
    %v1620 = vpop.permute.xlu0 %1619
    %v1623 = vmul.f32 %v1608, %v1618
    %v1624 = vmul.f32 %v1610, %v1620
    %1627 = vrot.lane.b32.xlu0 %v1613, 64
    %v1628 = vpop.permute.xlu0 %1627
    %1629 = vrot.lane.b32.xlu0 %v1614, 64
    %v1630 = vpop.permute.xlu0 %1629
    %v1633 = vmul.f32 %v1608, %v1628
    %v1634 = vmul.f32 %v1610, %v1630
    %1637 = vrot.lane.b32.xlu0 %v1633, 32
    %v1638 = vpop.permute.xlu0 %1637
    %1639 = vrot.lane.b32.xlu0 %v1634, 32
    %v1640 = vpop.permute.xlu0 %1639
    %v1643 = vadd.f32 %v1623, %v1638
    %v1644 = vadd.f32 %v1624, %v1640
    %v1645 = vtanh.pop %v1643
    %v1646 = vtanh.pop %v1644
    %1649 = vrot.lane.b32.xlu0 %v1645, 64
    %v1650 = vpop.permute.xlu0 %1649
    %1651 = vrot.lane.b32.xlu0 %v1646, 64
    %v1652 = vpop.permute.xlu0 %1651
    %v1655 = vmul.f32 %v1608, %v1650
    %v1656 = vmul.f32 %v1610, %v1652
    %v1658 = vlaneseq
    %v1659 = vshrl.u32 %v1658, 7
    %v1660 = vsub.s32 0, %v1659
    %v1661 = vrot.slane %v1101, %v1660
    %1662 = vrot.lane.b32.xlu0 %v1661, 96
    %v1663 = vpop.permute.xlu0 %1662
    %v1665 = vmul.f32 %v1655, %v1663
    %v1666 = vmul.f32 %v1656, %v1663
    %v1669 = vrot.slane %v1666, 7
    %vm1670 = vcmask 1041409
    %v1671 = vsel %vm1670, %v1669, %v1665
    %1672 = vrot.lane.b32.xlu0 %v1671, 32
    %v1673 = vpop.permute.xlu0 %1672
    %vm1675 = vcmask 254976
    %v1676 = vsel %vm1675, %v1673, 0.0
    %1677 = vadd.xlane.f32.xlu0 %v1676
    %v1678 = vpop.xlane.xlu0 %1677
    %v1681 = vrot.slane %v1656, 7
    %v1682 = vsel %vm1670, %v1681, %v1655
    %1683 = vrot.lane.b32.xlu0 %v1682, 32
    %v1684 = vpop.permute.xlu0 %1683
    %v1685 = vsel %vm1104, %v1684, 0
    %1687 = vmatprep.subr.mxu0 0.0
    %v1688 = vand.u32 %v1097, 4294901760
    %1689 = vmatpush1.msra.mxu0 %v1688
    %1690 = vmatprep.subr.mxu0 0.0
    %v1691 = vand.u32 %v1098, 4294901760
    %1692 = vmatpush1.msra.mxu0 %v1691
    %1693 = vmatprep.subr.mxu0 0.0
    %v1694 = vand.u32 %v1099, 4294901760
    %1695 = vmatpush1.msra.mxu0 %v1694
    %1696 = vmatprep.subr.mxu0 0.0
    %v1697 = vand.u32 %v1100, 4294901760
    %1698 = vmatpush1.msra.mxu0 %v1697
    %1699 = vmatprep.subr.mxu0 0.0
    %1700 = vmatpush1.msra.mxu0 0.0
    %1701 = vmatprep.subr.mxu0 0.0
    %1702 = vmatpush1.msra.mxu0 0.0
    %1703 = vmatprep.subr.mxu0 0.0
    %1704 = vmatpush1.msra.mxu0 0.0
    %1705 = vmatprep.subr.mxu0 0.0
    %1706 = vmatpush1.msra.mxu0 0.0
    %1707 = vmatprep.subr.mxu0 0.0
    %1708 = vmatpush1.msra.mxu0 0.0
    %1709 = vmatprep.subr.mxu0 0.0
    %1710 = vmatpush1.msra.mxu0 0.0
    %1711 = vmatprep.subr.mxu0 0.0
    %1712 = vmatpush1.msra.mxu0 0.0
    %1713 = vmatprep.subr.mxu0 0.0
    %1714 = vmatpush1.msra.mxu0 0.0
    %1715 = vmatprep.subr.mxu0 0.0
    %1716 = vmatpush1.msra.mxu0 0.0
    %1717 = vmatprep.subr.mxu0 0.0
    %1718 = vmatpush1.msra.mxu0 0.0
    %1719 = vmatprep.subr.mxu0 0.0
    %1720 = vmatpush1.msra.mxu0 0.0
    %1721 = vmatprep.subr.mxu0 0.0
    %1722 = vmatpush1.msra.mxu0 0.0
    %1723 = vmatprep.subr.mxu0 0.0
    %1724 = vmatpush1.msra.mxu0 0.0
    %1725 = vmatprep.subr.mxu0 0.0
    %1726 = vmatpush1.msra.mxu0 0.0
    %1727 = vmatprep.subr.mxu0 0.0
    %1728 = vmatpush1.msra.mxu0 0.0
    %1729 = vmatprep.subr.mxu0 0.0
    %1730 = vmatpush1.msra.mxu0 0.0
    %1731 = vmatprep.subr.mxu0 0.0
    %1732 = vmatpush1.msra.mxu0 0.0
    %1733 = vmatprep.subr.mxu0 0.0
    %1734 = vmatpush1.msra.mxu0 0.0
    %1735 = vmatprep.subr.mxu0 0.0
    %1736 = vmatpush1.msra.mxu0 0.0
    %1737 = vmatprep.subr.mxu0 0.0
    %1738 = vmatpush1.msra.mxu0 0.0
    %1739 = vmatprep.subr.mxu0 0.0
    %1740 = vmatpush1.msra.mxu0 0.0
    %1741 = vmatprep.subr.mxu0 0.0
    %1742 = vmatpush1.msra.mxu0 0.0
    %1743 = vmatprep.subr.mxu0 0.0
    %1744 = vmatpush1.msra.mxu0 0.0
    %1745 = vmatprep.subr.mxu0 0.0
    %1746 = vmatpush1.msra.mxu0 0.0
    %1747 = vmatprep.subr.mxu0 0.0
    %1748 = vmatpush1.msra.mxu0 0.0
    %1749 = vmatprep.subr.mxu0 0.0
    %1750 = vmatpush1.msra.mxu0 0.0
    %1751 = vmatprep.subr.mxu0 0.0
    %1752 = vmatpush1.msra.mxu0 0.0
    %1753 = vmatprep.subr.mxu0 0.0
    %1754 = vmatpush1.msra.mxu0 0.0
    %1755 = vmatprep.mubr.f32.mxu0 0.0
    %v1756 = vand.u32 %v1685, 4294901760
    %v1757 = vsub.f32 %v1685, %v1756
    %v1758 = vand.u32 %v1757, 4294901760
    %v1759 = vsub.f32 %v1757, %v1758
    %v1760 = vand.u32 %v1759, 4294901760
    %1761 = vmatmul.mubr.f32.gmra.mrb[0].mxu0 %v1760
    %v1762 = vpop.f32.mrb[0].mxu0
    %v1763 = vadd.f32 0.0, %v1762
    %v1764 = vpop.f32.mrb[0].mxu0
    %1765 = vdwg.mxu0
    %1766 = vmatprep.subr.mxu0 0.0
    %v1767 = vand.u32 %v1097, 4294901760
    %v1768 = vsub.f32 %v1097, %v1767
    %v1769 = vand.u32 %v1768, 4294901760
    %v1770 = vsub.f32 %v1768, %v1769
    %v1771 = vand.u32 %v1770, 4294901760
    %1772 = vmatpush1.msra.mxu0 %v1771
    %1773 = vmatprep.subr.mxu0 0.0
    %v1774 = vand.u32 %v1098, 4294901760
    %v1775 = vsub.f32 %v1098, %v1774
    %v1776 = vand.u32 %v1775, 4294901760
    %v1777 = vsub.f32 %v1775, %v1776
    %v1778 = vand.u32 %v1777, 4294901760
    %1779 = vmatpush1.msra.mxu0 %v1778
    %1780 = vmatprep.subr.mxu0 0.0
    %v1781 = vand.u32 %v1099, 4294901760
    %v1782 = vsub.f32 %v1099, %v1781
    %v1783 = vand.u32 %v1782, 4294901760
    %v1784 = vsub.f32 %v1782, %v1783
    %v1785 = vand.u32 %v1784, 4294901760
    %1786 = vmatpush1.msra.mxu0 %v1785
    %1787 = vmatprep.subr.mxu0 0.0
    %v1788 = vand.u32 %v1100, 4294901760
    %v1789 = vsub.f32 %v1100, %v1788
    %v1790 = vand.u32 %v1789, 4294901760
    %v1791 = vsub.f32 %v1789, %v1790
    %v1792 = vand.u32 %v1791, 4294901760
    %1793 = vmatpush1.msra.mxu0 %v1792
    %1794 = vmatprep.subr.mxu0 0.0
    %1795 = vmatpush1.msra.mxu0 0.0
    %1796 = vmatprep.subr.mxu0 0.0
    %1797 = vmatpush1.msra.mxu0 0.0
    %1798 = vmatprep.subr.mxu0 0.0
    %1799 = vmatpush1.msra.mxu0 0.0
    %1800 = vmatprep.subr.mxu0 0.0
    %1801 = vmatpush1.msra.mxu0 0.0
    %1802 = vmatprep.subr.mxu0 0.0
    %1803 = vmatpush1.msra.mxu0 0.0
    %1804 = vmatprep.subr.mxu0 0.0
    %1805 = vmatpush1.msra.mxu0 0.0
    %1806 = vmatprep.subr.mxu0 0.0
    %1807 = vmatpush1.msra.mxu0 0.0
    %1808 = vmatprep.subr.mxu0 0.0
    %1809 = vmatpush1.msra.mxu0 0.0
    %1810 = vmatprep.subr.mxu0 0.0
    %1811 = vmatpush1.msra.mxu0 0.0
    %1812 = vmatprep.subr.mxu0 0.0
    %1813 = vmatpush1.msra.mxu0 0.0
    %1814 = vmatprep.subr.mxu0 0.0
    %1815 = vmatpush1.msra.mxu0 0.0
    %1816 = vmatprep.subr.mxu0 0.0
    %1817 = vmatpush1.msra.mxu0 0.0
    %1818 = vmatprep.subr.mxu0 0.0
    %1819 = vmatpush1.msra.mxu0 0.0
    %1820 = vmatprep.subr.mxu0 0.0
    %1821 = vmatpush1.msra.mxu0 0.0
    %1822 = vmatprep.subr.mxu0 0.0
    %1823 = vmatpush1.msra.mxu0 0.0
    %1824 = vmatprep.subr.mxu0 0.0
    %1825 = vmatpush1.msra.mxu0 0.0
    %1826 = vmatprep.subr.mxu0 0.0
    %1827 = vmatpush1.msra.mxu0 0.0
    %1828 = vmatprep.subr.mxu0 0.0
    %1829 = vmatpush1.msra.mxu0 0.0
    %1830 = vmatprep.subr.mxu0 0.0
    %1831 = vmatpush1.msra.mxu0 0.0
    %1832 = vmatprep.subr.mxu0 0.0
    %1833 = vmatpush1.msra.mxu0 0.0
    %1834 = vmatprep.subr.mxu0 0.0
    %1835 = vmatpush1.msra.mxu0 0.0
    %1836 = vmatprep.subr.mxu0 0.0
    %1837 = vmatpush1.msra.mxu0 0.0
    %1838 = vmatprep.subr.mxu0 0.0
    %1839 = vmatpush1.msra.mxu0 0.0
    %1840 = vmatprep.subr.mxu0 0.0
    %1841 = vmatpush1.msra.mxu0 0.0
    %1842 = vmatprep.subr.mxu0 0.0
    %1843 = vmatpush1.msra.mxu0 0.0
    %1844 = vmatprep.subr.mxu0 0.0
    %1845 = vmatpush1.msra.mxu0 0.0
    %1846 = vmatprep.subr.mxu0 0.0
    %1847 = vmatpush1.msra.mxu0 0.0
    %1848 = vmatprep.subr.mxu0 0.0
    %1849 = vmatpush1.msra.mxu0 0.0
    %1850 = vmatprep.mubr.f32.mxu0 0.0
    %v1851 = vand.u32 %v1685, 4294901760
    %1852 = vmatmul.mubr.f32.gmra.mrb[0].mxu0 %v1851
    %v1853 = vpop.f32.mrb[0].mxu0
    %v1854 = vadd.f32 %v1763, %v1853
    %v1855 = vpop.f32.mrb[0].mxu0
    %1856 = vdwg.mxu0
    %1857 = vmatprep.subr.mxu0 0.0
    %v1858 = vand.u32 %v1097, 4294901760
    %v1859 = vsub.f32 %v1097, %v1858
    %1860 = vmatpush1.msra.mxu0 %v1859
    %1861 = vmatprep.subr.mxu0 0.0
    %v1862 = vand.u32 %v1098, 4294901760
    %v1863 = vsub.f32 %v1098, %v1862
    %1864 = vmatpush1.msra.mxu0 %v1863
    %1865 = vmatprep.subr.mxu0 0.0
    %v1866 = vand.u32 %v1099, 4294901760
    %v1867 = vsub.f32 %v1099, %v1866
    %1868 = vmatpush1.msra.mxu0 %v1867
    %1869 = vmatprep.subr.mxu0 0.0
    %v1870 = vand.u32 %v1100, 4294901760
    %v1871 = vsub.f32 %v1100, %v1870
    %1872 = vmatpush1.msra.mxu0 %v1871
    %1873 = vmatprep.subr.mxu0 0.0
    %1874 = vmatpush1.msra.mxu0 0.0
    %1875 = vmatprep.subr.mxu0 0.0
    %1876 = vmatpush1.msra.mxu0 0.0
    %1877 = vmatprep.subr.mxu0 0.0
    %1878 = vmatpush1.msra.mxu0 0.0
    %1879 = vmatprep.subr.mxu0 0.0
    %1880 = vmatpush1.msra.mxu0 0.0
    %1881 = vmatprep.subr.mxu0 0.0
    %1882 = vmatpush1.msra.mxu0 0.0
    %1883 = vmatprep.subr.mxu0 0.0
    %1884 = vmatpush1.msra.mxu0 0.0
    %1885 = vmatprep.subr.mxu0 0.0
    %1886 = vmatpush1.msra.mxu0 0.0
    %1887 = vmatprep.subr.mxu0 0.0
    %1888 = vmatpush1.msra.mxu0 0.0
    %1889 = vmatprep.subr.mxu0 0.0
    %1890 = vmatpush1.msra.mxu0 0.0
    %1891 = vmatprep.subr.mxu0 0.0
    %1892 = vmatpush1.msra.mxu0 0.0
    %1893 = vmatprep.subr.mxu0 0.0
    %1894 = vmatpush1.msra.mxu0 0.0
    %1895 = vmatprep.subr.mxu0 0.0
    %1896 = vmatpush1.msra.mxu0 0.0
    %1897 = vmatprep.subr.mxu0 0.0
    %1898 = vmatpush1.msra.mxu0 0.0
    %1899 = vmatprep.subr.mxu0 0.0
    %1900 = vmatpush1.msra.mxu0 0.0
    %1901 = vmatprep.subr.mxu0 0.0
    %1902 = vmatpush1.msra.mxu0 0.0
    %1903 = vmatprep.subr.mxu0 0.0
    %1904 = vmatpush1.msra.mxu0 0.0
    %1905 = vmatprep.subr.mxu0 0.0
    %1906 = vmatpush1.msra.mxu0 0.0
    %1907 = vmatprep.subr.mxu0 0.0
    %1908 = vmatpush1.msra.mxu0 0.0
    %1909 = vmatprep.subr.mxu0 0.0
    %1910 = vmatpush1.msra.mxu0 0.0
    %1911 = vmatprep.subr.mxu0 0.0
    %1912 = vmatpush1.msra.mxu0 0.0
    %1913 = vmatprep.subr.mxu0 0.0
    %1914 = vmatpush1.msra.mxu0 0.0
    %1915 = vmatprep.subr.mxu0 0.0
    %1916 = vmatpush1.msra.mxu0 0.0
    %1917 = vmatprep.subr.mxu0 0.0
    %1918 = vmatpush1.msra.mxu0 0.0
    %1919 = vmatprep.subr.mxu0 0.0
    %1920 = vmatpush1.msra.mxu0 0.0
    %1921 = vmatprep.subr.mxu0 0.0
    %1922 = vmatpush1.msra.mxu0 0.0
    %1923 = vmatprep.subr.mxu0 0.0
    %1924 = vmatpush1.msra.mxu0 0.0
    %1925 = vmatprep.subr.mxu0 0.0
    %1926 = vmatpush1.msra.mxu0 0.0
    %1927 = vmatprep.subr.mxu0 0.0
    %1928 = vmatpush1.msra.mxu0 0.0
    %1929 = vmatprep.mubr.f32.mxu0 0.0
    %v1930 = vand.u32 %v1685, 4294901760
    %v1931 = vsub.f32 %v1685, %v1930
    %1932 = vmatmul.mubr.f32.gmra.mrb[0].mxu0 %v1931
    %v1933 = vpop.f32.mrb[0].mxu0
    %v1934 = vadd.f32 %v1854, %v1933
    %v1935 = vpop.f32.mrb[0].mxu0
    %1936 = vdwg.mxu0
    %1937 = vmatprep.subr.mxu0 0.0
    %v1938 = vand.u32 %v1097, 4294901760
    %1939 = vmatpush1.msra.mxu0 %v1938
    %1940 = vmatprep.subr.mxu0 0.0
    %v1941 = vand.u32 %v1098, 4294901760
    %1942 = vmatpush1.msra.mxu0 %v1941
    %1943 = vmatprep.subr.mxu0 0.0
    %v1944 = vand.u32 %v1099, 4294901760
    %1945 = vmatpush1.msra.mxu0 %v1944
    %1946 = vmatprep.subr.mxu0 0.0
    %v1947 = vand.u32 %v1100, 4294901760
    %1948 = vmatpush1.msra.mxu0 %v1947
    %1949 = vmatprep.subr.mxu0 0.0
    %1950 = vmatpush1.msra.mxu0 0.0
    %1951 = vmatprep.subr.mxu0 0.0
    %1952 = vmatpush1.msra.mxu0 0.0
    %1953 = vmatprep.subr.mxu0 0.0
    %1954 = vmatpush1.msra.mxu0 0.0
    %1955 = vmatprep.subr.mxu0 0.0
    %1956 = vmatpush1.msra.mxu0 0.0
    %1957 = vmatprep.subr.mxu0 0.0
    %1958 = vmatpush1.msra.mxu0 0.0
    %1959 = vmatprep.subr.mxu0 0.0
    %1960 = vmatpush1.msra.mxu0 0.0
    %1961 = vmatprep.subr.mxu0 0.0
    %1962 = vmatpush1.msra.mxu0 0.0
    %1963 = vmatprep.subr.mxu0 0.0
    %1964 = vmatpush1.msra.mxu0 0.0
    %1965 = vmatprep.subr.mxu0 0.0
    %1966 = vmatpush1.msra.mxu0 0.0
    %1967 = vmatprep.subr.mxu0 0.0
    %1968 = vmatpush1.msra.mxu0 0.0
    %1969 = vmatprep.subr.mxu0 0.0
    %1970 = vmatpush1.msra.mxu0 0.0
    %1971 = vmatprep.subr.mxu0 0.0
    %1972 = vmatpush1.msra.mxu0 0.0
    %1973 = vmatprep.subr.mxu0 0.0
    %1974 = vmatpush1.msra.mxu0 0.0
    %1975 = vmatprep.subr.mxu0 0.0
    %1976 = vmatpush1.msra.mxu0 0.0
    %1977 = vmatprep.subr.mxu0 0.0
    %1978 = vmatpush1.msra.mxu0 0.0
    %1979 = vmatprep.subr.mxu0 0.0
    %1980 = vmatpush1.msra.mxu0 0.0
    %1981 = vmatprep.subr.mxu0 0.0
    %1982 = vmatpush1.msra.mxu0 0.0
    %1983 = vmatprep.subr.mxu0 0.0
    %1984 = vmatpush1.msra.mxu0 0.0
    %1985 = vmatprep.subr.mxu0 0.0
    %1986 = vmatpush1.msra.mxu0 0.0
    %1987 = vmatprep.subr.mxu0 0.0
    %1988 = vmatpush1.msra.mxu0 0.0
    %1989 = vmatprep.subr.mxu0 0.0
    %1990 = vmatpush1.msra.mxu0 0.0
    %1991 = vmatprep.subr.mxu0 0.0
    %1992 = vmatpush1.msra.mxu0 0.0
    %1993 = vmatprep.subr.mxu0 0.0
    %1994 = vmatpush1.msra.mxu0 0.0
    %1995 = vmatprep.subr.mxu0 0.0
    %1996 = vmatpush1.msra.mxu0 0.0
    %1997 = vmatprep.subr.mxu0 0.0
    %1998 = vmatpush1.msra.mxu0 0.0
    %1999 = vmatprep.subr.mxu0 0.0
    %2000 = vmatpush1.msra.mxu0 0.0
    %2001 = vmatprep.subr.mxu0 0.0
    %2002 = vmatpush1.msra.mxu0 0.0
    %2003 = vmatprep.subr.mxu0 0.0
    %2004 = vmatpush1.msra.mxu0 0.0
    %2005 = vmatprep.mubr.f32.mxu0 0.0
    %v2006 = vand.u32 %v1685, 4294901760
    %v2007 = vsub.f32 %v1685, %v2006
    %v2008 = vand.u32 %v2007, 4294901760
    %2009 = vmatmul.mubr.f32.gmra.mrb[0].mxu0 %v2008
    %v2010 = vpop.f32.mrb[0].mxu0
    %v2011 = vadd.f32 %v1934, %v2010
    %v2012 = vpop.f32.mrb[0].mxu0
    %2013 = vdwg.mxu0
    %2014 = vmatprep.subr.mxu0 0.0
    %v2015 = vand.u32 %v1097, 4294901760
    %v2016 = vsub.f32 %v1097, %v2015
    %v2017 = vand.u32 %v2016, 4294901760
    %2018 = vmatpush1.msra.mxu0 %v2017
    %2019 = vmatprep.subr.mxu0 0.0
    %v2020 = vand.u32 %v1098, 4294901760
    %v2021 = vsub.f32 %v1098, %v2020
    %v2022 = vand.u32 %v2021, 4294901760
    %2023 = vmatpush1.msra.mxu0 %v2022
    %2024 = vmatprep.subr.mxu0 0.0
    %v2025 = vand.u32 %v1099, 4294901760
    %v2026 = vsub.f32 %v1099, %v2025
    %v2027 = vand.u32 %v2026, 4294901760
    %2028 = vmatpush1.msra.mxu0 %v2027
    %2029 = vmatprep.subr.mxu0 0.0
    %v2030 = vand.u32 %v1100, 4294901760
    %v2031 = vsub.f32 %v1100, %v2030
    %v2032 = vand.u32 %v2031, 4294901760
    %2033 = vmatpush1.msra.mxu0 %v2032
    %2034 = vmatprep.subr.mxu0 0.0
    %2035 = vmatpush1.msra.mxu0 0.0
    %2036 = vmatprep.subr.mxu0 0.0
    %2037 = vmatpush1.msra.mxu0 0.0
    %2038 = vmatprep.subr.mxu0 0.0
    %2039 = vmatpush1.msra.mxu0 0.0
    %2040 = vmatprep.subr.mxu0 0.0
    %2041 = vmatpush1.msra.mxu0 0.0
    %2042 = vmatprep.subr.mxu0 0.0
    %2043 = vmatpush1.msra.mxu0 0.0
    %2044 = vmatprep.subr.mxu0 0.0
    %2045 = vmatpush1.msra.mxu0 0.0
    %2046 = vmatprep.subr.mxu0 0.0
    %2047 = vmatpush1.msra.mxu0 0.0
    %2048 = vmatprep.subr.mxu0 0.0
    %2049 = vmatpush1.msra.mxu0 0.0
    %2050 = vmatprep.subr.mxu0 0.0
    %2051 = vmatpush1.msra.mxu0 0.0
    %2052 = vmatprep.subr.mxu0 0.0
    %2053 = vmatpush1.msra.mxu0 0.0
    %2054 = vmatprep.subr.mxu0 0.0
    %2055 = vmatpush1.msra.mxu0 0.0
    %2056 = vmatprep.subr.mxu0 0.0
    %2057 = vmatpush1.msra.mxu0 0.0
    %2058 = vmatprep.subr.mxu0 0.0
    %2059 = vmatpush1.msra.mxu0 0.0
    %2060 = vmatprep.subr.mxu0 0.0
    %2061 = vmatpush1.msra.mxu0 0.0
    %2062 = vmatprep.subr.mxu0 0.0
    %2063 = vmatpush1.msra.mxu0 0.0
    %2064 = vmatprep.subr.mxu0 0.0
    %2065 = vmatpush1.msra.mxu0 0.0
    %2066 = vmatprep.subr.mxu0 0.0
    %2067 = vmatpush1.msra.mxu0 0.0
    %2068 = vmatprep.subr.mxu0 0.0
    %2069 = vmatpush1.msra.mxu0 0.0
    %2070 = vmatprep.subr.mxu0 0.0
    %2071 = vmatpush1.msra.mxu0 0.0
    %2072 = vmatprep.subr.mxu0 0.0
    %2073 = vmatpush1.msra.mxu0 0.0
    %2074 = vmatprep.subr.mxu0 0.0
    %2075 = vmatpush1.msra.mxu0 0.0
    %2076 = vmatprep.subr.mxu0 0.0
    %2077 = vmatpush1.msra.mxu0 0.0
    %2078 = vmatprep.subr.mxu0 0.0
    %2079 = vmatpush1.msra.mxu0 0.0
    %2080 = vmatprep.subr.mxu0 0.0
    %2081 = vmatpush1.msra.mxu0 0.0
    %2082 = vmatprep.subr.mxu0 0.0
    %2083 = vmatpush1.msra.mxu0 0.0
    %2084 = vmatprep.subr.mxu0 0.0
    %2085 = vmatpush1.msra.mxu0 0.0
    %2086 = vmatprep.subr.mxu0 0.0
    %2087 = vmatpush1.msra.mxu0 0.0
    %2088 = vmatprep.subr.mxu0 0.0
    %2089 = vmatpush1.msra.mxu0 0.0
    %2090 = vmatprep.mubr.f32.mxu0 0.0
    %v2091 = vand.u32 %v1685, 4294901760
    %2092 = vmatmul.mubr.f32.gmra.mrb[0].mxu0 %v2091
    %v2093 = vpop.f32.mrb[0].mxu0
    %v2094 = vadd.f32 %v2011, %v2093
    %v2095 = vpop.f32.mrb[0].mxu0
    %2096 = vdwg.mxu0
    %2097 = vmatprep.subr.mxu0 0.0
    %v2098 = vand.u32 %v1097, 4294901760
    %2099 = vmatpush1.msra.mxu0 %v2098
    %2100 = vmatprep.subr.mxu0 0.0
    %v2101 = vand.u32 %v1098, 4294901760
    %2102 = vmatpush1.msra.mxu0 %v2101
    %2103 = vmatprep.subr.mxu0 0.0
    %v2104 = vand.u32 %v1099, 4294901760
    %2105 = vmatpush1.msra.mxu0 %v2104
    %2106 = vmatprep.subr.mxu0 0.0
    %v2107 = vand.u32 %v1100, 4294901760
    %2108 = vmatpush1.msra.mxu0 %v2107
    %2109 = vmatprep.subr.mxu0 0.0
    %2110 = vmatpush1.msra.mxu0 0.0
    %2111 = vmatprep.subr.mxu0 0.0
    %2112 = vmatpush1.msra.mxu0 0.0
    %2113 = vmatprep.subr.mxu0 0.0
    %2114 = vmatpush1.msra.mxu0 0.0
    %2115 = vmatprep.subr.mxu0 0.0
    %2116 = vmatpush1.msra.mxu0 0.0
    %2117 = vmatprep.subr.mxu0 0.0
    %2118 = vmatpush1.msra.mxu0 0.0
    %2119 = vmatprep.subr.mxu0 0.0
    %2120 = vmatpush1.msra.mxu0 0.0
    %2121 = vmatprep.subr.mxu0 0.0
    %2122 = vmatpush1.msra.mxu0 0.0
    %2123 = vmatprep.subr.mxu0 0.0
    %2124 = vmatpush1.msra.mxu0 0.0
    %2125 = vmatprep.subr.mxu0 0.0
    %2126 = vmatpush1.msra.mxu0 0.0
    %2127 = vmatprep.subr.mxu0 0.0
    %2128 = vmatpush1.msra.mxu0 0.0
    %2129 = vmatprep.subr.mxu0 0.0
    %2130 = vmatpush1.msra.mxu0 0.0
    %2131 = vmatprep.subr.mxu0 0.0
    %2132 = vmatpush1.msra.mxu0 0.0
    %2133 = vmatprep.subr.mxu0 0.0
    %2134 = vmatpush1.msra.mxu0 0.0
    %2135 = vmatprep.subr.mxu0 0.0
    %2136 = vmatpush1.msra.mxu0 0.0
    %2137 = vmatprep.subr.mxu0 0.0
    %2138 = vmatpush1.msra.mxu0 0.0
    %2139 = vmatprep.subr.mxu0 0.0
    %2140 = vmatpush1.msra.mxu0 0.0
    %2141 = vmatprep.subr.mxu0 0.0
    %2142 = vmatpush1.msra.mxu0 0.0
    %2143 = vmatprep.subr.mxu0 0.0
    %2144 = vmatpush1.msra.mxu0 0.0
    %2145 = vmatprep.subr.mxu0 0.0
    %2146 = vmatpush1.msra.mxu0 0.0
    %2147 = vmatprep.subr.mxu0 0.0
    %2148 = vmatpush1.msra.mxu0 0.0
    %2149 = vmatprep.subr.mxu0 0.0
    %2150 = vmatpush1.msra.mxu0 0.0
    %2151 = vmatprep.subr.mxu0 0.0
    %2152 = vmatpush1.msra.mxu0 0.0
    %2153 = vmatprep.subr.mxu0 0.0
    %2154 = vmatpush1.msra.mxu0 0.0
    %2155 = vmatprep.subr.mxu0 0.0
    %2156 = vmatpush1.msra.mxu0 0.0
    %2157 = vmatprep.subr.mxu0 0.0
    %2158 = vmatpush1.msra.mxu0 0.0
    %2159 = vmatprep.subr.mxu0 0.0
    %2160 = vmatpush1.msra.mxu0 0.0
    %2161 = vmatprep.subr.mxu0 0.0
    %2162 = vmatpush1.msra.mxu0 0.0
    %2163 = vmatprep.subr.mxu0 0.0
    %2164 = vmatpush1.msra.mxu0 0.0
    %2165 = vmatprep.mubr.f32.mxu0 0.0
    %v2166 = vand.u32 %v1685, 4294901760
    %2167 = vmatmul.mubr.f32.gmra.mrb[0].mxu0 %v2166
    %v2168 = vpop.f32.mrb[0].mxu0
    %v2169 = vadd.f32 %v2094, %v2168
    %v2170 = vpop.f32.mrb[0].mxu0
    %2171 = vdwg.mxu0
    %v2173 = vrot.slane %v2169, 7
    %v2176 = vadd.f32 %v1095, %v2173
    %v2177 = vadd.f32 %v1096, %v2169
    %v2178 = vxor.u32 %v2176, 2147483648
    %v2179 = vxor.u32 %v2177, 2147483648
    %v2180 = vmul.f32 %v2178, 1.442695
    %v2181 = vpow.pop %v2180
    %v2182 = vmul.f32 %v2179, 1.442695
    %v2183 = vpow.pop %v2182
    %v2184 = vadd.f32 %v2181, 1.0
    %v2185 = vadd.f32 %v2183, 1.0
    %v2186 = vrcp.pop %v2184
    %v2187 = vmul.f32 1.0, %v2186
    %v2188 = vrcp.pop %v2185
    %v2189 = vmul.f32 1.0, %v2188
    %v2190 = vmul.f32 %v2187, 2.0
    %v2191 = vmul.f32 %v2189, 2.0
    %v2192 = vsub.f32 %v2190, 1.0
    %v2193 = vsub.f32 %v2191, 1.0
    %v2196 = vrot.slane %v1643, 7
    %v2197 = vrot.slane %v1644, 7
    %v2200 = vmul.f32 %v2187, %v2196
    %v2201 = vmul.f32 %v2189, %v2197
    %2204 = vrot.lane.b32.xlu0 %v2192, 64
    %v2205 = vpop.permute.xlu0 %2204
    %2206 = vrot.lane.b32.xlu0 %v2193, 64
    %v2207 = vpop.permute.xlu0 %2206
    %v2210 = vmul.f32 %v2187, %v2205
    %v2211 = vmul.f32 %v2189, %v2207
    %2214 = vrot.lane.b32.xlu0 %v2210, 32
    %v2215 = vpop.permute.xlu0 %2214
    %2216 = vrot.lane.b32.xlu0 %v2211, 32
    %v2217 = vpop.permute.xlu0 %2216
    %v2220 = vadd.f32 %v2200, %v2215
    %v2221 = vadd.f32 %v2201, %v2217
    %v2222 = vtanh.pop %v2220
    %v2223 = vtanh.pop %v2221
    %2226 = vrot.lane.b32.xlu0 %v2222, 64
    %v2227 = vpop.permute.xlu0 %2226
    %2228 = vrot.lane.b32.xlu0 %v2223, 64
    %v2229 = vpop.permute.xlu0 %2228
    %v2232 = vmul.f32 %v2187, %v2227
    %v2233 = vmul.f32 %v2189, %v2229
    %v2234 = vmul.f32 %v2232, %v1663
    %v2235 = vmul.f32 %v2233, %v1663
    %v2238 = vrot.slane %v2235, 7
    %vm2239 = vcmask 1042434
    %v2240 = vsel %vm2239, %v2238, %v2234
    %2241 = vrot.lane.b32.xlu0 %v2240, 32
    %v2242 = vpop.permute.xlu0 %2241
    %vm2244 = vcmask 256001
    %v2245 = vsel %vm2244, %v2242, 0.0
    %2246 = vadd.xlane.f32.xlu0 %v2245
    %v2247 = vpop.xlane.xlu0 %2246
    %v2250 = vrot.slane %v2232, 1
    %v2251 = vsel %vm1670, %v2233, %v2250
    %2252 = vrot.lane.b32.xlu0 %v2251, 32
    %v2253 = vpop.permute.xlu0 %2252
    %v2254 = vsel %vm1104, %v2253, 0
    %2256 = vmatprep.subr.mxu0 0.0
    %v2257 = vand.u32 %v1097, 4294901760
    %2258 = vmatpush1.msra.mxu0 %v2257
    %2259 = vmatprep.subr.mxu0 0.0
    %v2260 = vand.u32 %v1098, 4294901760
    %2261 = vmatpush1.msra.mxu0 %v2260
    %2262 = vmatprep.subr.mxu0 0.0
    %v2263 = vand.u32 %v1099, 4294901760
    %2264 = vmatpush1.msra.mxu0 %v2263
    %2265 = vmatprep.subr.mxu0 0.0
    %v2266 = vand.u32 %v1100, 4294901760
    %2267 = vmatpush1.msra.mxu0 %v2266
    %2268 = vmatprep.subr.mxu0 0.0
    %2269 = vmatpush1.msra.mxu0 0.0
    %2270 = vmatprep.subr.mxu0 0.0
    %2271 = vmatpush1.msra.mxu0 0.0
    %2272 = vmatprep.subr.mxu0 0.0
    %2273 = vmatpush1.msra.mxu0 0.0
    %2274 = vmatprep.subr.mxu0 0.0
    %2275 = vmatpush1.msra.mxu0 0.0
    %2276 = vmatprep.subr.mxu0 0.0
    %2277 = vmatpush1.msra.mxu0 0.0
    %2278 = vmatprep.subr.mxu0 0.0
    %2279 = vmatpush1.msra.mxu0 0.0
    %2280 = vmatprep.subr.mxu0 0.0
    %2281 = vmatpush1.msra.mxu0 0.0
    %2282 = vmatprep.subr.mxu0 0.0
    %2283 = vmatpush1.msra.mxu0 0.0
    %2284 = vmatprep.subr.mxu0 0.0
    %2285 = vmatpush1.msra.mxu0 0.0
    %2286 = vmatprep.subr.mxu0 0.0
    %2287 = vmatpush1.msra.mxu0 0.0
    %2288 = vmatprep.subr.mxu0 0.0
    %2289 = vmatpush1.msra.mxu0 0.0
    %2290 = vmatprep.subr.mxu0 0.0
    %2291 = vmatpush1.msra.mxu0 0.0
    %2292 = vmatprep.subr.mxu0 0.0
    %2293 = vmatpush1.msra.mxu0 0.0
    %2294 = vmatprep.subr.mxu0 0.0
    %2295 = vmatpush1.msra.mxu0 0.0
    %2296 = vmatprep.subr.mxu0 0.0
    %2297 = vmatpush1.msra.mxu0 0.0
    %2298 = vmatprep.subr.mxu0 0.0
    %2299 = vmatpush1.msra.mxu0 0.0
    %2300 = vmatprep.subr.mxu0 0.0
    %2301 = vmatpush1.msra.mxu0 0.0
    %2302 = vmatprep.subr.mxu0 0.0
    %2303 = vmatpush1.msra.mxu0 0.0
    %2304 = vmatprep.subr.mxu0 0.0
    %2305 = vmatpush1.msra.mxu0 0.0
    %2306 = vmatprep.subr.mxu0 0.0
    %2307 = vmatpush1.msra.mxu0 0.0
    %2308 = vmatprep.subr.mxu0 0.0
    %2309 = vmatpush1.msra.mxu0 0.0
    %2310 = vmatprep.subr.mxu0 0.0
    %2311 = vmatpush1.msra.mxu0 0.0
    %2312 = vmatprep.subr.mxu0 0.0
    %2313 = vmatpush1.msra.mxu0 0.0
    %2314 = vmatprep.subr.mxu0 0.0
    %2315 = vmatpush1.msra.mxu0 0.0
    %2316 = vmatprep.subr.mxu0 0.0
    %2317 = vmatpush1.msra.mxu0 0.0
    %2318 = vmatprep.subr.mxu0 0.0
    %2319 = vmatpush1.msra.mxu0 0.0
    %2320 = vmatprep.subr.mxu0 0.0
    %2321 = vmatpush1.msra.mxu0 0.0
    %2322 = vmatprep.subr.mxu0 0.0
    %2323 = vmatpush1.msra.mxu0 0.0
    %2324 = vmatprep.mubr.f32.mxu0 0.0
    %v2325 = vand.u32 %v2254, 4294901760
    %v2326 = vsub.f32 %v2254, %v2325
    %v2327 = vand.u32 %v2326, 4294901760
    %v2328 = vsub.f32 %v2326, %v2327
    %v2329 = vand.u32 %v2328, 4294901760
    %2330 = vmatmul.mubr.f32.gmra.mrb[0].mxu0 %v2329
    %v2331 = vpop.f32.mrb[0].mxu0
    %v2332 = vadd.f32 0.0, %v2331
    %v2333 = vpop.f32.mrb[0].mxu0
    %2334 = vdwg.mxu0
    %2335 = vmatprep.subr.mxu0 0.0
    %v2336 = vand.u32 %v1097, 4294901760
    %v2337 = vsub.f32 %v1097, %v2336
    %v2338 = vand.u32 %v2337, 4294901760
    %v2339 = vsub.f32 %v2337, %v2338
    %v2340 = vand.u32 %v2339, 4294901760
    %2341 = vmatpush1.msra.mxu0 %v2340
    %2342 = vmatprep.subr.mxu0 0.0
    %v2343 = vand.u32 %v1098, 4294901760
    %v2344 = vsub.f32 %v1098, %v2343
    %v2345 = vand.u32 %v2344, 4294901760
    %v2346 = vsub.f32 %v2344, %v2345
    %v2347 = vand.u32 %v2346, 4294901760
    %2348 = vmatpush1.msra.mxu0 %v2347
    %2349 = vmatprep.subr.mxu0 0.0
    %v2350 = vand.u32 %v1099, 4294901760
    %v2351 = vsub.f32 %v1099, %v2350
    %v2352 = vand.u32 %v2351, 4294901760
    %v2353 = vsub.f32 %v2351, %v2352
    %v2354 = vand.u32 %v2353, 4294901760
    %2355 = vmatpush1.msra.mxu0 %v2354
    %2356 = vmatprep.subr.mxu0 0.0
    %v2357 = vand.u32 %v1100, 4294901760
    %v2358 = vsub.f32 %v1100, %v2357
    %v2359 = vand.u32 %v2358, 4294901760
    %v2360 = vsub.f32 %v2358, %v2359
    %v2361 = vand.u32 %v2360, 4294901760
    %2362 = vmatpush1.msra.mxu0 %v2361
    %2363 = vmatprep.subr.mxu0 0.0
    %2364 = vmatpush1.msra.mxu0 0.0
    %2365 = vmatprep.subr.mxu0 0.0
    %2366 = vmatpush1.msra.mxu0 0.0
    %2367 = vmatprep.subr.mxu0 0.0
    %2368 = vmatpush1.msra.mxu0 0.0
    %2369 = vmatprep.subr.mxu0 0.0
    %2370 = vmatpush1.msra.mxu0 0.0
    %2371 = vmatprep.subr.mxu0 0.0
    %2372 = vmatpush1.msra.mxu0 0.0
    %2373 = vmatprep.subr.mxu0 0.0
    %2374 = vmatpush1.msra.mxu0 0.0
    %2375 = vmatprep.subr.mxu0 0.0
    %2376 = vmatpush1.msra.mxu0 0.0
    %2377 = vmatprep.subr.mxu0 0.0
    %2378 = vmatpush1.msra.mxu0 0.0
    %2379 = vmatprep.subr.mxu0 0.0
    %2380 = vmatpush1.msra.mxu0 0.0
    %2381 = vmatprep.subr.mxu0 0.0
    %2382 = vmatpush1.msra.mxu0 0.0
    %2383 = vmatprep.subr.mxu0 0.0
    %2384 = vmatpush1.msra.mxu0 0.0
    %2385 = vmatprep.subr.mxu0 0.0
    %2386 = vmatpush1.msra.mxu0 0.0
    %2387 = vmatprep.subr.mxu0 0.0
    %2388 = vmatpush1.msra.mxu0 0.0
    %2389 = vmatprep.subr.mxu0 0.0
    %2390 = vmatpush1.msra.mxu0 0.0
    %2391 = vmatprep.subr.mxu0 0.0
    %2392 = vmatpush1.msra.mxu0 0.0
    %2393 = vmatprep.subr.mxu0 0.0
    %2394 = vmatpush1.msra.mxu0 0.0
    %2395 = vmatprep.subr.mxu0 0.0
    %2396 = vmatpush1.msra.mxu0 0.0
    %2397 = vmatprep.subr.mxu0 0.0
    %2398 = vmatpush1.msra.mxu0 0.0
    %2399 = vmatprep.subr.mxu0 0.0
    %2400 = vmatpush1.msra.mxu0 0.0
    %2401 = vmatprep.subr.mxu0 0.0
    %2402 = vmatpush1.msra.mxu0 0.0
    %2403 = vmatprep.subr.mxu0 0.0
    %2404 = vmatpush1.msra.mxu0 0.0
    %2405 = vmatprep.subr.mxu0 0.0
    %2406 = vmatpush1.msra.mxu0 0.0
    %2407 = vmatprep.subr.mxu0 0.0
    %2408 = vmatpush1.msra.mxu0 0.0
    %2409 = vmatprep.subr.mxu0 0.0
    %2410 = vmatpush1.msra.mxu0 0.0
    %2411 = vmatprep.subr.mxu0 0.0
    %2412 = vmatpush1.msra.mxu0 0.0
    %2413 = vmatprep.subr.mxu0 0.0
    %2414 = vmatpush1.msra.mxu0 0.0
    %2415 = vmatprep.subr.mxu0 0.0
    %2416 = vmatpush1.msra.mxu0 0.0
    %2417 = vmatprep.subr.mxu0 0.0
    %2418 = vmatpush1.msra.mxu0 0.0
    %2419 = vmatprep.mubr.f32.mxu0 0.0
    %v2420 = vand.u32 %v2254, 4294901760
    %2421 = vmatmul.mubr.f32.gmra.mrb[0].mxu0 %v2420
    %v2422 = vpop.f32.mrb[0].mxu0
    %v2423 = vadd.f32 %v2332, %v2422
    %v2424 = vpop.f32.mrb[0].mxu0
    %2425 = vdwg.mxu0
    %2426 = vmatprep.subr.mxu0 0.0
    %v2427 = vand.u32 %v1097, 4294901760
    %v2428 = vsub.f32 %v1097, %v2427
    %2429 = vmatpush1.msra.mxu0 %v2428
    %2430 = vmatprep.subr.mxu0 0.0
    %v2431 = vand.u32 %v1098, 4294901760
    %v2432 = vsub.f32 %v1098, %v2431
    %2433 = vmatpush1.msra.mxu0 %v2432
    %2434 = vmatprep.subr.mxu0 0.0
    %v2435 = vand.u32 %v1099, 4294901760
    %v2436 = vsub.f32 %v1099, %v2435
    %2437 = vmatpush1.msra.mxu0 %v2436
    %2438 = vmatprep.subr.mxu0 0.0
    %v2439 = vand.u32 %v1100, 4294901760
    %v2440 = vsub.f32 %v1100, %v2439
    %2441 = vmatpush1.msra.mxu0 %v2440
    %2442 = vmatprep.subr.mxu0 0.0
    %2443 = vmatpush1.msra.mxu0 0.0
    %2444 = vmatprep.subr.mxu0 0.0
    %2445 = vmatpush1.msra.mxu0 0.0
    %2446 = vmatprep.subr.mxu0 0.0
    %2447 = vmatpush1.msra.mxu0 0.0
    %2448 = vmatprep.subr.mxu0 0.0
    %2449 = vmatpush1.msra.mxu0 0.0
    %2450 = vmatprep.subr.mxu0 0.0
    %2451 = vmatpush1.msra.mxu0 0.0
    %2452 = vmatprep.subr.mxu0 0.0
    %2453 = vmatpush1.msra.mxu0 0.0
    %2454 = vmatprep.subr.mxu0 0.0
    %2455 = vmatpush1.msra.mxu0 0.0
    %2456 = vmatprep.subr.mxu0 0.0
    %2457 = vmatpush1.msra.mxu0 0.0
    %2458 = vmatprep.subr.mxu0 0.0
    %2459 = vmatpush1.msra.mxu0 0.0
    %2460 = vmatprep.subr.mxu0 0.0
    %2461 = vmatpush1.msra.mxu0 0.0
    %2462 = vmatprep.subr.mxu0 0.0
    %2463 = vmatpush1.msra.mxu0 0.0
    %2464 = vmatprep.subr.mxu0 0.0
    %2465 = vmatpush1.msra.mxu0 0.0
    %2466 = vmatprep.subr.mxu0 0.0
    %2467 = vmatpush1.msra.mxu0 0.0
    %2468 = vmatprep.subr.mxu0 0.0
    %2469 = vmatpush1.msra.mxu0 0.0
    %2470 = vmatprep.subr.mxu0 0.0
    %2471 = vmatpush1.msra.mxu0 0.0
    %2472 = vmatprep.subr.mxu0 0.0
    %2473 = vmatpush1.msra.mxu0 0.0
    %2474 = vmatprep.subr.mxu0 0.0
    %2475 = vmatpush1.msra.mxu0 0.0
    %2476 = vmatprep.subr.mxu0 0.0
    %2477 = vmatpush1.msra.mxu0 0.0
    %2478 = vmatprep.subr.mxu0 0.0
    %2479 = vmatpush1.msra.mxu0 0.0
    %2480 = vmatprep.subr.mxu0 0.0
    %2481 = vmatpush1.msra.mxu0 0.0
    %2482 = vmatprep.subr.mxu0 0.0
    %2483 = vmatpush1.msra.mxu0 0.0
    %2484 = vmatprep.subr.mxu0 0.0
    %2485 = vmatpush1.msra.mxu0 0.0
    %2486 = vmatprep.subr.mxu0 0.0
    %2487 = vmatpush1.msra.mxu0 0.0
    %2488 = vmatprep.subr.mxu0 0.0
    %2489 = vmatpush1.msra.mxu0 0.0
    %2490 = vmatprep.subr.mxu0 0.0
    %2491 = vmatpush1.msra.mxu0 0.0
    %2492 = vmatprep.subr.mxu0 0.0
    %2493 = vmatpush1.msra.mxu0 0.0
    %2494 = vmatprep.subr.mxu0 0.0
    %2495 = vmatpush1.msra.mxu0 0.0
    %2496 = vmatprep.subr.mxu0 0.0
    %2497 = vmatpush1.msra.mxu0 0.0
    %2498 = vmatprep.mubr.f32.mxu0 0.0
    %v2499 = vand.u32 %v2254, 4294901760
    %v2500 = vsub.f32 %v2254, %v2499
    %2501 = vmatmul.mubr.f32.gmra.mrb[0].mxu0 %v2500
    %v2502 = vpop.f32.mrb[0].mxu0
    %v2503 = vadd.f32 %v2423, %v2502
    %v2504 = vpop.f32.mrb[0].mxu0
    %2505 = vdwg.mxu0
    %2506 = vmatprep.subr.mxu0 0.0
    %v2507 = vand.u32 %v1097, 4294901760
    %2508 = vmatpush1.msra.mxu0 %v2507
    %2509 = vmatprep.subr.mxu0 0.0
    %v2510 = vand.u32 %v1098, 4294901760
    %2511 = vmatpush1.msra.mxu0 %v2510
    %2512 = vmatprep.subr.mxu0 0.0
    %v2513 = vand.u32 %v1099, 4294901760
    %2514 = vmatpush1.msra.mxu0 %v2513
    %2515 = vmatprep.subr.mxu0 0.0
    %v2516 = vand.u32 %v1100, 4294901760
    %2517 = vmatpush1.msra.mxu0 %v2516
    %2518 = vmatprep.subr.mxu0 0.0
    %2519 = vmatpush1.msra.mxu0 0.0
    %2520 = vmatprep.subr.mxu0 0.0
    %2521 = vmatpush1.msra.mxu0 0.0
    %2522 = vmatprep.subr.mxu0 0.0
    %2523 = vmatpush1.msra.mxu0 0.0
    %2524 = vmatprep.subr.mxu0 0.0
    %2525 = vmatpush1.msra.mxu0 0.0
    %2526 = vmatprep.subr.mxu0 0.0
    %2527 = vmatpush1.msra.mxu0 0.0
    %2528 = vmatprep.subr.mxu0 0.0
    %2529 = vmatpush1.msra.mxu0 0.0
    %2530 = vmatprep.subr.mxu0 0.0
    %2531 = vmatpush1.msra.mxu0 0.0
    %2532 = vmatprep.subr.mxu0 0.0
    %2533 = vmatpush1.msra.mxu0 0.0
    %2534 = vmatprep.subr.mxu0 0.0
    %2535 = vmatpush1.msra.mxu0 0.0
    %2536 = vmatprep.subr.mxu0 0.0
    %2537 = vmatpush1.msra.mxu0 0.0
    %2538 = vmatprep.subr.mxu0 0.0
    %2539 = vmatpush1.msra.mxu0 0.0
    %2540 = vmatprep.subr.mxu0 0.0
    %2541 = vmatpush1.msra.mxu0 0.0
    %2542 = vmatprep.subr.mxu0 0.0
    %2543 = vmatpush1.msra.mxu0 0.0
    %2544 = vmatprep.subr.mxu0 0.0
    %2545 = vmatpush1.msra.mxu0 0.0
    %2546 = vmatprep.subr.mxu0 0.0
    %2547 = vmatpush1.msra.mxu0 0.0
    %2548 = vmatprep.subr.mxu0 0.0
    %2549 = vmatpush1.msra.mxu0 0.0
    %2550 = vmatprep.subr.mxu0 0.0
    %2551 = vmatpush1.msra.mxu0 0.0
    %2552 = vmatprep.subr.mxu0 0.0
    %2553 = vmatpush1.msra.mxu0 0.0
    %2554 = vmatprep.subr.mxu0 0.0
    %2555 = vmatpush1.msra.mxu0 0.0
    %2556 = vmatprep.subr.mxu0 0.0
    %2557 = vmatpush1.msra.mxu0 0.0
    %2558 = vmatprep.subr.mxu0 0.0
    %2559 = vmatpush1.msra.mxu0 0.0
    %2560 = vmatprep.subr.mxu0 0.0
    %2561 = vmatpush1.msra.mxu0 0.0
    %2562 = vmatprep.subr.mxu0 0.0
    %2563 = vmatpush1.msra.mxu0 0.0
    %2564 = vmatprep.subr.mxu0 0.0
    %2565 = vmatpush1.msra.mxu0 0.0
    %2566 = vmatprep.subr.mxu0 0.0
    %2567 = vmatpush1.msra.mxu0 0.0
    %2568 = vmatprep.subr.mxu0 0.0
    %2569 = vmatpush1.msra.mxu0 0.0
    %2570 = vmatprep.subr.mxu0 0.0
    %2571 = vmatpush1.msra.mxu0 0.0
    %2572 = vmatprep.subr.mxu0 0.0
    %2573 = vmatpush1.msra.mxu0 0.0
    %2574 = vmatprep.mubr.f32.mxu0 0.0
    %v2575 = vand.u32 %v2254, 4294901760
    %v2576 = vsub.f32 %v2254, %v2575
    %v2577 = vand.u32 %v2576, 4294901760
    %2578 = vmatmul.mubr.f32.gmra.mrb[0].mxu0 %v2577
    %v2579 = vpop.f32.mrb[0].mxu0
    %v2580 = vadd.f32 %v2503, %v2579
    %v2581 = vpop.f32.mrb[0].mxu0
    %2582 = vdwg.mxu0
    %2583 = vmatprep.subr.mxu0 0.0
    %v2584 = vand.u32 %v1097, 4294901760
    %v2585 = vsub.f32 %v1097, %v2584
    %v2586 = vand.u32 %v2585, 4294901760
    %2587 = vmatpush1.msra.mxu0 %v2586
    %2588 = vmatprep.subr.mxu0 0.0
    %v2589 = vand.u32 %v1098, 4294901760
    %v2590 = vsub.f32 %v1098, %v2589
    %v2591 = vand.u32 %v2590, 4294901760
    %2592 = vmatpush1.msra.mxu0 %v2591
    %2593 = vmatprep.subr.mxu0 0.0
    %v2594 = vand.u32 %v1099, 4294901760
    %v2595 = vsub.f32 %v1099, %v2594
    %v2596 = vand.u32 %v2595, 4294901760
    %2597 = vmatpush1.msra.mxu0 %v2596
    %2598 = vmatprep.subr.mxu0 0.0
    %v2599 = vand.u32 %v1100, 4294901760
    %v2600 = vsub.f32 %v1100, %v2599
    %v2601 = vand.u32 %v2600, 4294901760
    %2602 = vmatpush1.msra.mxu0 %v2601
    %2603 = vmatprep.subr.mxu0 0.0
    %2604 = vmatpush1.msra.mxu0 0.0
    %2605 = vmatprep.subr.mxu0 0.0
    %2606 = vmatpush1.msra.mxu0 0.0
    %2607 = vmatprep.subr.mxu0 0.0
    %2608 = vmatpush1.msra.mxu0 0.0
    %2609 = vmatprep.subr.mxu0 0.0
    %2610 = vmatpush1.msra.mxu0 0.0
    %2611 = vmatprep.subr.mxu0 0.0
    %2612 = vmatpush1.msra.mxu0 0.0
    %2613 = vmatprep.subr.mxu0 0.0
    %2614 = vmatpush1.msra.mxu0 0.0
    %2615 = vmatprep.subr.mxu0 0.0
    %2616 = vmatpush1.msra.mxu0 0.0
    %2617 = vmatprep.subr.mxu0 0.0
    %2618 = vmatpush1.msra.mxu0 0.0
    %2619 = vmatprep.subr.mxu0 0.0
    %2620 = vmatpush1.msra.mxu0 0.0
    %2621 = vmatprep.subr.mxu0 0.0
    %2622 = vmatpush1.msra.mxu0 0.0
    %2623 = vmatprep.subr.mxu0 0.0
    %2624 = vmatpush1.msra.mxu0 0.0
    %2625 = vmatprep.subr.mxu0 0.0
    %2626 = vmatpush1.msra.mxu0 0.0
    %2627 = vmatprep.subr.mxu0 0.0
    %2628 = vmatpush1.msra.mxu0 0.0
    %2629 = vmatprep.subr.mxu0 0.0
    %2630 = vmatpush1.msra.mxu0 0.0
    %2631 = vmatprep.subr.mxu0 0.0
    %2632 = vmatpush1.msra.mxu0 0.0
    %2633 = vmatprep.subr.mxu0 0.0
    %2634 = vmatpush1.msra.mxu0 0.0
    %2635 = vmatprep.subr.mxu0 0.0
    %2636 = vmatpush1.msra.mxu0 0.0
    %2637 = vmatprep.subr.mxu0 0.0
    %2638 = vmatpush1.msra.mxu0 0.0
    %2639 = vmatprep.subr.mxu0 0.0
    %2640 = vmatpush1.msra.mxu0 0.0
    %2641 = vmatprep.subr.mxu0 0.0
    %2642 = vmatpush1.msra.mxu0 0.0
    %2643 = vmatprep.subr.mxu0 0.0
    %2644 = vmatpush1.msra.mxu0 0.0
    %2645 = vmatprep.subr.mxu0 0.0
    %2646 = vmatpush1.msra.mxu0 0.0
    %2647 = vmatprep.subr.mxu0 0.0
    %2648 = vmatpush1.msra.mxu0 0.0
    %2649 = vmatprep.subr.mxu0 0.0
    %2650 = vmatpush1.msra.mxu0 0.0
    %2651 = vmatprep.subr.mxu0 0.0
    %2652 = vmatpush1.msra.mxu0 0.0
    %2653 = vmatprep.subr.mxu0 0.0
    %2654 = vmatpush1.msra.mxu0 0.0
    %2655 = vmatprep.subr.mxu0 0.0
    %2656 = vmatpush1.msra.mxu0 0.0
    %2657 = vmatprep.subr.mxu0 0.0
    %2658 = vmatpush1.msra.mxu0 0.0
    %2659 = vmatprep.mubr.f32.mxu0 0.0
    %v2660 = vand.u32 %v2254, 4294901760
    %2661 = vmatmul.mubr.f32.gmra.mrb[0].mxu0 %v2660
    %v2662 = vpop.f32.mrb[0].mxu0
    %v2663 = vadd.f32 %v2580, %v2662
    %v2664 = vpop.f32.mrb[0].mxu0
    %2665 = vdwg.mxu0
    %2666 = vmatprep.subr.mxu0 0.0
    %v2667 = vand.u32 %v1097, 4294901760
    %2668 = vmatpush1.msra.mxu0 %v2667
    %2669 = vmatprep.subr.mxu0 0.0
    %v2670 = vand.u32 %v1098, 4294901760
    %2671 = vmatpush1.msra.mxu0 %v2670
    %2672 = vmatprep.subr.mxu0 0.0
    %v2673 = vand.u32 %v1099, 4294901760
    %2674 = vmatpush1.msra.mxu0 %v2673
    %2675 = vmatprep.subr.mxu0 0.0
    %v2676 = vand.u32 %v1100, 4294901760
    %2677 = vmatpush1.msra.mxu0 %v2676
    %2678 = vmatprep.subr.mxu0 0.0
    %2679 = vmatpush1.msra.mxu0 0.0
    %2680 = vmatprep.subr.mxu0 0.0
    %2681 = vmatpush1.msra.mxu0 0.0
    %2682 = vmatprep.subr.mxu0 0.0
    %2683 = vmatpush1.msra.mxu0 0.0
    %2684 = vmatprep.subr.mxu0 0.0
    %2685 = vmatpush1.msra.mxu0 0.0
    %2686 = vmatprep.subr.mxu0 0.0
    %2687 = vmatpush1.msra.mxu0 0.0
    %2688 = vmatprep.subr.mxu0 0.0
    %2689 = vmatpush1.msra.mxu0 0.0
    %2690 = vmatprep.subr.mxu0 0.0
    %2691 = vmatpush1.msra.mxu0 0.0
    %2692 = vmatprep.subr.mxu0 0.0
    %2693 = vmatpush1.msra.mxu0 0.0
    %2694 = vmatprep.subr.mxu0 0.0
    %2695 = vmatpush1.msra.mxu0 0.0
    %2696 = vmatprep.subr.mxu0 0.0
    %2697 = vmatpush1.msra.mxu0 0.0
    %2698 = vmatprep.subr.mxu0 0.0
    %2699 = vmatpush1.msra.mxu0 0.0
    %2700 = vmatprep.subr.mxu0 0.0
    %2701 = vmatpush1.msra.mxu0 0.0
    %2702 = vmatprep.subr.mxu0 0.0
    %2703 = vmatpush1.msra.mxu0 0.0
    %2704 = vmatprep.subr.mxu0 0.0
    %2705 = vmatpush1.msra.mxu0 0.0
    %2706 = vmatprep.subr.mxu0 0.0
    %2707 = vmatpush1.msra.mxu0 0.0
    %2708 = vmatprep.subr.mxu0 0.0
    %2709 = vmatpush1.msra.mxu0 0.0
    %2710 = vmatprep.subr.mxu0 0.0
    %2711 = vmatpush1.msra.mxu0 0.0
    %2712 = vmatprep.subr.mxu0 0.0
    %2713 = vmatpush1.msra.mxu0 0.0
    %2714 = vmatprep.subr.mxu0 0.0
    %2715 = vmatpush1.msra.mxu0 0.0
    %2716 = vmatprep.subr.mxu0 0.0
    %2717 = vmatpush1.msra.mxu0 0.0
    %2718 = vmatprep.subr.mxu0 0.0
    %2719 = vmatpush1.msra.mxu0 0.0
    %2720 = vmatprep.subr.mxu0 0.0
    %2721 = vmatpush1.msra.mxu0 0.0
    %2722 = vmatprep.subr.mxu0 0.0
    %2723 = vmatpush1.msra.mxu0 0.0
    %2724 = vmatprep.subr.mxu0 0.0
    %2725 = vmatpush1.msra.mxu0 0.0
    %2726 = vmatprep.subr.mxu0 0.0
    %2727 = vmatpush1.msra.mxu0 0.0
    %2728 = vmatprep.subr.mxu0 0.0
    %2729 = vmatpush1.msra.mxu0 0.0
    %2730 = vmatprep.subr.mxu0 0.0
    %2731 = vmatpush1.msra.mxu0 0.0
    %2732 = vmatprep.subr.mxu0 0.0
    %2733 = vmatpush1.msra.mxu0 0.0
    %2734 = vmatprep.mubr.f32.mxu0 0.0
    %v2735 = vand.u32 %v2254, 4294901760
    %2736 = vmatmul.mubr.f32.gmra.mrb[0].mxu0 %v2735
    %v2737 = vpop.f32.mrb[0].mxu0
    %v2738 = vadd.f32 %v2663, %v2737
    %v2739 = vpop.f32.mrb[0].mxu0
    %2740 = vdwg.mxu0
    %v2742 = vrot.slane %v2738, 6
    %v2743 = vrot.slane %v2738, 7
    %v2746 = vadd.f32 %v1095, %v2742
    %v2747 = vadd.f32 %v1096, %v2743
    %v2748 = vxor.u32 %v2746, 2147483648
    %v2749 = vxor.u32 %v2747, 2147483648
    %v2750 = vmul.f32 %v2748, 1.442695
    %v2751 = vpow.pop %v2750
    %v2752 = vmul.f32 %v2749, 1.442695
    %v2753 = vpow.pop %v2752
    %v2754 = vadd.f32 %v2751, 1.0
    %v2755 = vadd.f32 %v2753, 1.0
    %v2756 = vrcp.pop %v2754
    %v2757 = vmul.f32 1.0, %v2756
    %v2758 = vrcp.pop %v2755
    %v2759 = vmul.f32 1.0, %v2758
    %v2760 = vmul.f32 %v2757, 2.0
    %v2761 = vmul.f32 %v2759, 2.0
    %v2762 = vsub.f32 %v2760, 1.0
    %v2763 = vsub.f32 %v2761, 1.0
    %v2766 = vrot.slane %v2220, 7
    %v2767 = vrot.slane %v2221, 7
    %v2770 = vmul.f32 %v2757, %v2766
    %v2771 = vmul.f32 %v2759, %v2767
    %2774 = vrot.lane.b32.xlu0 %v2762, 64
    %v2775 = vpop.permute.xlu0 %2774
    %2776 = vrot.lane.b32.xlu0 %v2763, 64
    %v2777 = vpop.permute.xlu0 %2776
    %v2780 = vmul.f32 %v2757, %v2775
    %v2781 = vmul.f32 %v2759, %v2777
    %2784 = vrot.lane.b32.xlu0 %v2780, 32
    %v2785 = vpop.permute.xlu0 %2784
    %2786 = vrot.lane.b32.xlu0 %v2781, 32
    %v2787 = vpop.permute.xlu0 %2786
    %v2790 = vadd.f32 %v2770, %v2785
    %v2791 = vadd.f32 %v2771, %v2787
    %v2792 = vtanh.pop %v2790
    %v2793 = vtanh.pop %v2791
    %2796 = vrot.lane.b32.xlu0 %v2792, 64
    %v2797 = vpop.permute.xlu0 %2796
    %2798 = vrot.lane.b32.xlu0 %v2793, 64
    %v2799 = vpop.permute.xlu0 %2798
    %v2802 = vmul.f32 %v2757, %v2797
    %v2803 = vmul.f32 %v2759, %v2799
    %v2804 = vmul.f32 %v2802, %v1663
    %v2805 = vmul.f32 %v2803, %v1663
    %v2808 = vrot.slane %v2805, 7
    %vm2809 = vcmask 1043459
    %v2810 = vsel %vm2809, %v2808, %v2804
    %2811 = vrot.lane.b32.xlu0 %v2810, 32
    %v2812 = vpop.permute.xlu0 %2811
    %vm2814 = vcmask 257026
    %v2815 = vsel %vm2814, %v2812, 0.0
    %2816 = vadd.xlane.f32.xlu0 %v2815
    %v2817 = vpop.xlane.xlu0 %2816
    %v2820 = vrot.slane %v2802, 2
    %v2821 = vrot.slane %v2803, 1
    %v2822 = vsel %vm1670, %v2821, %v2820
    %2823 = vrot.lane.b32.xlu0 %v2822, 32
    %v2824 = vpop.permute.xlu0 %2823
    %v2825 = vsel %vm1104, %v2824, 0
    %2827 = vmatprep.subr.mxu0 0.0
    %v2828 = vand.u32 %v1097, 4294901760
    %2829 = vmatpush1.msra.mxu0 %v2828
    %2830 = vmatprep.subr.mxu0 0.0
    %v2831 = vand.u32 %v1098, 4294901760
    %2832 = vmatpush1.msra.mxu0 %v2831
    %2833 = vmatprep.subr.mxu0 0.0
    %v2834 = vand.u32 %v1099, 4294901760
    %2835 = vmatpush1.msra.mxu0 %v2834
    %2836 = vmatprep.subr.mxu0 0.0
    %v2837 = vand.u32 %v1100, 4294901760
    %2838 = vmatpush1.msra.mxu0 %v2837
    %2839 = vmatprep.subr.mxu0 0.0
    %2840 = vmatpush1.msra.mxu0 0.0
    %2841 = vmatprep.subr.mxu0 0.0
    %2842 = vmatpush1.msra.mxu0 0.0
    %2843 = vmatprep.subr.mxu0 0.0
    %2844 = vmatpush1.msra.mxu0 0.0
    %2845 = vmatprep.subr.mxu0 0.0
    %2846 = vmatpush1.msra.mxu0 0.0
    %2847 = vmatprep.subr.mxu0 0.0
    %2848 = vmatpush1.msra.mxu0 0.0
    %2849 = vmatprep.subr.mxu0 0.0
    %2850 = vmatpush1.msra.mxu0 0.0
    %2851 = vmatprep.subr.mxu0 0.0
    %2852 = vmatpush1.msra.mxu0 0.0
    %2853 = vmatprep.subr.mxu0 0.0
    %2854 = vmatpush1.msra.mxu0 0.0
    %2855 = vmatprep.subr.mxu0 0.0
    %2856 = vmatpush1.msra.mxu0 0.0
    %2857 = vmatprep.subr.mxu0 0.0
    %2858 = vmatpush1.msra.mxu0 0.0
    %2859 = vmatprep.subr.mxu0 0.0
    %2860 = vmatpush1.msra.mxu0 0.0
    %2861 = vmatprep.subr.mxu0 0.0
    %2862 = vmatpush1.msra.mxu0 0.0
    %2863 = vmatprep.subr.mxu0 0.0
    %2864 = vmatpush1.msra.mxu0 0.0
    %2865 = vmatprep.subr.mxu0 0.0
    %2866 = vmatpush1.msra.mxu0 0.0
    %2867 = vmatprep.subr.mxu0 0.0
    %2868 = vmatpush1.msra.mxu0 0.0
    %2869 = vmatprep.subr.mxu0 0.0
    %2870 = vmatpush1.msra.mxu0 0.0
    %2871 = vmatprep.subr.mxu0 0.0
    %2872 = vmatpush1.msra.mxu0 0.0
    %2873 = vmatprep.subr.mxu0 0.0
    %2874 = vmatpush1.msra.mxu0 0.0
    %2875 = vmatprep.subr.mxu0 0.0
    %2876 = vmatpush1.msra.mxu0 0.0
    %2877 = vmatprep.subr.mxu0 0.0
    %2878 = vmatpush1.msra.mxu0 0.0
    %2879 = vmatprep.subr.mxu0 0.0
    %2880 = vmatpush1.msra.mxu0 0.0
    %2881 = vmatprep.subr.mxu0 0.0
    %2882 = vmatpush1.msra.mxu0 0.0
    %2883 = vmatprep.subr.mxu0 0.0
    %2884 = vmatpush1.msra.mxu0 0.0
    %2885 = vmatprep.subr.mxu0 0.0
    %2886 = vmatpush1.msra.mxu0 0.0
    %2887 = vmatprep.subr.mxu0 0.0
    %2888 = vmatpush1.msra.mxu0 0.0
    %2889 = vmatprep.subr.mxu0 0.0
    %2890 = vmatpush1.msra.mxu0 0.0
    %2891 = vmatprep.subr.mxu0 0.0
    %2892 = vmatpush1.msra.mxu0 0.0
    %2893 = vmatprep.subr.mxu0 0.0
    %2894 = vmatpush1.msra.mxu0 0.0
    %2895 = vmatprep.mubr.f32.mxu0 0.0
    %v2896 = vand.u32 %v2825, 4294901760
    %v2897 = vsub.f32 %v2825, %v2896
    %v2898 = vand.u32 %v2897, 4294901760
    %v2899 = vsub.f32 %v2897, %v2898
    %v2900 = vand.u32 %v2899, 4294901760
    %2901 = vmatmul.mubr.f32.gmra.mrb[0].mxu0 %v2900
    %v2902 = vpop.f32.mrb[0].mxu0
    %v2903 = vadd.f32 0.0, %v2902
    %v2904 = vpop.f32.mrb[0].mxu0
    %2905 = vdwg.mxu0
    %2906 = vmatprep.subr.mxu0 0.0
    %v2907 = vand.u32 %v1097, 4294901760
    %v2908 = vsub.f32 %v1097, %v2907
    %v2909 = vand.u32 %v2908, 4294901760
    %v2910 = vsub.f32 %v2908, %v2909
    %v2911 = vand.u32 %v2910, 4294901760
    %2912 = vmatpush1.msra.mxu0 %v2911
    %2913 = vmatprep.subr.mxu0 0.0
    %v2914 = vand.u32 %v1098, 4294901760
    %v2915 = vsub.f32 %v1098, %v2914
    %v2916 = vand.u32 %v2915, 4294901760
    %v2917 = vsub.f32 %v2915, %v2916
    %v2918 = vand.u32 %v2917, 4294901760
    %2919 = vmatpush1.msra.mxu0 %v2918
    %2920 = vmatprep.subr.mxu0 0.0
    %v2921 = vand.u32 %v1099, 4294901760
    %v2922 = vsub.f32 %v1099, %v2921
    %v2923 = vand.u32 %v2922, 4294901760
    %v2924 = vsub.f32 %v2922, %v2923
    %v2925 = vand.u32 %v2924, 4294901760
    %2926 = vmatpush1.msra.mxu0 %v2925
    %2927 = vmatprep.subr.mxu0 0.0
    %v2928 = vand.u32 %v1100, 4294901760
    %v2929 = vsub.f32 %v1100, %v2928
    %v2930 = vand.u32 %v2929, 4294901760
    %v2931 = vsub.f32 %v2929, %v2930
    %v2932 = vand.u32 %v2931, 4294901760
    %2933 = vmatpush1.msra.mxu0 %v2932
    %2934 = vmatprep.subr.mxu0 0.0
    %2935 = vmatpush1.msra.mxu0 0.0
    %2936 = vmatprep.subr.mxu0 0.0
    %2937 = vmatpush1.msra.mxu0 0.0
    %2938 = vmatprep.subr.mxu0 0.0
    %2939 = vmatpush1.msra.mxu0 0.0
    %2940 = vmatprep.subr.mxu0 0.0
    %2941 = vmatpush1.msra.mxu0 0.0
    %2942 = vmatprep.subr.mxu0 0.0
    %2943 = vmatpush1.msra.mxu0 0.0
    %2944 = vmatprep.subr.mxu0 0.0
    %2945 = vmatpush1.msra.mxu0 0.0
    %2946 = vmatprep.subr.mxu0 0.0
    %2947 = vmatpush1.msra.mxu0 0.0
    %2948 = vmatprep.subr.mxu0 0.0
    %2949 = vmatpush1.msra.mxu0 0.0
    %2950 = vmatprep.subr.mxu0 0.0
    %2951 = vmatpush1.msra.mxu0 0.0
    %2952 = vmatprep.subr.mxu0 0.0
    %2953 = vmatpush1.msra.mxu0 0.0
    %2954 = vmatprep.subr.mxu0 0.0
    %2955 = vmatpush1.msra.mxu0 0.0
    %2956 = vmatprep.subr.mxu0 0.0
    %2957 = vmatpush1.msra.mxu0 0.0
    %2958 = vmatprep.subr.mxu0 0.0
    %2959 = vmatpush1.msra.mxu0 0.0
    %2960 = vmatprep.subr.mxu0 0.0
    %2961 = vmatpush1.msra.mxu0 0.0
    %2962 = vmatprep.subr.mxu0 0.0
    %2963 = vmatpush1.msra.mxu0 0.0
    %2964 = vmatprep.subr.mxu0 0.0
    %2965 = vmatpush1.msra.mxu0 0.0
    %2966 = vmatprep.subr.mxu0 0.0
    %2967 = vmatpush1.msra.mxu0 0.0
    %2968 = vmatprep.subr.mxu0 0.0
    %2969 = vmatpush1.msra.mxu0 0.0
    %2970 = vmatprep.subr.mxu0 0.0
    %2971 = vmatpush1.msra.mxu0 0.0
    %2972 = vmatprep.subr.mxu0 0.0
    %2973 = vmatpush1.msra.mxu0 0.0
    %2974 = vmatprep.subr.mxu0 0.0
    %2975 = vmatpush1.msra.mxu0 0.0
    %2976 = vmatprep.subr.mxu0 0.0
    %2977 = vmatpush1.msra.mxu0 0.0
    %2978 = vmatprep.subr.mxu0 0.0
    %2979 = vmatpush1.msra.mxu0 0.0
    %2980 = vmatprep.subr.mxu0 0.0
    %2981 = vmatpush1.msra.mxu0 0.0
    %2982 = vmatprep.subr.mxu0 0.0
    %2983 = vmatpush1.msra.mxu0 0.0
    %2984 = vmatprep.subr.mxu0 0.0
    %2985 = vmatpush1.msra.mxu0 0.0
    %2986 = vmatprep.subr.mxu0 0.0
    %2987 = vmatpush1.msra.mxu0 0.0
    %2988 = vmatprep.subr.mxu0 0.0
    %2989 = vmatpush1.msra.mxu0 0.0
    %2990 = vmatprep.mubr.f32.mxu0 0.0
    %v2991 = vand.u32 %v2825, 4294901760
    %2992 = vmatmul.mubr.f32.gmra.mrb[0].mxu0 %v2991
    %v2993 = vpop.f32.mrb[0].mxu0
    %v2994 = vadd.f32 %v2903, %v2993
    %v2995 = vpop.f32.mrb[0].mxu0
    %2996 = vdwg.mxu0
    %2997 = vmatprep.subr.mxu0 0.0
    %v2998 = vand.u32 %v1097, 4294901760
    %v2999 = vsub.f32 %v1097, %v2998
    %3000 = vmatpush1.msra.mxu0 %v2999
    %3001 = vmatprep.subr.mxu0 0.0
    %v3002 = vand.u32 %v1098, 4294901760
    %v3003 = vsub.f32 %v1098, %v3002
    %3004 = vmatpush1.msra.mxu0 %v3003
    %3005 = vmatprep.subr.mxu0 0.0
    %v3006 = vand.u32 %v1099, 4294901760
    %v3007 = vsub.f32 %v1099, %v3006
    %3008 = vmatpush1.msra.mxu0 %v3007
    %3009 = vmatprep.subr.mxu0 0.0
    %v3010 = vand.u32 %v1100, 4294901760
    %v3011 = vsub.f32 %v1100, %v3010
    %3012 = vmatpush1.msra.mxu0 %v3011
    %3013 = vmatprep.subr.mxu0 0.0
    %3014 = vmatpush1.msra.mxu0 0.0
    %3015 = vmatprep.subr.mxu0 0.0
    %3016 = vmatpush1.msra.mxu0 0.0
    %3017 = vmatprep.subr.mxu0 0.0
    %3018 = vmatpush1.msra.mxu0 0.0
    %3019 = vmatprep.subr.mxu0 0.0
    %3020 = vmatpush1.msra.mxu0 0.0
    %3021 = vmatprep.subr.mxu0 0.0
    %3022 = vmatpush1.msra.mxu0 0.0
    %3023 = vmatprep.subr.mxu0 0.0
    %3024 = vmatpush1.msra.mxu0 0.0
    %3025 = vmatprep.subr.mxu0 0.0
    %3026 = vmatpush1.msra.mxu0 0.0
    %3027 = vmatprep.subr.mxu0 0.0
    %3028 = vmatpush1.msra.mxu0 0.0
    %3029 = vmatprep.subr.mxu0 0.0
    %3030 = vmatpush1.msra.mxu0 0.0
    %3031 = vmatprep.subr.mxu0 0.0
    %3032 = vmatpush1.msra.mxu0 0.0
    %3033 = vmatprep.subr.mxu0 0.0
    %3034 = vmatpush1.msra.mxu0 0.0
    %3035 = vmatprep.subr.mxu0 0.0
    %3036 = vmatpush1.msra.mxu0 0.0
    %3037 = vmatprep.subr.mxu0 0.0
    %3038 = vmatpush1.msra.mxu0 0.0
    %3039 = vmatprep.subr.mxu0 0.0
    %3040 = vmatpush1.msra.mxu0 0.0
    %3041 = vmatprep.subr.mxu0 0.0
    %3042 = vmatpush1.msra.mxu0 0.0
    %3043 = vmatprep.subr.mxu0 0.0
    %3044 = vmatpush1.msra.mxu0 0.0
    %3045 = vmatprep.subr.mxu0 0.0
    %3046 = vmatpush1.msra.mxu0 0.0
    %3047 = vmatprep.subr.mxu0 0.0
    %3048 = vmatpush1.msra.mxu0 0.0
    %3049 = vmatprep.subr.mxu0 0.0
    %3050 = vmatpush1.msra.mxu0 0.0
    %3051 = vmatprep.subr.mxu0 0.0
    %3052 = vmatpush1.msra.mxu0 0.0
    %3053 = vmatprep.subr.mxu0 0.0
    %3054 = vmatpush1.msra.mxu0 0.0
    %3055 = vmatprep.subr.mxu0 0.0
    %3056 = vmatpush1.msra.mxu0 0.0
    %3057 = vmatprep.subr.mxu0 0.0
    %3058 = vmatpush1.msra.mxu0 0.0
    %3059 = vmatprep.subr.mxu0 0.0
    %3060 = vmatpush1.msra.mxu0 0.0
    %3061 = vmatprep.subr.mxu0 0.0
    %3062 = vmatpush1.msra.mxu0 0.0
    %3063 = vmatprep.subr.mxu0 0.0
    %3064 = vmatpush1.msra.mxu0 0.0
    %3065 = vmatprep.subr.mxu0 0.0
    %3066 = vmatpush1.msra.mxu0 0.0
    %3067 = vmatprep.subr.mxu0 0.0
    %3068 = vmatpush1.msra.mxu0 0.0
    %3069 = vmatprep.mubr.f32.mxu0 0.0
    %v3070 = vand.u32 %v2825, 4294901760
    %v3071 = vsub.f32 %v2825, %v3070
    %3072 = vmatmul.mubr.f32.gmra.mrb[0].mxu0 %v3071
    %v3073 = vpop.f32.mrb[0].mxu0
    %v3074 = vadd.f32 %v2994, %v3073
    %v3075 = vpop.f32.mrb[0].mxu0
    %3076 = vdwg.mxu0
    %3077 = vmatprep.subr.mxu0 0.0
    %v3078 = vand.u32 %v1097, 4294901760
    %3079 = vmatpush1.msra.mxu0 %v3078
    %3080 = vmatprep.subr.mxu0 0.0
    %v3081 = vand.u32 %v1098, 4294901760
    %3082 = vmatpush1.msra.mxu0 %v3081
    %3083 = vmatprep.subr.mxu0 0.0
    %v3084 = vand.u32 %v1099, 4294901760
    %3085 = vmatpush1.msra.mxu0 %v3084
    %3086 = vmatprep.subr.mxu0 0.0
    %v3087 = vand.u32 %v1100, 4294901760
    %3088 = vmatpush1.msra.mxu0 %v3087
    %3089 = vmatprep.subr.mxu0 0.0
    %3090 = vmatpush1.msra.mxu0 0.0
    %3091 = vmatprep.subr.mxu0 0.0
    %3092 = vmatpush1.msra.mxu0 0.0
    %3093 = vmatprep.subr.mxu0 0.0
    %3094 = vmatpush1.msra.mxu0 0.0
    %3095 = vmatprep.subr.mxu0 0.0
    %3096 = vmatpush1.msra.mxu0 0.0
    %3097 = vmatprep.subr.mxu0 0.0
    %3098 = vmatpush1.msra.mxu0 0.0
    %3099 = vmatprep.subr.mxu0 0.0
    %3100 = vmatpush1.msra.mxu0 0.0
    %3101 = vmatprep.subr.mxu0 0.0
    %3102 = vmatpush1.msra.mxu0 0.0
    %3103 = vmatprep.subr.mxu0 0.0
    %3104 = vmatpush1.msra.mxu0 0.0
    %3105 = vmatprep.subr.mxu0 0.0
    %3106 = vmatpush1.msra.mxu0 0.0
    %3107 = vmatprep.subr.mxu0 0.0
    %3108 = vmatpush1.msra.mxu0 0.0
    %3109 = vmatprep.subr.mxu0 0.0
    %3110 = vmatpush1.msra.mxu0 0.0
    %3111 = vmatprep.subr.mxu0 0.0
    %3112 = vmatpush1.msra.mxu0 0.0
    %3113 = vmatprep.subr.mxu0 0.0
    %3114 = vmatpush1.msra.mxu0 0.0
    %3115 = vmatprep.subr.mxu0 0.0
    %3116 = vmatpush1.msra.mxu0 0.0
    %3117 = vmatprep.subr.mxu0 0.0
    %3118 = vmatpush1.msra.mxu0 0.0
    %3119 = vmatprep.subr.mxu0 0.0
    %3120 = vmatpush1.msra.mxu0 0.0
    %3121 = vmatprep.subr.mxu0 0.0
    %3122 = vmatpush1.msra.mxu0 0.0
    %3123 = vmatprep.subr.mxu0 0.0
    %3124 = vmatpush1.msra.mxu0 0.0
    %3125 = vmatprep.subr.mxu0 0.0
    %3126 = vmatpush1.msra.mxu0 0.0
    %3127 = vmatprep.subr.mxu0 0.0
    %3128 = vmatpush1.msra.mxu0 0.0
    %3129 = vmatprep.subr.mxu0 0.0
    %3130 = vmatpush1.msra.mxu0 0.0
    %3131 = vmatprep.subr.mxu0 0.0
    %3132 = vmatpush1.msra.mxu0 0.0
    %3133 = vmatprep.subr.mxu0 0.0
    %3134 = vmatpush1.msra.mxu0 0.0
    %3135 = vmatprep.subr.mxu0 0.0
    %3136 = vmatpush1.msra.mxu0 0.0
    %3137 = vmatprep.subr.mxu0 0.0
    %3138 = vmatpush1.msra.mxu0 0.0
    %3139 = vmatprep.subr.mxu0 0.0
    %3140 = vmatpush1.msra.mxu0 0.0
    %3141 = vmatprep.subr.mxu0 0.0
    %3142 = vmatpush1.msra.mxu0 0.0
    %3143 = vmatprep.subr.mxu0 0.0
    %3144 = vmatpush1.msra.mxu0 0.0
    %3145 = vmatprep.mubr.f32.mxu0 0.0
    %v3146 = vand.u32 %v2825, 4294901760
    %v3147 = vsub.f32 %v2825, %v3146
    %v3148 = vand.u32 %v3147, 4294901760
    %3149 = vmatmul.mubr.f32.gmra.mrb[0].mxu0 %v3148
    %v3150 = vpop.f32.mrb[0].mxu0
    %v3151 = vadd.f32 %v3074, %v3150
    %v3152 = vpop.f32.mrb[0].mxu0
    %3153 = vdwg.mxu0
    %3154 = vmatprep.subr.mxu0 0.0
    %v3155 = vand.u32 %v1097, 4294901760
    %v3156 = vsub.f32 %v1097, %v3155
    %v3157 = vand.u32 %v3156, 4294901760
    %3158 = vmatpush1.msra.mxu0 %v3157
    %3159 = vmatprep.subr.mxu0 0.0
    %v3160 = vand.u32 %v1098, 4294901760
    %v3161 = vsub.f32 %v1098, %v3160
    %v3162 = vand.u32 %v3161, 4294901760
    %3163 = vmatpush1.msra.mxu0 %v3162
    %3164 = vmatprep.subr.mxu0 0.0
    %v3165 = vand.u32 %v1099, 4294901760
    %v3166 = vsub.f32 %v1099, %v3165
    %v3167 = vand.u32 %v3166, 4294901760
    %3168 = vmatpush1.msra.mxu0 %v3167
    %3169 = vmatprep.subr.mxu0 0.0
    %v3170 = vand.u32 %v1100, 4294901760
    %v3171 = vsub.f32 %v1100, %v3170
    %v3172 = vand.u32 %v3171, 4294901760
    %3173 = vmatpush1.msra.mxu0 %v3172
    %3174 = vmatprep.subr.mxu0 0.0
    %3175 = vmatpush1.msra.mxu0 0.0
    %3176 = vmatprep.subr.mxu0 0.0
    %3177 = vmatpush1.msra.mxu0 0.0
    %3178 = vmatprep.subr.mxu0 0.0
    %3179 = vmatpush1.msra.mxu0 0.0
    %3180 = vmatprep.subr.mxu0 0.0
    %3181 = vmatpush1.msra.mxu0 0.0
    %3182 = vmatprep.subr.mxu0 0.0
    %3183 = vmatpush1.msra.mxu0 0.0
    %3184 = vmatprep.subr.mxu0 0.0
    %3185 = vmatpush1.msra.mxu0 0.0
    %3186 = vmatprep.subr.mxu0 0.0
    %3187 = vmatpush1.msra.mxu0 0.0
    %3188 = vmatprep.subr.mxu0 0.0
    %3189 = vmatpush1.msra.mxu0 0.0
    %3190 = vmatprep.subr.mxu0 0.0
    %3191 = vmatpush1.msra.mxu0 0.0
    %3192 = vmatprep.subr.mxu0 0.0
    %3193 = vmatpush1.msra.mxu0 0.0
    %3194 = vmatprep.subr.mxu0 0.0
    %3195 = vmatpush1.msra.mxu0 0.0
    %3196 = vmatprep.subr.mxu0 0.0
    %3197 = vmatpush1.msra.mxu0 0.0
    %3198 = vmatprep.subr.mxu0 0.0
    %3199 = vmatpush1.msra.mxu0 0.0
    %3200 = vmatprep.subr.mxu0 0.0
    %3201 = vmatpush1.msra.mxu0 0.0
    %3202 = vmatprep.subr.mxu0 0.0
    %3203 = vmatpush1.msra.mxu0 0.0
    %3204 = vmatprep.subr.mxu0 0.0
    %3205 = vmatpush1.msra.mxu0 0.0
    %3206 = vmatprep.subr.mxu0 0.0
    %3207 = vmatpush1.msra.mxu0 0.0
    %3208 = vmatprep.subr.mxu0 0.0
    %3209 = vmatpush1.msra.mxu0 0.0
    %3210 = vmatprep.subr.mxu0 0.0
    %3211 = vmatpush1.msra.mxu0 0.0
    %3212 = vmatprep.subr.mxu0 0.0
    %3213 = vmatpush1.msra.mxu0 0.0
    %3214 = vmatprep.subr.mxu0 0.0
    %3215 = vmatpush1.msra.mxu0 0.0
    %3216 = vmatprep.subr.mxu0 0.0
    %3217 = vmatpush1.msra.mxu0 0.0
    %3218 = vmatprep.subr.mxu0 0.0
    %3219 = vmatpush1.msra.mxu0 0.0
    %3220 = vmatprep.subr.mxu0 0.0
    %3221 = vmatpush1.msra.mxu0 0.0
    %3222 = vmatprep.subr.mxu0 0.0
    %3223 = vmatpush1.msra.mxu0 0.0
    %3224 = vmatprep.subr.mxu0 0.0
    %3225 = vmatpush1.msra.mxu0 0.0
    %3226 = vmatprep.subr.mxu0 0.0
    %3227 = vmatpush1.msra.mxu0 0.0
    %3228 = vmatprep.subr.mxu0 0.0
    %3229 = vmatpush1.msra.mxu0 0.0
    %3230 = vmatprep.mubr.f32.mxu0 0.0
    %v3231 = vand.u32 %v2825, 4294901760
    %3232 = vmatmul.mubr.f32.gmra.mrb[0].mxu0 %v3231
    %v3233 = vpop.f32.mrb[0].mxu0
    %v3234 = vadd.f32 %v3151, %v3233
    %v3235 = vpop.f32.mrb[0].mxu0
    %3236 = vdwg.mxu0
    %3237 = vmatprep.subr.mxu0 0.0
    %v3238 = vand.u32 %v1097, 4294901760
    %3239 = vmatpush1.msra.mxu0 %v3238
    %3240 = vmatprep.subr.mxu0 0.0
    %v3241 = vand.u32 %v1098, 4294901760
    %3242 = vmatpush1.msra.mxu0 %v3241
    %3243 = vmatprep.subr.mxu0 0.0
    %v3244 = vand.u32 %v1099, 4294901760
    %3245 = vmatpush1.msra.mxu0 %v3244
    %3246 = vmatprep.subr.mxu0 0.0
    %v3247 = vand.u32 %v1100, 4294901760
    %3248 = vmatpush1.msra.mxu0 %v3247
    %3249 = vmatprep.subr.mxu0 0.0
    %3250 = vmatpush1.msra.mxu0 0.0
    %3251 = vmatprep.subr.mxu0 0.0
    %3252 = vmatpush1.msra.mxu0 0.0
    %3253 = vmatprep.subr.mxu0 0.0
    %3254 = vmatpush1.msra.mxu0 0.0
    %3255 = vmatprep.subr.mxu0 0.0
    %3256 = vmatpush1.msra.mxu0 0.0
    %3257 = vmatprep.subr.mxu0 0.0
    %3258 = vmatpush1.msra.mxu0 0.0
    %3259 = vmatprep.subr.mxu0 0.0
    %3260 = vmatpush1.msra.mxu0 0.0
    %3261 = vmatprep.subr.mxu0 0.0
    %3262 = vmatpush1.msra.mxu0 0.0
    %3263 = vmatprep.subr.mxu0 0.0
    %3264 = vmatpush1.msra.mxu0 0.0
    %3265 = vmatprep.subr.mxu0 0.0
    %3266 = vmatpush1.msra.mxu0 0.0
    %3267 = vmatprep.subr.mxu0 0.0
    %3268 = vmatpush1.msra.mxu0 0.0
    %3269 = vmatprep.subr.mxu0 0.0
    %3270 = vmatpush1.msra.mxu0 0.0
    %3271 = vmatprep.subr.mxu0 0.0
    %3272 = vmatpush1.msra.mxu0 0.0
    %3273 = vmatprep.subr.mxu0 0.0
    %3274 = vmatpush1.msra.mxu0 0.0
    %3275 = vmatprep.subr.mxu0 0.0
    %3276 = vmatpush1.msra.mxu0 0.0
    %3277 = vmatprep.subr.mxu0 0.0
    %3278 = vmatpush1.msra.mxu0 0.0
    %3279 = vmatprep.subr.mxu0 0.0
    %3280 = vmatpush1.msra.mxu0 0.0
    %3281 = vmatprep.subr.mxu0 0.0
    %3282 = vmatpush1.msra.mxu0 0.0
    %3283 = vmatprep.subr.mxu0 0.0
    %3284 = vmatpush1.msra.mxu0 0.0
    %3285 = vmatprep.subr.mxu0 0.0
    %3286 = vmatpush1.msra.mxu0 0.0
    %3287 = vmatprep.subr.mxu0 0.0
    %3288 = vmatpush1.msra.mxu0 0.0
    %3289 = vmatprep.subr.mxu0 0.0
    %3290 = vmatpush1.msra.mxu0 0.0
    %3291 = vmatprep.subr.mxu0 0.0
    %3292 = vmatpush1.msra.mxu0 0.0
    %3293 = vmatprep.subr.mxu0 0.0
    %3294 = vmatpush1.msra.mxu0 0.0
    %3295 = vmatprep.subr.mxu0 0.0
    %3296 = vmatpush1.msra.mxu0 0.0
    %3297 = vmatprep.subr.mxu0 0.0
    %3298 = vmatpush1.msra.mxu0 0.0
    %3299 = vmatprep.subr.mxu0 0.0
    %3300 = vmatpush1.msra.mxu0 0.0
    %3301 = vmatprep.subr.mxu0 0.0
    %3302 = vmatpush1.msra.mxu0 0.0
    %3303 = vmatprep.subr.mxu0 0.0
    %3304 = vmatpush1.msra.mxu0 0.0
    %3305 = vmatprep.mubr.f32.mxu0 0.0
    %v3306 = vand.u32 %v2825, 4294901760
    %3307 = vmatmul.mubr.f32.gmra.mrb[0].mxu0 %v3306
    %v3308 = vpop.f32.mrb[0].mxu0
    %v3309 = vadd.f32 %v3234, %v3308
    %v3310 = vpop.f32.mrb[0].mxu0
    %3311 = vdwg.mxu0
    %v3313 = vrot.slane %v3309, 5
    %v3314 = vrot.slane %v3309, 6
    %v3317 = vadd.f32 %v1095, %v3313
    %v3318 = vadd.f32 %v1096, %v3314
    %v3319 = vxor.u32 %v3317, 2147483648
    %v3320 = vxor.u32 %v3318, 2147483648
    %v3321 = vmul.f32 %v3319, 1.442695
    %v3322 = vpow.pop %v3321
    %v3323 = vmul.f32 %v3320, 1.442695
    %v3324 = vpow.pop %v3323
    %v3325 = vadd.f32 %v3322, 1.0
    %v3326 = vadd.f32 %v3324, 1.0
    %v3327 = vrcp.pop %v3325
    %v3328 = vmul.f32 1.0, %v3327
    %v3329 = vrcp.pop %v3326
    %v3330 = vmul.f32 1.0, %v3329
    %v3331 = vmul.f32 %v3328, 2.0
    %v3332 = vmul.f32 %v3330, 2.0
    %v3333 = vsub.f32 %v3331, 1.0
    %v3334 = vsub.f32 %v3332, 1.0
    %v3337 = vrot.slane %v2790, 7
    %v3338 = vrot.slane %v2791, 7
    %v3341 = vmul.f32 %v3328, %v3337
    %v3342 = vmul.f32 %v3330, %v3338
    %3345 = vrot.lane.b32.xlu0 %v3333, 64
    %v3346 = vpop.permute.xlu0 %3345
    %3347 = vrot.lane.b32.xlu0 %v3334, 64
    %v3348 = vpop.permute.xlu0 %3347
    %v3351 = vmul.f32 %v3328, %v3346
    %v3352 = vmul.f32 %v3330, %v3348
    %3355 = vrot.lane.b32.xlu0 %v3351, 32
    %v3356 = vpop.permute.xlu0 %3355
    %3357 = vrot.lane.b32.xlu0 %v3352, 32
    %v3358 = vpop.permute.xlu0 %3357
    %v3361 = vadd.f32 %v3341, %v3356
    %v3362 = vadd.f32 %v3342, %v3358
    %v3363 = vtanh.pop %v3361
    %v3364 = vtanh.pop %v3362
    %3367 = vrot.lane.b32.xlu0 %v3363, 64
    %v3368 = vpop.permute.xlu0 %3367
    %3369 = vrot.lane.b32.xlu0 %v3364, 64
    %v3370 = vpop.permute.xlu0 %3369
    %v3373 = vmul.f32 %v3328, %v3368
    %v3374 = vmul.f32 %v3330, %v3370
    %v3375 = vmul.f32 %v3373, %v1663
    %v3376 = vmul.f32 %v3374, %v1663
    %v3379 = vrot.slane %v3376, 7
    %vm3380 = vcmask 1044484
    %v3381 = vsel %vm3380, %v3379, %v3375
    %3382 = vrot.lane.b32.xlu0 %v3381, 32
    %v3383 = vpop.permute.xlu0 %3382
    %vm3385 = vcmask 258051
    %v3386 = vsel %vm3385, %v3383, 0.0
    %3387 = vadd.xlane.f32.xlu0 %v3386
    %v3388 = vpop.xlane.xlu0 %3387
    %v3391 = vrot.slane %v3373, 3
    %v3392 = vrot.slane %v3374, 2
    %v3393 = vsel %vm1670, %v3392, %v3391
    %3394 = vrot.lane.b32.xlu0 %v3393, 32
    %v3395 = vpop.permute.xlu0 %3394
    %v3396 = vsel %vm1104, %v3395, 0
    %3398 = vmatprep.subr.mxu0 0.0
    %v3399 = vand.u32 %v1097, 4294901760
    %3400 = vmatpush1.msra.mxu0 %v3399
    %3401 = vmatprep.subr.mxu0 0.0
    %v3402 = vand.u32 %v1098, 4294901760
    %3403 = vmatpush1.msra.mxu0 %v3402
    %3404 = vmatprep.subr.mxu0 0.0
    %v3405 = vand.u32 %v1099, 4294901760
    %3406 = vmatpush1.msra.mxu0 %v3405
    %3407 = vmatprep.subr.mxu0 0.0
    %v3408 = vand.u32 %v1100, 4294901760
    %3409 = vmatpush1.msra.mxu0 %v3408
    %3410 = vmatprep.subr.mxu0 0.0
    %3411 = vmatpush1.msra.mxu0 0.0
    %3412 = vmatprep.subr.mxu0 0.0
    %3413 = vmatpush1.msra.mxu0 0.0
    %3414 = vmatprep.subr.mxu0 0.0
    %3415 = vmatpush1.msra.mxu0 0.0
    %3416 = vmatprep.subr.mxu0 0.0
    %3417 = vmatpush1.msra.mxu0 0.0
    %3418 = vmatprep.subr.mxu0 0.0
    %3419 = vmatpush1.msra.mxu0 0.0
    %3420 = vmatprep.subr.mxu0 0.0
    %3421 = vmatpush1.msra.mxu0 0.0
    %3422 = vmatprep.subr.mxu0 0.0
    %3423 = vmatpush1.msra.mxu0 0.0
    %3424 = vmatprep.subr.mxu0 0.0
    %3425 = vmatpush1.msra.mxu0 0.0
    %3426 = vmatprep.subr.mxu0 0.0
    %3427 = vmatpush1.msra.mxu0 0.0
    %3428 = vmatprep.subr.mxu0 0.0
    %3429 = vmatpush1.msra.mxu0 0.0
    %3430 = vmatprep.subr.mxu0 0.0
    %3431 = vmatpush1.msra.mxu0 0.0
    %3432 = vmatprep.subr.mxu0 0.0
    %3433 = vmatpush1.msra.mxu0 0.0
    %3434 = vmatprep.subr.mxu0 0.0
    %3435 = vmatpush1.msra.mxu0 0.0
    %3436 = vmatprep.subr.mxu0 0.0
    %3437 = vmatpush1.msra.mxu0 0.0
    %3438 = vmatprep.subr.mxu0 0.0
    %3439 = vmatpush1.msra.mxu0 0.0
    %3440 = vmatprep.subr.mxu0 0.0
    %3441 = vmatpush1.msra.mxu0 0.0
    %3442 = vmatprep.subr.mxu0 0.0
    %3443 = vmatpush1.msra.mxu0 0.0
    %3444 = vmatprep.subr.mxu0 0.0
    %3445 = vmatpush1.msra.mxu0 0.0
    %3446 = vmatprep.subr.mxu0 0.0
    %3447 = vmatpush1.msra.mxu0 0.0
    %3448 = vmatprep.subr.mxu0 0.0
    %3449 = vmatpush1.msra.mxu0 0.0
    %3450 = vmatprep.subr.mxu0 0.0
    %3451 = vmatpush1.msra.mxu0 0.0
    %3452 = vmatprep.subr.mxu0 0.0
    %3453 = vmatpush1.msra.mxu0 0.0
    %3454 = vmatprep.subr.mxu0 0.0
    %3455 = vmatpush1.msra.mxu0 0.0
    %3456 = vmatprep.subr.mxu0 0.0
    %3457 = vmatpush1.msra.mxu0 0.0
    %3458 = vmatprep.subr.mxu0 0.0
    %3459 = vmatpush1.msra.mxu0 0.0
    %3460 = vmatprep.subr.mxu0 0.0
    %3461 = vmatpush1.msra.mxu0 0.0
    %3462 = vmatprep.subr.mxu0 0.0
    %3463 = vmatpush1.msra.mxu0 0.0
    %3464 = vmatprep.subr.mxu0 0.0
    %3465 = vmatpush1.msra.mxu0 0.0
    %3466 = vmatprep.mubr.f32.mxu0 0.0
    %v3467 = vand.u32 %v3396, 4294901760
    %v3468 = vsub.f32 %v3396, %v3467
    %v3469 = vand.u32 %v3468, 4294901760
    %v3470 = vsub.f32 %v3468, %v3469
    %v3471 = vand.u32 %v3470, 4294901760
    %3472 = vmatmul.mubr.f32.gmra.mrb[0].mxu0 %v3471
    %v3473 = vpop.f32.mrb[0].mxu0
    %v3474 = vadd.f32 0.0, %v3473
    %v3475 = vpop.f32.mrb[0].mxu0
    %3476 = vdwg.mxu0
    %3477 = vmatprep.subr.mxu0 0.0
    %v3478 = vand.u32 %v1097, 4294901760
    %v3479 = vsub.f32 %v1097, %v3478
    %v3480 = vand.u32 %v3479, 4294901760
    %v3481 = vsub.f32 %v3479, %v3480
    %v3482 = vand.u32 %v3481, 4294901760
    %3483 = vmatpush1.msra.mxu0 %v3482
    %3484 = vmatprep.subr.mxu0 0.0
    %v3485 = vand.u32 %v1098, 4294901760
    %v3486 = vsub.f32 %v1098, %v3485
    %v3487 = vand.u32 %v3486, 4294901760
    %v3488 = vsub.f32 %v3486, %v3487
    %v3489 = vand.u32 %v3488, 4294901760
    %3490 = vmatpush1.msra.mxu0 %v3489
    %3491 = vmatprep.subr.mxu0 0.0
    %v3492 = vand.u32 %v1099, 4294901760
    %v3493 = vsub.f32 %v1099, %v3492
    %v3494 = vand.u32 %v3493, 4294901760
    %v3495 = vsub.f32 %v3493, %v3494
    %v3496 = vand.u32 %v3495, 4294901760
    %3497 = vmatpush1.msra.mxu0 %v3496
    %3498 = vmatprep.subr.mxu0 0.0
    %v3499 = vand.u32 %v1100, 4294901760
    %v3500 = vsub.f32 %v1100, %v3499
    %v3501 = vand.u32 %v3500, 4294901760
    %v3502 = vsub.f32 %v3500, %v3501
    %v3503 = vand.u32 %v3502, 4294901760
    %3504 = vmatpush1.msra.mxu0 %v3503
    %3505 = vmatprep.subr.mxu0 0.0
    %3506 = vmatpush1.msra.mxu0 0.0
    %3507 = vmatprep.subr.mxu0 0.0
    %3508 = vmatpush1.msra.mxu0 0.0
    %3509 = vmatprep.subr.mxu0 0.0
    %3510 = vmatpush1.msra.mxu0 0.0
    %3511 = vmatprep.subr.mxu0 0.0
    %3512 = vmatpush1.msra.mxu0 0.0
    %3513 = vmatprep.subr.mxu0 0.0
    %3514 = vmatpush1.msra.mxu0 0.0
    %3515 = vmatprep.subr.mxu0 0.0
    %3516 = vmatpush1.msra.mxu0 0.0
    %3517 = vmatprep.subr.mxu0 0.0
    %3518 = vmatpush1.msra.mxu0 0.0
    %3519 = vmatprep.subr.mxu0 0.0
    %3520 = vmatpush1.msra.mxu0 0.0
    %3521 = vmatprep.subr.mxu0 0.0
    %3522 = vmatpush1.msra.mxu0 0.0
    %3523 = vmatprep.subr.mxu0 0.0
    %3524 = vmatpush1.msra.mxu0 0.0
    %3525 = vmatprep.subr.mxu0 0.0
    %3526 = vmatpush1.msra.mxu0 0.0
    %3527 = vmatprep.subr.mxu0 0.0
    %3528 = vmatpush1.msra.mxu0 0.0
    %3529 = vmatprep.subr.mxu0 0.0
    %3530 = vmatpush1.msra.mxu0 0.0
    %3531 = vmatprep.subr.mxu0 0.0
    %3532 = vmatpush1.msra.mxu0 0.0
    %3533 = vmatprep.subr.mxu0 0.0
    %3534 = vmatpush1.msra.mxu0 0.0
    %3535 = vmatprep.subr.mxu0 0.0
    %3536 = vmatpush1.msra.mxu0 0.0
    %3537 = vmatprep.subr.mxu0 0.0
    %3538 = vmatpush1.msra.mxu0 0.0
    %3539 = vmatprep.subr.mxu0 0.0
    %3540 = vmatpush1.msra.mxu0 0.0
    %3541 = vmatprep.subr.mxu0 0.0
    %3542 = vmatpush1.msra.mxu0 0.0
    %3543 = vmatprep.subr.mxu0 0.0
    %3544 = vmatpush1.msra.mxu0 0.0
    %3545 = vmatprep.subr.mxu0 0.0
    %3546 = vmatpush1.msra.mxu0 0.0
    %3547 = vmatprep.subr.mxu0 0.0
    %3548 = vmatpush1.msra.mxu0 0.0
    %3549 = vmatprep.subr.mxu0 0.0
    %3550 = vmatpush1.msra.mxu0 0.0
    %3551 = vmatprep.subr.mxu0 0.0
    %3552 = vmatpush1.msra.mxu0 0.0
    %3553 = vmatprep.subr.mxu0 0.0
    %3554 = vmatpush1.msra.mxu0 0.0
    %3555 = vmatprep.subr.mxu0 0.0
    %3556 = vmatpush1.msra.mxu0 0.0
    %3557 = vmatprep.subr.mxu0 0.0
    %3558 = vmatpush1.msra.mxu0 0.0
    %3559 = vmatprep.subr.mxu0 0.0
    %3560 = vmatpush1.msra.mxu0 0.0
    %3561 = vmatprep.mubr.f32.mxu0 0.0
    %v3562 = vand.u32 %v3396, 4294901760
    %3563 = vmatmul.mubr.f32.gmra.mrb[0].mxu0 %v3562
    %v3564 = vpop.f32.mrb[0].mxu0
    %v3565 = vadd.f32 %v3474, %v3564
    %v3566 = vpop.f32.mrb[0].mxu0
    %3567 = vdwg.mxu0
    %3568 = vmatprep.subr.mxu0 0.0
    %v3569 = vand.u32 %v1097, 4294901760
    %v3570 = vsub.f32 %v1097, %v3569
    %3571 = vmatpush1.msra.mxu0 %v3570
    %3572 = vmatprep.subr.mxu0 0.0
    %v3573 = vand.u32 %v1098, 4294901760
    %v3574 = vsub.f32 %v1098, %v3573
    %3575 = vmatpush1.msra.mxu0 %v3574
    %3576 = vmatprep.subr.mxu0 0.0
    %v3577 = vand.u32 %v1099, 4294901760
    %v3578 = vsub.f32 %v1099, %v3577
    %3579 = vmatpush1.msra.mxu0 %v3578
    %3580 = vmatprep.subr.mxu0 0.0
    %v3581 = vand.u32 %v1100, 4294901760
    %v3582 = vsub.f32 %v1100, %v3581
    %3583 = vmatpush1.msra.mxu0 %v3582
    %3584 = vmatprep.subr.mxu0 0.0
    %3585 = vmatpush1.msra.mxu0 0.0
    %3586 = vmatprep.subr.mxu0 0.0
    %3587 = vmatpush1.msra.mxu0 0.0
    %3588 = vmatprep.subr.mxu0 0.0
    %3589 = vmatpush1.msra.mxu0 0.0
    %3590 = vmatprep.subr.mxu0 0.0
    %3591 = vmatpush1.msra.mxu0 0.0
    %3592 = vmatprep.subr.mxu0 0.0
    %3593 = vmatpush1.msra.mxu0 0.0
    %3594 = vmatprep.subr.mxu0 0.0
    %3595 = vmatpush1.msra.mxu0 0.0
    %3596 = vmatprep.subr.mxu0 0.0
    %3597 = vmatpush1.msra.mxu0 0.0
    %3598 = vmatprep.subr.mxu0 0.0
    %3599 = vmatpush1.msra.mxu0 0.0
    %3600 = vmatprep.subr.mxu0 0.0
    %3601 = vmatpush1.msra.mxu0 0.0
    %3602 = vmatprep.subr.mxu0 0.0
    %3603 = vmatpush1.msra.mxu0 0.0
    %3604 = vmatprep.subr.mxu0 0.0
    %3605 = vmatpush1.msra.mxu0 0.0
    %3606 = vmatprep.subr.mxu0 0.0
    %3607 = vmatpush1.msra.mxu0 0.0
    %3608 = vmatprep.subr.mxu0 0.0
    %3609 = vmatpush1.msra.mxu0 0.0
    %3610 = vmatprep.subr.mxu0 0.0
    %3611 = vmatpush1.msra.mxu0 0.0
    %3612 = vmatprep.subr.mxu0 0.0
    %3613 = vmatpush1.msra.mxu0 0.0
    %3614 = vmatprep.subr.mxu0 0.0
    %3615 = vmatpush1.msra.mxu0 0.0
    %3616 = vmatprep.subr.mxu0 0.0
    %3617 = vmatpush1.msra.mxu0 0.0
    %3618 = vmatprep.subr.mxu0 0.0
    %3619 = vmatpush1.msra.mxu0 0.0
    %3620 = vmatprep.subr.mxu0 0.0
    %3621 = vmatpush1.msra.mxu0 0.0
    %3622 = vmatprep.subr.mxu0 0.0
    %3623 = vmatpush1.msra.mxu0 0.0
    %3624 = vmatprep.subr.mxu0 0.0
    %3625 = vmatpush1.msra.mxu0 0.0
    %3626 = vmatprep.subr.mxu0 0.0
    %3627 = vmatpush1.msra.mxu0 0.0
    %3628 = vmatprep.subr.mxu0 0.0
    %3629 = vmatpush1.msra.mxu0 0.0
    %3630 = vmatprep.subr.mxu0 0.0
    %3631 = vmatpush1.msra.mxu0 0.0
    %3632 = vmatprep.subr.mxu0 0.0
    %3633 = vmatpush1.msra.mxu0 0.0
    %3634 = vmatprep.subr.mxu0 0.0
    %3635 = vmatpush1.msra.mxu0 0.0
    %3636 = vmatprep.subr.mxu0 0.0
    %3637 = vmatpush1.msra.mxu0 0.0
    %3638 = vmatprep.subr.mxu0 0.0
    %3639 = vmatpush1.msra.mxu0 0.0
    %3640 = vmatprep.mubr.f32.mxu0 0.0
    %v3641 = vand.u32 %v3396, 4294901760
    %v3642 = vsub.f32 %v3396, %v3641
    %3643 = vmatmul.mubr.f32.gmra.mrb[0].mxu0 %v3642
    %v3644 = vpop.f32.mrb[0].mxu0
    %v3645 = vadd.f32 %v3565, %v3644
    %v3646 = vpop.f32.mrb[0].mxu0
    %3647 = vdwg.mxu0
    %3648 = vmatprep.subr.mxu0 0.0
    %v3649 = vand.u32 %v1097, 4294901760
    %3650 = vmatpush1.msra.mxu0 %v3649
    %3651 = vmatprep.subr.mxu0 0.0
    %v3652 = vand.u32 %v1098, 4294901760
    %3653 = vmatpush1.msra.mxu0 %v3652
    %3654 = vmatprep.subr.mxu0 0.0
    %v3655 = vand.u32 %v1099, 4294901760
    %3656 = vmatpush1.msra.mxu0 %v3655
    %3657 = vmatprep.subr.mxu0 0.0
    %v3658 = vand.u32 %v1100, 4294901760
    %3659 = vmatpush1.msra.mxu0 %v3658
    %3660 = vmatprep.subr.mxu0 0.0
    %3661 = vmatpush1.msra.mxu0 0.0
    %3662 = vmatprep.subr.mxu0 0.0
    %3663 = vmatpush1.msra.mxu0 0.0
    %3664 = vmatprep.subr.mxu0 0.0
    %3665 = vmatpush1.msra.mxu0 0.0
    %3666 = vmatprep.subr.mxu0 0.0
    %3667 = vmatpush1.msra.mxu0 0.0
    %3668 = vmatprep.subr.mxu0 0.0
    %3669 = vmatpush1.msra.mxu0 0.0
    %3670 = vmatprep.subr.mxu0 0.0
    %3671 = vmatpush1.msra.mxu0 0.0
    %3672 = vmatprep.subr.mxu0 0.0
    %3673 = vmatpush1.msra.mxu0 0.0
    %3674 = vmatprep.subr.mxu0 0.0
    %3675 = vmatpush1.msra.mxu0 0.0
    %3676 = vmatprep.subr.mxu0 0.0
    %3677 = vmatpush1.msra.mxu0 0.0
    %3678 = vmatprep.subr.mxu0 0.0
    %3679 = vmatpush1.msra.mxu0 0.0
    %3680 = vmatprep.subr.mxu0 0.0
    %3681 = vmatpush1.msra.mxu0 0.0
    %3682 = vmatprep.subr.mxu0 0.0
    %3683 = vmatpush1.msra.mxu0 0.0
    %3684 = vmatprep.subr.mxu0 0.0
    %3685 = vmatpush1.msra.mxu0 0.0
    %3686 = vmatprep.subr.mxu0 0.0
    %3687 = vmatpush1.msra.mxu0 0.0
    %3688 = vmatprep.subr.mxu0 0.0
    %3689 = vmatpush1.msra.mxu0 0.0
    %3690 = vmatprep.subr.mxu0 0.0
    %3691 = vmatpush1.msra.mxu0 0.0
    %3692 = vmatprep.subr.mxu0 0.0
    %3693 = vmatpush1.msra.mxu0 0.0
    %3694 = vmatprep.subr.mxu0 0.0
    %3695 = vmatpush1.msra.mxu0 0.0
    %3696 = vmatprep.subr.mxu0 0.0
    %3697 = vmatpush1.msra.mxu0 0.0
    %3698 = vmatprep.subr.mxu0 0.0
    %3699 = vmatpush1.msra.mxu0 0.0
    %3700 = vmatprep.subr.mxu0 0.0
    %3701 = vmatpush1.msra.mxu0 0.0
    %3702 = vmatprep.subr.mxu0 0.0
    %3703 = vmatpush1.msra.mxu0 0.0
    %3704 = vmatprep.subr.mxu0 0.0
    %3705 = vmatpush1.msra.mxu0 0.0
    %3706 = vmatprep.subr.mxu0 0.0
    %3707 = vmatpush1.msra.mxu0 0.0
    %3708 = vmatprep.subr.mxu0 0.0
    %3709 = vmatpush1.msra.mxu0 0.0
    %3710 = vmatprep.subr.mxu0 0.0
    %3711 = vmatpush1.msra.mxu0 0.0
    %3712 = vmatprep.subr.mxu0 0.0
    %3713 = vmatpush1.msra.mxu0 0.0
    %3714 = vmatprep.subr.mxu0 0.0
    %3715 = vmatpush1.msra.mxu0 0.0
    %3716 = vmatprep.mubr.f32.mxu0 0.0
    %v3717 = vand.u32 %v3396, 4294901760
    %v3718 = vsub.f32 %v3396, %v3717
    %v3719 = vand.u32 %v3718, 4294901760
    %3720 = vmatmul.mubr.f32.gmra.mrb[0].mxu0 %v3719
    %v3721 = vpop.f32.mrb[0].mxu0
    %v3722 = vadd.f32 %v3645, %v3721
    %v3723 = vpop.f32.mrb[0].mxu0
    %3724 = vdwg.mxu0
    %3725 = vmatprep.subr.mxu0 0.0
    %v3726 = vand.u32 %v1097, 4294901760
    %v3727 = vsub.f32 %v1097, %v3726
    %v3728 = vand.u32 %v3727, 4294901760
    %3729 = vmatpush1.msra.mxu0 %v3728
    %3730 = vmatprep.subr.mxu0 0.0
    %v3731 = vand.u32 %v1098, 4294901760
    %v3732 = vsub.f32 %v1098, %v3731
    %v3733 = vand.u32 %v3732, 4294901760
    %3734 = vmatpush1.msra.mxu0 %v3733
    %3735 = vmatprep.subr.mxu0 0.0
    %v3736 = vand.u32 %v1099, 4294901760
    %v3737 = vsub.f32 %v1099, %v3736
    %v3738 = vand.u32 %v3737, 4294901760
    %3739 = vmatpush1.msra.mxu0 %v3738
    %3740 = vmatprep.subr.mxu0 0.0
    %v3741 = vand.u32 %v1100, 4294901760
    %v3742 = vsub.f32 %v1100, %v3741
    %v3743 = vand.u32 %v3742, 4294901760
    %3744 = vmatpush1.msra.mxu0 %v3743
    %3745 = vmatprep.subr.mxu0 0.0
    %3746 = vmatpush1.msra.mxu0 0.0
    %3747 = vmatprep.subr.mxu0 0.0
    %3748 = vmatpush1.msra.mxu0 0.0
    %3749 = vmatprep.subr.mxu0 0.0
    %3750 = vmatpush1.msra.mxu0 0.0
    %3751 = vmatprep.subr.mxu0 0.0
    %3752 = vmatpush1.msra.mxu0 0.0
    %3753 = vmatprep.subr.mxu0 0.0
    %3754 = vmatpush1.msra.mxu0 0.0
    %3755 = vmatprep.subr.mxu0 0.0
    %3756 = vmatpush1.msra.mxu0 0.0
    %3757 = vmatprep.subr.mxu0 0.0
    %3758 = vmatpush1.msra.mxu0 0.0
    %3759 = vmatprep.subr.mxu0 0.0
    %3760 = vmatpush1.msra.mxu0 0.0
    %3761 = vmatprep.subr.mxu0 0.0
    %3762 = vmatpush1.msra.mxu0 0.0
    %3763 = vmatprep.subr.mxu0 0.0
    %3764 = vmatpush1.msra.mxu0 0.0
    %3765 = vmatprep.subr.mxu0 0.0
    %3766 = vmatpush1.msra.mxu0 0.0
    %3767 = vmatprep.subr.mxu0 0.0
    %3768 = vmatpush1.msra.mxu0 0.0
    %3769 = vmatprep.subr.mxu0 0.0
    %3770 = vmatpush1.msra.mxu0 0.0
    %3771 = vmatprep.subr.mxu0 0.0
    %3772 = vmatpush1.msra.mxu0 0.0
    %3773 = vmatprep.subr.mxu0 0.0
    %3774 = vmatpush1.msra.mxu0 0.0
    %3775 = vmatprep.subr.mxu0 0.0
    %3776 = vmatpush1.msra.mxu0 0.0
    %3777 = vmatprep.subr.mxu0 0.0
    %3778 = vmatpush1.msra.mxu0 0.0
    %3779 = vmatprep.subr.mxu0 0.0
    %3780 = vmatpush1.msra.mxu0 0.0
    %3781 = vmatprep.subr.mxu0 0.0
    %3782 = vmatpush1.msra.mxu0 0.0
    %3783 = vmatprep.subr.mxu0 0.0
    %3784 = vmatpush1.msra.mxu0 0.0
    %3785 = vmatprep.subr.mxu0 0.0
    %3786 = vmatpush1.msra.mxu0 0.0
    %3787 = vmatprep.subr.mxu0 0.0
    %3788 = vmatpush1.msra.mxu0 0.0
    %3789 = vmatprep.subr.mxu0 0.0
    %3790 = vmatpush1.msra.mxu0 0.0
    %3791 = vmatprep.subr.mxu0 0.0
    %3792 = vmatpush1.msra.mxu0 0.0
    %3793 = vmatprep.subr.mxu0 0.0
    %3794 = vmatpush1.msra.mxu0 0.0
    %3795 = vmatprep.subr.mxu0 0.0
    %3796 = vmatpush1.msra.mxu0 0.0
    %3797 = vmatprep.subr.mxu0 0.0
    %3798 = vmatpush1.msra.mxu0 0.0
    %3799 = vmatprep.subr.mxu0 0.0
    %3800 = vmatpush1.msra.mxu0 0.0
    %3801 = vmatprep.mubr.f32.mxu0 0.0
    %v3802 = vand.u32 %v3396, 4294901760
    %3803 = vmatmul.mubr.f32.gmra.mrb[0].mxu0 %v3802
    %v3804 = vpop.f32.mrb[0].mxu0
    %v3805 = vadd.f32 %v3722, %v3804
    %v3806 = vpop.f32.mrb[0].mxu0
    %3807 = vdwg.mxu0
    %3808 = vmatprep.subr.mxu0 0.0
    %v3809 = vand.u32 %v1097, 4294901760
    %3810 = vmatpush1.msra.mxu0 %v3809
    %3811 = vmatprep.subr.mxu0 0.0
    %v3812 = vand.u32 %v1098, 4294901760
    %3813 = vmatpush1.msra.mxu0 %v3812
    %3814 = vmatprep.subr.mxu0 0.0
    %v3815 = vand.u32 %v1099, 4294901760
    %3816 = vmatpush1.msra.mxu0 %v3815
    %3817 = vmatprep.subr.mxu0 0.0
    %v3818 = vand.u32 %v1100, 4294901760
    %3819 = vmatpush1.msra.mxu0 %v3818
    %3820 = vmatprep.subr.mxu0 0.0
    %3821 = vmatpush1.msra.mxu0 0.0
    %3822 = vmatprep.subr.mxu0 0.0
    %3823 = vmatpush1.msra.mxu0 0.0
    %3824 = vmatprep.subr.mxu0 0.0
    %3825 = vmatpush1.msra.mxu0 0.0
    %3826 = vmatprep.subr.mxu0 0.0
    %3827 = vmatpush1.msra.mxu0 0.0
    %3828 = vmatprep.subr.mxu0 0.0
    %3829 = vmatpush1.msra.mxu0 0.0
    %3830 = vmatprep.subr.mxu0 0.0
    %3831 = vmatpush1.msra.mxu0 0.0
    %3832 = vmatprep.subr.mxu0 0.0
    %3833 = vmatpush1.msra.mxu0 0.0
    %3834 = vmatprep.subr.mxu0 0.0
    %3835 = vmatpush1.msra.mxu0 0.0
    %3836 = vmatprep.subr.mxu0 0.0
    %3837 = vmatpush1.msra.mxu0 0.0
    %3838 = vmatprep.subr.mxu0 0.0
    %3839 = vmatpush1.msra.mxu0 0.0
    %3840 = vmatprep.subr.mxu0 0.0
    %3841 = vmatpush1.msra.mxu0 0.0
    %3842 = vmatprep.subr.mxu0 0.0
    %3843 = vmatpush1.msra.mxu0 0.0
    %3844 = vmatprep.subr.mxu0 0.0
    %3845 = vmatpush1.msra.mxu0 0.0
    %3846 = vmatprep.subr.mxu0 0.0
    %3847 = vmatpush1.msra.mxu0 0.0
    %3848 = vmatprep.subr.mxu0 0.0
    %3849 = vmatpush1.msra.mxu0 0.0
    %3850 = vmatprep.subr.mxu0 0.0
    %3851 = vmatpush1.msra.mxu0 0.0
    %3852 = vmatprep.subr.mxu0 0.0
    %3853 = vmatpush1.msra.mxu0 0.0
    %3854 = vmatprep.subr.mxu0 0.0
    %3855 = vmatpush1.msra.mxu0 0.0
    %3856 = vmatprep.subr.mxu0 0.0
    %3857 = vmatpush1.msra.mxu0 0.0
    %3858 = vmatprep.subr.mxu0 0.0
    %3859 = vmatpush1.msra.mxu0 0.0
    %3860 = vmatprep.subr.mxu0 0.0
    %3861 = vmatpush1.msra.mxu0 0.0
    %3862 = vmatprep.subr.mxu0 0.0
    %3863 = vmatpush1.msra.mxu0 0.0
    %3864 = vmatprep.subr.mxu0 0.0
    %3865 = vmatpush1.msra.mxu0 0.0
    %3866 = vmatprep.subr.mxu0 0.0
    %3867 = vmatpush1.msra.mxu0 0.0
    %3868 = vmatprep.subr.mxu0 0.0
    %3869 = vmatpush1.msra.mxu0 0.0
    %3870 = vmatprep.subr.mxu0 0.0
    %3871 = vmatpush1.msra.mxu0 0.0
    %3872 = vmatprep.subr.mxu0 0.0
    %3873 = vmatpush1.msra.mxu0 0.0
    %3874 = vmatprep.subr.mxu0 0.0
    %3875 = vmatpush1.msra.mxu0 0.0
    %3876 = vmatprep.mubr.f32.mxu0 0.0
    %v3877 = vand.u32 %v3396, 4294901760
    %3878 = vmatmul.mubr.f32.gmra.mrb[0].mxu0 %v3877
    %v3879 = vpop.f32.mrb[0].mxu0
    %v3880 = vadd.f32 %v3805, %v3879
    %v3881 = vpop.f32.mrb[0].mxu0
    %3882 = vdwg.mxu0
    %v3884 = vrot.slane %v3880, 4
    %v3885 = vrot.slane %v3880, 5
    %v3888 = vadd.f32 %v1095, %v3884
    %v3889 = vadd.f32 %v1096, %v3885
    %v3890 = vxor.u32 %v3888, 2147483648
    %v3891 = vxor.u32 %v3889, 2147483648
    %v3892 = vmul.f32 %v3890, 1.442695
    %v3893 = vpow.pop %v3892
    %v3894 = vmul.f32 %v3891, 1.442695
    %v3895 = vpow.pop %v3894
    %v3896 = vadd.f32 %v3893, 1.0
    %v3897 = vadd.f32 %v3895, 1.0
    %v3898 = vrcp.pop %v3896
    %v3899 = vmul.f32 1.0, %v3898
    %v3900 = vrcp.pop %v3897
    %v3901 = vmul.f32 1.0, %v3900
    %v3902 = vmul.f32 %v3899, 2.0
    %v3903 = vmul.f32 %v3901, 2.0
    %v3904 = vsub.f32 %v3902, 1.0
    %v3905 = vsub.f32 %v3903, 1.0
    %v3908 = vrot.slane %v3361, 7
    %v3909 = vrot.slane %v3362, 7
    %v3912 = vmul.f32 %v3899, %v3908
    %v3913 = vmul.f32 %v3901, %v3909
    %3916 = vrot.lane.b32.xlu0 %v3904, 64
    %v3917 = vpop.permute.xlu0 %3916
    %3918 = vrot.lane.b32.xlu0 %v3905, 64
    %v3919 = vpop.permute.xlu0 %3918
    %v3922 = vmul.f32 %v3899, %v3917
    %v3923 = vmul.f32 %v3901, %v3919
    %3926 = vrot.lane.b32.xlu0 %v3922, 32
    %v3927 = vpop.permute.xlu0 %3926
    %3928 = vrot.lane.b32.xlu0 %v3923, 32
    %v3929 = vpop.permute.xlu0 %3928
    %v3932 = vadd.f32 %v3912, %v3927
    %v3933 = vadd.f32 %v3913, %v3929
    %v3934 = vtanh.pop %v3932
    %v3935 = vtanh.pop %v3933
    %3938 = vrot.lane.b32.xlu0 %v3934, 64
    %v3939 = vpop.permute.xlu0 %3938
    %3940 = vrot.lane.b32.xlu0 %v3935, 64
    %v3941 = vpop.permute.xlu0 %3940
    %v3944 = vmul.f32 %v3899, %v3939
    %v3945 = vmul.f32 %v3901, %v3941
    %v3946 = vmul.f32 %v3944, %v1663
    %v3947 = vmul.f32 %v3945, %v1663
    %v3950 = vrot.slane %v3947, 7
    %vm3951 = vcmask 1045509
    %v3952 = vsel %vm3951, %v3950, %v3946
    %3953 = vrot.lane.b32.xlu0 %v3952, 32
    %v3954 = vpop.permute.xlu0 %3953
    %vm3956 = vcmask 259076
    %v3957 = vsel %vm3956, %v3954, 0.0
    %3958 = vadd.xlane.f32.xlu0 %v3957
    %v3959 = vpop.xlane.xlu0 %3958
    %v3962 = vrot.slane %v3944, 4
    %v3963 = vrot.slane %v3945, 3
    %v3964 = vsel %vm1670, %v3963, %v3962
    %3965 = vrot.lane.b32.xlu0 %v3964, 32
    %v3966 = vpop.permute.xlu0 %3965
    %v3967 = vsel %vm1104, %v3966, 0
    %3969 = vmatprep.subr.mxu0 0.0
    %v3970 = vand.u32 %v1097, 4294901760
    %3971 = vmatpush1.msra.mxu0 %v3970
    %3972 = vmatprep.subr.mxu0 0.0
    %v3973 = vand.u32 %v1098, 4294901760
    %3974 = vmatpush1.msra.mxu0 %v3973
    %3975 = vmatprep.subr.mxu0 0.0
    %v3976 = vand.u32 %v1099, 4294901760
    %3977 = vmatpush1.msra.mxu0 %v3976
    %3978 = vmatprep.subr.mxu0 0.0
    %v3979 = vand.u32 %v1100, 4294901760
    %3980 = vmatpush1.msra.mxu0 %v3979
    %3981 = vmatprep.subr.mxu0 0.0
    %3982 = vmatpush1.msra.mxu0 0.0
    %3983 = vmatprep.subr.mxu0 0.0
    %3984 = vmatpush1.msra.mxu0 0.0
    %3985 = vmatprep.subr.mxu0 0.0
    %3986 = vmatpush1.msra.mxu0 0.0
    %3987 = vmatprep.subr.mxu0 0.0
    %3988 = vmatpush1.msra.mxu0 0.0
    %3989 = vmatprep.subr.mxu0 0.0
    %3990 = vmatpush1.msra.mxu0 0.0
    %3991 = vmatprep.subr.mxu0 0.0
    %3992 = vmatpush1.msra.mxu0 0.0
    %3993 = vmatprep.subr.mxu0 0.0
    %3994 = vmatpush1.msra.mxu0 0.0
    %3995 = vmatprep.subr.mxu0 0.0
    %3996 = vmatpush1.msra.mxu0 0.0
    %3997 = vmatprep.subr.mxu0 0.0
    %3998 = vmatpush1.msra.mxu0 0.0
    %3999 = vmatprep.subr.mxu0 0.0
    %4000 = vmatpush1.msra.mxu0 0.0
    %4001 = vmatprep.subr.mxu0 0.0
    %4002 = vmatpush1.msra.mxu0 0.0
    %4003 = vmatprep.subr.mxu0 0.0
    %4004 = vmatpush1.msra.mxu0 0.0
    %4005 = vmatprep.subr.mxu0 0.0
    %4006 = vmatpush1.msra.mxu0 0.0
    %4007 = vmatprep.subr.mxu0 0.0
    %4008 = vmatpush1.msra.mxu0 0.0
    %4009 = vmatprep.subr.mxu0 0.0
    %4010 = vmatpush1.msra.mxu0 0.0
    %4011 = vmatprep.subr.mxu0 0.0
    %4012 = vmatpush1.msra.mxu0 0.0
    %4013 = vmatprep.subr.mxu0 0.0
    %4014 = vmatpush1.msra.mxu0 0.0
    %4015 = vmatprep.subr.mxu0 0.0
    %4016 = vmatpush1.msra.mxu0 0.0
    %4017 = vmatprep.subr.mxu0 0.0
    %4018 = vmatpush1.msra.mxu0 0.0
    %4019 = vmatprep.subr.mxu0 0.0
    %4020 = vmatpush1.msra.mxu0 0.0
    %4021 = vmatprep.subr.mxu0 0.0
    %4022 = vmatpush1.msra.mxu0 0.0
    %4023 = vmatprep.subr.mxu0 0.0
    %4024 = vmatpush1.msra.mxu0 0.0
    %4025 = vmatprep.subr.mxu0 0.0
    %4026 = vmatpush1.msra.mxu0 0.0
    %4027 = vmatprep.subr.mxu0 0.0
    %4028 = vmatpush1.msra.mxu0 0.0
    %4029 = vmatprep.subr.mxu0 0.0
    %4030 = vmatpush1.msra.mxu0 0.0
    %4031 = vmatprep.subr.mxu0 0.0
    %4032 = vmatpush1.msra.mxu0 0.0
    %4033 = vmatprep.subr.mxu0 0.0
    %4034 = vmatpush1.msra.mxu0 0.0
    %4035 = vmatprep.subr.mxu0 0.0
    %4036 = vmatpush1.msra.mxu0 0.0
    %4037 = vmatprep.mubr.f32.mxu0 0.0
    %v4038 = vand.u32 %v3967, 4294901760
    %v4039 = vsub.f32 %v3967, %v4038
    %v4040 = vand.u32 %v4039, 4294901760
    %v4041 = vsub.f32 %v4039, %v4040
    %v4042 = vand.u32 %v4041, 4294901760
    %4043 = vmatmul.mubr.f32.gmra.mrb[0].mxu0 %v4042
    %v4044 = vpop.f32.mrb[0].mxu0
    %v4045 = vadd.f32 0.0, %v4044
    %v4046 = vpop.f32.mrb[0].mxu0
    %4047 = vdwg.mxu0
    %4048 = vmatprep.subr.mxu0 0.0
    %v4049 = vand.u32 %v1097, 4294901760
    %v4050 = vsub.f32 %v1097, %v4049
    %v4051 = vand.u32 %v4050, 4294901760
    %v4052 = vsub.f32 %v4050, %v4051
    %v4053 = vand.u32 %v4052, 4294901760
    %4054 = vmatpush1.msra.mxu0 %v4053
    %4055 = vmatprep.subr.mxu0 0.0
    %v4056 = vand.u32 %v1098, 4294901760
    %v4057 = vsub.f32 %v1098, %v4056
    %v4058 = vand.u32 %v4057, 4294901760
    %v4059 = vsub.f32 %v4057, %v4058
    %v4060 = vand.u32 %v4059, 4294901760
    %4061 = vmatpush1.msra.mxu0 %v4060
    %4062 = vmatprep.subr.mxu0 0.0
    %v4063 = vand.u32 %v1099, 4294901760
    %v4064 = vsub.f32 %v1099, %v4063
    %v4065 = vand.u32 %v4064, 4294901760
    %v4066 = vsub.f32 %v4064, %v4065
    %v4067 = vand.u32 %v4066, 4294901760
    %4068 = vmatpush1.msra.mxu0 %v4067
    %4069 = vmatprep.subr.mxu0 0.0
    %v4070 = vand.u32 %v1100, 4294901760
    %v4071 = vsub.f32 %v1100, %v4070
    %v4072 = vand.u32 %v4071, 4294901760
    %v4073 = vsub.f32 %v4071, %v4072
    %v4074 = vand.u32 %v4073, 4294901760
    %4075 = vmatpush1.msra.mxu0 %v4074
    %4076 = vmatprep.subr.mxu0 0.0
    %4077 = vmatpush1.msra.mxu0 0.0
    %4078 = vmatprep.subr.mxu0 0.0
    %4079 = vmatpush1.msra.mxu0 0.0
    %4080 = vmatprep.subr.mxu0 0.0
    %4081 = vmatpush1.msra.mxu0 0.0
    %4082 = vmatprep.subr.mxu0 0.0
    %4083 = vmatpush1.msra.mxu0 0.0
    %4084 = vmatprep.subr.mxu0 0.0
    %4085 = vmatpush1.msra.mxu0 0.0
    %4086 = vmatprep.subr.mxu0 0.0
    %4087 = vmatpush1.msra.mxu0 0.0
    %4088 = vmatprep.subr.mxu0 0.0
    %4089 = vmatpush1.msra.mxu0 0.0
    %4090 = vmatprep.subr.mxu0 0.0
    %4091 = vmatpush1.msra.mxu0 0.0
    %4092 = vmatprep.subr.mxu0 0.0
    %4093 = vmatpush1.msra.mxu0 0.0
    %4094 = vmatprep.subr.mxu0 0.0
    %4095 = vmatpush1.msra.mxu0 0.0
    %4096 = vmatprep.subr.mxu0 0.0
    %4097 = vmatpush1.msra.mxu0 0.0
    %4098 = vmatprep.subr.mxu0 0.0
    %4099 = vmatpush1.msra.mxu0 0.0
    %4100 = vmatprep.subr.mxu0 0.0
    %4101 = vmatpush1.msra.mxu0 0.0
    %4102 = vmatprep.subr.mxu0 0.0
    %4103 = vmatpush1.msra.mxu0 0.0
    %4104 = vmatprep.subr.mxu0 0.0
    %4105 = vmatpush1.msra.mxu0 0.0
    %4106 = vmatprep.subr.mxu0 0.0
    %4107 = vmatpush1.msra.mxu0 0.0
    %4108 = vmatprep.subr.mxu0 0.0
    %4109 = vmatpush1.msra.mxu0 0.0
    %4110 = vmatprep.subr.mxu0 0.0
    %4111 = vmatpush1.msra.mxu0 0.0
    %4112 = vmatprep.subr.mxu0 0.0
    %4113 = vmatpush1.msra.mxu0 0.0
    %4114 = vmatprep.subr.mxu0 0.0
    %4115 = vmatpush1.msra.mxu0 0.0
    %4116 = vmatprep.subr.mxu0 0.0
    %4117 = vmatpush1.msra.mxu0 0.0
    %4118 = vmatprep.subr.mxu0 0.0
    %4119 = vmatpush1.msra.mxu0 0.0
    %4120 = vmatprep.subr.mxu0 0.0
    %4121 = vmatpush1.msra.mxu0 0.0
    %4122 = vmatprep.subr.mxu0 0.0
    %4123 = vmatpush1.msra.mxu0 0.0
    %4124 = vmatprep.subr.mxu0 0.0
    %4125 = vmatpush1.msra.mxu0 0.0
    %4126 = vmatprep.subr.mxu0 0.0
    %4127 = vmatpush1.msra.mxu0 0.0
    %4128 = vmatprep.subr.mxu0 0.0
    %4129 = vmatpush1.msra.mxu0 0.0
    %4130 = vmatprep.subr.mxu0 0.0
    %4131 = vmatpush1.msra.mxu0 0.0
    %4132 = vmatprep.mubr.f32.mxu0 0.0
    %v4133 = vand.u32 %v3967, 4294901760
    %4134 = vmatmul.mubr.f32.gmra.mrb[0].mxu0 %v4133
    %v4135 = vpop.f32.mrb[0].mxu0
    %v4136 = vadd.f32 %v4045, %v4135
    %v4137 = vpop.f32.mrb[0].mxu0
    %4138 = vdwg.mxu0
    %4139 = vmatprep.subr.mxu0 0.0
    %v4140 = vand.u32 %v1097, 4294901760
    %v4141 = vsub.f32 %v1097, %v4140
    %4142 = vmatpush1.msra.mxu0 %v4141
    %4143 = vmatprep.subr.mxu0 0.0
    %v4144 = vand.u32 %v1098, 4294901760
    %v4145 = vsub.f32 %v1098, %v4144
    %4146 = vmatpush1.msra.mxu0 %v4145
    %4147 = vmatprep.subr.mxu0 0.0
    %v4148 = vand.u32 %v1099, 4294901760
    %v4149 = vsub.f32 %v1099, %v4148
    %4150 = vmatpush1.msra.mxu0 %v4149
    %4151 = vmatprep.subr.mxu0 0.0
    %v4152 = vand.u32 %v1100, 4294901760
    %v4153 = vsub.f32 %v1100, %v4152
    %4154 = vmatpush1.msra.mxu0 %v4153
    %4155 = vmatprep.subr.mxu0 0.0
    %4156 = vmatpush1.msra.mxu0 0.0
    %4157 = vmatprep.subr.mxu0 0.0
    %4158 = vmatpush1.msra.mxu0 0.0
    %4159 = vmatprep.subr.mxu0 0.0
    %4160 = vmatpush1.msra.mxu0 0.0
    %4161 = vmatprep.subr.mxu0 0.0
    %4162 = vmatpush1.msra.mxu0 0.0
    %4163 = vmatprep.subr.mxu0 0.0
    %4164 = vmatpush1.msra.mxu0 0.0
    %4165 = vmatprep.subr.mxu0 0.0
    %4166 = vmatpush1.msra.mxu0 0.0
    %4167 = vmatprep.subr.mxu0 0.0
    %4168 = vmatpush1.msra.mxu0 0.0
    %4169 = vmatprep.subr.mxu0 0.0
    %4170 = vmatpush1.msra.mxu0 0.0
    %4171 = vmatprep.subr.mxu0 0.0
    %4172 = vmatpush1.msra.mxu0 0.0
    %4173 = vmatprep.subr.mxu0 0.0
    %4174 = vmatpush1.msra.mxu0 0.0
    %4175 = vmatprep.subr.mxu0 0.0
    %4176 = vmatpush1.msra.mxu0 0.0
    %4177 = vmatprep.subr.mxu0 0.0
    %4178 = vmatpush1.msra.mxu0 0.0
    %4179 = vmatprep.subr.mxu0 0.0
    %4180 = vmatpush1.msra.mxu0 0.0
    %4181 = vmatprep.subr.mxu0 0.0
    %4182 = vmatpush1.msra.mxu0 0.0
    %4183 = vmatprep.subr.mxu0 0.0
    %4184 = vmatpush1.msra.mxu0 0.0
    %4185 = vmatprep.subr.mxu0 0.0
    %4186 = vmatpush1.msra.mxu0 0.0
    %4187 = vmatprep.subr.mxu0 0.0
    %4188 = vmatpush1.msra.mxu0 0.0
    %4189 = vmatprep.subr.mxu0 0.0
    %4190 = vmatpush1.msra.mxu0 0.0
    %4191 = vmatprep.subr.mxu0 0.0
    %4192 = vmatpush1.msra.mxu0 0.0
    %4193 = vmatprep.subr.mxu0 0.0
    %4194 = vmatpush1.msra.mxu0 0.0
    %4195 = vmatprep.subr.mxu0 0.0
    %4196 = vmatpush1.msra.mxu0 0.0
    %4197 = vmatprep.subr.mxu0 0.0
    %4198 = vmatpush1.msra.mxu0 0.0
    %4199 = vmatprep.subr.mxu0 0.0
    %4200 = vmatpush1.msra.mxu0 0.0
    %4201 = vmatprep.subr.mxu0 0.0
    %4202 = vmatpush1.msra.mxu0 0.0
    %4203 = vmatprep.subr.mxu0 0.0
    %4204 = vmatpush1.msra.mxu0 0.0
    %4205 = vmatprep.subr.mxu0 0.0
    %4206 = vmatpush1.msra.mxu0 0.0
    %4207 = vmatprep.subr.mxu0 0.0
    %4208 = vmatpush1.msra.mxu0 0.0
    %4209 = vmatprep.subr.mxu0 0.0
    %4210 = vmatpush1.msra.mxu0 0.0
    %4211 = vmatprep.mubr.f32.mxu0 0.0
    %v4212 = vand.u32 %v3967, 4294901760
    %v4213 = vsub.f32 %v3967, %v4212
    %4214 = vmatmul.mubr.f32.gmra.mrb[0].mxu0 %v4213
    %v4215 = vpop.f32.mrb[0].mxu0
    %v4216 = vadd.f32 %v4136, %v4215
    %v4217 = vpop.f32.mrb[0].mxu0
    %4218 = vdwg.mxu0
    %4219 = vmatprep.subr.mxu0 0.0
    %v4220 = vand.u32 %v1097, 4294901760
    %4221 = vmatpush1.msra.mxu0 %v4220
    %4222 = vmatprep.subr.mxu0 0.0
    %v4223 = vand.u32 %v1098, 4294901760
    %4224 = vmatpush1.msra.mxu0 %v4223
    %4225 = vmatprep.subr.mxu0 0.0
    %v4226 = vand.u32 %v1099, 4294901760
    %4227 = vmatpush1.msra.mxu0 %v4226
    %4228 = vmatprep.subr.mxu0 0.0
    %v4229 = vand.u32 %v1100, 4294901760
    %4230 = vmatpush1.msra.mxu0 %v4229
    %4231 = vmatprep.subr.mxu0 0.0
    %4232 = vmatpush1.msra.mxu0 0.0
    %4233 = vmatprep.subr.mxu0 0.0
    %4234 = vmatpush1.msra.mxu0 0.0
    %4235 = vmatprep.subr.mxu0 0.0
    %4236 = vmatpush1.msra.mxu0 0.0
    %4237 = vmatprep.subr.mxu0 0.0
    %4238 = vmatpush1.msra.mxu0 0.0
    %4239 = vmatprep.subr.mxu0 0.0
    %4240 = vmatpush1.msra.mxu0 0.0
    %4241 = vmatprep.subr.mxu0 0.0
    %4242 = vmatpush1.msra.mxu0 0.0
    %4243 = vmatprep.subr.mxu0 0.0
    %4244 = vmatpush1.msra.mxu0 0.0
    %4245 = vmatprep.subr.mxu0 0.0
    %4246 = vmatpush1.msra.mxu0 0.0
    %4247 = vmatprep.subr.mxu0 0.0
    %4248 = vmatpush1.msra.mxu0 0.0
    %4249 = vmatprep.subr.mxu0 0.0
    %4250 = vmatpush1.msra.mxu0 0.0
    %4251 = vmatprep.subr.mxu0 0.0
    %4252 = vmatpush1.msra.mxu0 0.0
    %4253 = vmatprep.subr.mxu0 0.0
    %4254 = vmatpush1.msra.mxu0 0.0
    %4255 = vmatprep.subr.mxu0 0.0
    %4256 = vmatpush1.msra.mxu0 0.0
    %4257 = vmatprep.subr.mxu0 0.0
    %4258 = vmatpush1.msra.mxu0 0.0
    %4259 = vmatprep.subr.mxu0 0.0
    %4260 = vmatpush1.msra.mxu0 0.0
    %4261 = vmatprep.subr.mxu0 0.0
    %4262 = vmatpush1.msra.mxu0 0.0
    %4263 = vmatprep.subr.mxu0 0.0
    %4264 = vmatpush1.msra.mxu0 0.0
    %4265 = vmatprep.subr.mxu0 0.0
    %4266 = vmatpush1.msra.mxu0 0.0
    %4267 = vmatprep.subr.mxu0 0.0
    %4268 = vmatpush1.msra.mxu0 0.0
    %4269 = vmatprep.subr.mxu0 0.0
    %4270 = vmatpush1.msra.mxu0 0.0
    %4271 = vmatprep.subr.mxu0 0.0
    %4272 = vmatpush1.msra.mxu0 0.0
    %4273 = vmatprep.subr.mxu0 0.0
    %4274 = vmatpush1.msra.mxu0 0.0
    %4275 = vmatprep.subr.mxu0 0.0
    %4276 = vmatpush1.msra.mxu0 0.0
    %4277 = vmatprep.subr.mxu0 0.0
    %4278 = vmatpush1.msra.mxu0 0.0
    %4279 = vmatprep.subr.mxu0 0.0
    %4280 = vmatpush1.msra.mxu0 0.0
    %4281 = vmatprep.subr.mxu0 0.0
    %4282 = vmatpush1.msra.mxu0 0.0
    %4283 = vmatprep.subr.mxu0 0.0
    %4284 = vmatpush1.msra.mxu0 0.0
    %4285 = vmatprep.subr.mxu0 0.0
    %4286 = vmatpush1.msra.mxu0 0.0
    %4287 = vmatprep.mubr.f32.mxu0 0.0
    %v4288 = vand.u32 %v3967, 4294901760
    %v4289 = vsub.f32 %v3967, %v4288
    %v4290 = vand.u32 %v4289, 4294901760
    %4291 = vmatmul.mubr.f32.gmra.mrb[0].mxu0 %v4290
    %v4292 = vpop.f32.mrb[0].mxu0
    %v4293 = vadd.f32 %v4216, %v4292
    %v4294 = vpop.f32.mrb[0].mxu0
    %4295 = vdwg.mxu0
    %4296 = vmatprep.subr.mxu0 0.0
    %v4297 = vand.u32 %v1097, 4294901760
    %v4298 = vsub.f32 %v1097, %v4297
    %v4299 = vand.u32 %v4298, 4294901760
    %4300 = vmatpush1.msra.mxu0 %v4299
    %4301 = vmatprep.subr.mxu0 0.0
    %v4302 = vand.u32 %v1098, 4294901760
    %v4303 = vsub.f32 %v1098, %v4302
    %v4304 = vand.u32 %v4303, 4294901760
    %4305 = vmatpush1.msra.mxu0 %v4304
    %4306 = vmatprep.subr.mxu0 0.0
    %v4307 = vand.u32 %v1099, 4294901760
    %v4308 = vsub.f32 %v1099, %v4307
    %v4309 = vand.u32 %v4308, 4294901760
    %4310 = vmatpush1.msra.mxu0 %v4309
    %4311 = vmatprep.subr.mxu0 0.0
    %v4312 = vand.u32 %v1100, 4294901760
    %v4313 = vsub.f32 %v1100, %v4312
    %v4314 = vand.u32 %v4313, 4294901760
    %4315 = vmatpush1.msra.mxu0 %v4314
    %4316 = vmatprep.subr.mxu0 0.0
    %4317 = vmatpush1.msra.mxu0 0.0
    %4318 = vmatprep.subr.mxu0 0.0
    %4319 = vmatpush1.msra.mxu0 0.0
    %4320 = vmatprep.subr.mxu0 0.0
    %4321 = vmatpush1.msra.mxu0 0.0
    %4322 = vmatprep.subr.mxu0 0.0
    %4323 = vmatpush1.msra.mxu0 0.0
    %4324 = vmatprep.subr.mxu0 0.0
    %4325 = vmatpush1.msra.mxu0 0.0
    %4326 = vmatprep.subr.mxu0 0.0
    %4327 = vmatpush1.msra.mxu0 0.0
    %4328 = vmatprep.subr.mxu0 0.0
    %4329 = vmatpush1.msra.mxu0 0.0
    %4330 = vmatprep.subr.mxu0 0.0
    %4331 = vmatpush1.msra.mxu0 0.0
    %4332 = vmatprep.subr.mxu0 0.0
    %4333 = vmatpush1.msra.mxu0 0.0
    %4334 = vmatprep.subr.mxu0 0.0
    %4335 = vmatpush1.msra.mxu0 0.0
    %4336 = vmatprep.subr.mxu0 0.0
    %4337 = vmatpush1.msra.mxu0 0.0
    %4338 = vmatprep.subr.mxu0 0.0
    %4339 = vmatpush1.msra.mxu0 0.0
    %4340 = vmatprep.subr.mxu0 0.0
    %4341 = vmatpush1.msra.mxu0 0.0
    %4342 = vmatprep.subr.mxu0 0.0
    %4343 = vmatpush1.msra.mxu0 0.0
    %4344 = vmatprep.subr.mxu0 0.0
    %4345 = vmatpush1.msra.mxu0 0.0
    %4346 = vmatprep.subr.mxu0 0.0
    %4347 = vmatpush1.msra.mxu0 0.0
    %4348 = vmatprep.subr.mxu0 0.0
    %4349 = vmatpush1.msra.mxu0 0.0
    %4350 = vmatprep.subr.mxu0 0.0
    %4351 = vmatpush1.msra.mxu0 0.0
    %4352 = vmatprep.subr.mxu0 0.0
    %4353 = vmatpush1.msra.mxu0 0.0
    %4354 = vmatprep.subr.mxu0 0.0
    %4355 = vmatpush1.msra.mxu0 0.0
    %4356 = vmatprep.subr.mxu0 0.0
    %4357 = vmatpush1.msra.mxu0 0.0
    %4358 = vmatprep.subr.mxu0 0.0
    %4359 = vmatpush1.msra.mxu0 0.0
    %4360 = vmatprep.subr.mxu0 0.0
    %4361 = vmatpush1.msra.mxu0 0.0
    %4362 = vmatprep.subr.mxu0 0.0
    %4363 = vmatpush1.msra.mxu0 0.0
    %4364 = vmatprep.subr.mxu0 0.0
    %4365 = vmatpush1.msra.mxu0 0.0
    %4366 = vmatprep.subr.mxu0 0.0
    %4367 = vmatpush1.msra.mxu0 0.0
    %4368 = vmatprep.subr.mxu0 0.0
    %4369 = vmatpush1.msra.mxu0 0.0
    %4370 = vmatprep.subr.mxu0 0.0
    %4371 = vmatpush1.msra.mxu0 0.0
    %4372 = vmatprep.mubr.f32.mxu0 0.0
    %v4373 = vand.u32 %v3967, 4294901760
    %4374 = vmatmul.mubr.f32.gmra.mrb[0].mxu0 %v4373
    %v4375 = vpop.f32.mrb[0].mxu0
    %v4376 = vadd.f32 %v4293, %v4375
    %v4377 = vpop.f32.mrb[0].mxu0
    %4378 = vdwg.mxu0
    %4379 = vmatprep.subr.mxu0 0.0
    %v4380 = vand.u32 %v1097, 4294901760
    %4381 = vmatpush1.msra.mxu0 %v4380
    %4382 = vmatprep.subr.mxu0 0.0
    %v4383 = vand.u32 %v1098, 4294901760
    %4384 = vmatpush1.msra.mxu0 %v4383
    %4385 = vmatprep.subr.mxu0 0.0
    %v4386 = vand.u32 %v1099, 4294901760
    %4387 = vmatpush1.msra.mxu0 %v4386
    %4388 = vmatprep.subr.mxu0 0.0
    %v4389 = vand.u32 %v1100, 4294901760
    %4390 = vmatpush1.msra.mxu0 %v4389
    %4391 = vmatprep.subr.mxu0 0.0
    %4392 = vmatpush1.msra.mxu0 0.0
    %4393 = vmatprep.subr.mxu0 0.0
    %4394 = vmatpush1.msra.mxu0 0.0
    %4395 = vmatprep.subr.mxu0 0.0
    %4396 = vmatpush1.msra.mxu0 0.0
    %4397 = vmatprep.subr.mxu0 0.0
    %4398 = vmatpush1.msra.mxu0 0.0
    %4399 = vmatprep.subr.mxu0 0.0
    %4400 = vmatpush1.msra.mxu0 0.0
    %4401 = vmatprep.subr.mxu0 0.0
    %4402 = vmatpush1.msra.mxu0 0.0
    %4403 = vmatprep.subr.mxu0 0.0
    %4404 = vmatpush1.msra.mxu0 0.0
    %4405 = vmatprep.subr.mxu0 0.0
    %4406 = vmatpush1.msra.mxu0 0.0
    %4407 = vmatprep.subr.mxu0 0.0
    %4408 = vmatpush1.msra.mxu0 0.0
    %4409 = vmatprep.subr.mxu0 0.0
    %4410 = vmatpush1.msra.mxu0 0.0
    %4411 = vmatprep.subr.mxu0 0.0
    %4412 = vmatpush1.msra.mxu0 0.0
    %4413 = vmatprep.subr.mxu0 0.0
    %4414 = vmatpush1.msra.mxu0 0.0
    %4415 = vmatprep.subr.mxu0 0.0
    %4416 = vmatpush1.msra.mxu0 0.0
    %4417 = vmatprep.subr.mxu0 0.0
    %4418 = vmatpush1.msra.mxu0 0.0
    %4419 = vmatprep.subr.mxu0 0.0
    %4420 = vmatpush1.msra.mxu0 0.0
    %4421 = vmatprep.subr.mxu0 0.0
    %4422 = vmatpush1.msra.mxu0 0.0
    %4423 = vmatprep.subr.mxu0 0.0
    %4424 = vmatpush1.msra.mxu0 0.0
    %4425 = vmatprep.subr.mxu0 0.0
    %4426 = vmatpush1.msra.mxu0 0.0
    %4427 = vmatprep.subr.mxu0 0.0
    %4428 = vmatpush1.msra.mxu0 0.0
    %4429 = vmatprep.subr.mxu0 0.0
    %4430 = vmatpush1.msra.mxu0 0.0
    %4431 = vmatprep.subr.mxu0 0.0
    %4432 = vmatpush1.msra.mxu0 0.0
    %4433 = vmatprep.subr.mxu0 0.0
    %4434 = vmatpush1.msra.mxu0 0.0
    %4435 = vmatprep.subr.mxu0 0.0
    %4436 = vmatpush1.msra.mxu0 0.0
    %4437 = vmatprep.subr.mxu0 0.0
    %4438 = vmatpush1.msra.mxu0 0.0
    %4439 = vmatprep.subr.mxu0 0.0
    %4440 = vmatpush1.msra.mxu0 0.0
    %4441 = vmatprep.subr.mxu0 0.0
    %4442 = vmatpush1.msra.mxu0 0.0
    %4443 = vmatprep.subr.mxu0 0.0
    %4444 = vmatpush1.msra.mxu0 0.0
    %4445 = vmatprep.subr.mxu0 0.0
    %4446 = vmatpush1.msra.mxu0 0.0
    %4447 = vmatprep.mubr.f32.mxu0 0.0
    %v4448 = vand.u32 %v3967, 4294901760
    %4449 = vmatmul.mubr.f32.gmra.mrb[0].mxu0 %v4448
    %v4450 = vpop.f32.mrb[0].mxu0
    %v4451 = vadd.f32 %v4376, %v4450
    %v4452 = vpop.f32.mrb[0].mxu0
    %4453 = vdwg.mxu0
    %v4455 = vrot.slane %v4451, 3
    %v4456 = vrot.slane %v4451, 4
    %v4459 = vadd.f32 %v1095, %v4455
    %v4460 = vadd.f32 %v1096, %v4456
    %v4461 = vxor.u32 %v4459, 2147483648
    %v4462 = vxor.u32 %v4460, 2147483648
    %v4463 = vmul.f32 %v4461, 1.442695
    %v4464 = vpow.pop %v4463
    %v4465 = vmul.f32 %v4462, 1.442695
    %v4466 = vpow.pop %v4465
    %v4467 = vadd.f32 %v4464, 1.0
    %v4468 = vadd.f32 %v4466, 1.0
    %v4469 = vrcp.pop %v4467
    %v4470 = vmul.f32 1.0, %v4469
    %v4471 = vrcp.pop %v4468
    %v4472 = vmul.f32 1.0, %v4471
    %v4473 = vmul.f32 %v4470, 2.0
    %v4474 = vmul.f32 %v4472, 2.0
    %v4475 = vsub.f32 %v4473, 1.0
    %v4476 = vsub.f32 %v4474, 1.0
    %v4479 = vrot.slane %v3932, 7
    %v4480 = vrot.slane %v3933, 7
    %v4483 = vmul.f32 %v4470, %v4479
    %v4484 = vmul.f32 %v4472, %v4480
    %4487 = vrot.lane.b32.xlu0 %v4475, 64
    %v4488 = vpop.permute.xlu0 %4487
    %4489 = vrot.lane.b32.xlu0 %v4476, 64
    %v4490 = vpop.permute.xlu0 %4489
    %v4493 = vmul.f32 %v4470, %v4488
    %v4494 = vmul.f32 %v4472, %v4490
    %4497 = vrot.lane.b32.xlu0 %v4493, 32
    %v4498 = vpop.permute.xlu0 %4497
    %4499 = vrot.lane.b32.xlu0 %v4494, 32
    %v4500 = vpop.permute.xlu0 %4499
    %v4503 = vadd.f32 %v4483, %v4498
    %v4504 = vadd.f32 %v4484, %v4500
    %v4505 = vtanh.pop %v4503
    %v4506 = vtanh.pop %v4504
    %4509 = vrot.lane.b32.xlu0 %v4505, 64
    %v4510 = vpop.permute.xlu0 %4509
    %4511 = vrot.lane.b32.xlu0 %v4506, 64
    %v4512 = vpop.permute.xlu0 %4511
    %v4515 = vmul.f32 %v4470, %v4510
    %v4516 = vmul.f32 %v4472, %v4512
    %v4517 = vmul.f32 %v4515, %v1663
    %v4518 = vmul.f32 %v4516, %v1663
    %v4521 = vrot.slane %v4518, 7
    %vm4522 = vcmask 1046534
    %v4523 = vsel %vm4522, %v4521, %v4517
    %4524 = vrot.lane.b32.xlu0 %v4523, 32
    %v4525 = vpop.permute.xlu0 %4524
    %vm4527 = vcmask 260101
    %v4528 = vsel %vm4527, %v4525, 0.0
    %4529 = vadd.xlane.f32.xlu0 %v4528
    %v4530 = vpop.xlane.xlu0 %4529
    %v4533 = vrot.slane %v4515, 5
    %v4534 = vrot.slane %v4516, 4
    %v4535 = vsel %vm1670, %v4534, %v4533
    %4536 = vrot.lane.b32.xlu0 %v4535, 32
    %v4537 = vpop.permute.xlu0 %4536
    %v4538 = vsel %vm1104, %v4537, 0
    %4540 = vmatprep.subr.mxu0 0.0
    %v4541 = vand.u32 %v1097, 4294901760
    %4542 = vmatpush1.msra.mxu0 %v4541
    %4543 = vmatprep.subr.mxu0 0.0
    %v4544 = vand.u32 %v1098, 4294901760
    %4545 = vmatpush1.msra.mxu0 %v4544
    %4546 = vmatprep.subr.mxu0 0.0
    %v4547 = vand.u32 %v1099, 4294901760
    %4548 = vmatpush1.msra.mxu0 %v4547
    %4549 = vmatprep.subr.mxu0 0.0
    %v4550 = vand.u32 %v1100, 4294901760
    %4551 = vmatpush1.msra.mxu0 %v4550
    %4552 = vmatprep.subr.mxu0 0.0
    %4553 = vmatpush1.msra.mxu0 0.0
    %4554 = vmatprep.subr.mxu0 0.0
    %4555 = vmatpush1.msra.mxu0 0.0
    %4556 = vmatprep.subr.mxu0 0.0
    %4557 = vmatpush1.msra.mxu0 0.0
    %4558 = vmatprep.subr.mxu0 0.0
    %4559 = vmatpush1.msra.mxu0 0.0
    %4560 = vmatprep.subr.mxu0 0.0
    %4561 = vmatpush1.msra.mxu0 0.0
    %4562 = vmatprep.subr.mxu0 0.0
    %4563 = vmatpush1.msra.mxu0 0.0
    %4564 = vmatprep.subr.mxu0 0.0
    %4565 = vmatpush1.msra.mxu0 0.0
    %4566 = vmatprep.subr.mxu0 0.0
    %4567 = vmatpush1.msra.mxu0 0.0
    %4568 = vmatprep.subr.mxu0 0.0
    %4569 = vmatpush1.msra.mxu0 0.0
    %4570 = vmatprep.subr.mxu0 0.0
    %4571 = vmatpush1.msra.mxu0 0.0
    %4572 = vmatprep.subr.mxu0 0.0
    %4573 = vmatpush1.msra.mxu0 0.0
    %4574 = vmatprep.subr.mxu0 0.0
    %4575 = vmatpush1.msra.mxu0 0.0
    %4576 = vmatprep.subr.mxu0 0.0
    %4577 = vmatpush1.msra.mxu0 0.0
    %4578 = vmatprep.subr.mxu0 0.0
    %4579 = vmatpush1.msra.mxu0 0.0
    %4580 = vmatprep.subr.mxu0 0.0
    %4581 = vmatpush1.msra.mxu0 0.0
    %4582 = vmatprep.subr.mxu0 0.0
    %4583 = vmatpush1.msra.mxu0 0.0
    %4584 = vmatprep.subr.mxu0 0.0
    %4585 = vmatpush1.msra.mxu0 0.0
    %4586 = vmatprep.subr.mxu0 0.0
    %4587 = vmatpush1.msra.mxu0 0.0
    %4588 = vmatprep.subr.mxu0 0.0
    %4589 = vmatpush1.msra.mxu0 0.0
    %4590 = vmatprep.subr.mxu0 0.0
    %4591 = vmatpush1.msra.mxu0 0.0
    %4592 = vmatprep.subr.mxu0 0.0
    %4593 = vmatpush1.msra.mxu0 0.0
    %4594 = vmatprep.subr.mxu0 0.0
    %4595 = vmatpush1.msra.mxu0 0.0
    %4596 = vmatprep.subr.mxu0 0.0
    %4597 = vmatpush1.msra.mxu0 0.0
    %4598 = vmatprep.subr.mxu0 0.0
    %4599 = vmatpush1.msra.mxu0 0.0
    %4600 = vmatprep.subr.mxu0 0.0
    %4601 = vmatpush1.msra.mxu0 0.0
    %4602 = vmatprep.subr.mxu0 0.0
    %4603 = vmatpush1.msra.mxu0 0.0
    %4604 = vmatprep.subr.mxu0 0.0
    %4605 = vmatpush1.msra.mxu0 0.0
    %4606 = vmatprep.subr.mxu0 0.0
    %4607 = vmatpush1.msra.mxu0 0.0
    %4608 = vmatprep.mubr.f32.mxu0 0.0
    %v4609 = vand.u32 %v4538, 4294901760
    %v4610 = vsub.f32 %v4538, %v4609
    %v4611 = vand.u32 %v4610, 4294901760
    %v4612 = vsub.f32 %v4610, %v4611
    %v4613 = vand.u32 %v4612, 4294901760
    %4614 = vmatmul.mubr.f32.gmra.mrb[0].mxu0 %v4613
    %v4615 = vpop.f32.mrb[0].mxu0
    %v4616 = vadd.f32 0.0, %v4615
    %v4617 = vpop.f32.mrb[0].mxu0
    %4618 = vdwg.mxu0
    %4619 = vmatprep.subr.mxu0 0.0
    %v4620 = vand.u32 %v1097, 4294901760
    %v4621 = vsub.f32 %v1097, %v4620
    %v4622 = vand.u32 %v4621, 4294901760
    %v4623 = vsub.f32 %v4621, %v4622
    %v4624 = vand.u32 %v4623, 4294901760
    %4625 = vmatpush1.msra.mxu0 %v4624
    %4626 = vmatprep.subr.mxu0 0.0
    %v4627 = vand.u32 %v1098, 4294901760
    %v4628 = vsub.f32 %v1098, %v4627
    %v4629 = vand.u32 %v4628, 4294901760
    %v4630 = vsub.f32 %v4628, %v4629
    %v4631 = vand.u32 %v4630, 4294901760
    %4632 = vmatpush1.msra.mxu0 %v4631
    %4633 = vmatprep.subr.mxu0 0.0
    %v4634 = vand.u32 %v1099, 4294901760
    %v4635 = vsub.f32 %v1099, %v4634
    %v4636 = vand.u32 %v4635, 4294901760
    %v4637 = vsub.f32 %v4635, %v4636
    %v4638 = vand.u32 %v4637, 4294901760
    %4639 = vmatpush1.msra.mxu0 %v4638
    %4640 = vmatprep.subr.mxu0 0.0
    %v4641 = vand.u32 %v1100, 4294901760
    %v4642 = vsub.f32 %v1100, %v4641
    %v4643 = vand.u32 %v4642, 4294901760
    %v4644 = vsub.f32 %v4642, %v4643
    %v4645 = vand.u32 %v4644, 4294901760
    %4646 = vmatpush1.msra.mxu0 %v4645
    %4647 = vmatprep.subr.mxu0 0.0
    %4648 = vmatpush1.msra.mxu0 0.0
    %4649 = vmatprep.subr.mxu0 0.0
    %4650 = vmatpush1.msra.mxu0 0.0
    %4651 = vmatprep.subr.mxu0 0.0
    %4652 = vmatpush1.msra.mxu0 0.0
    %4653 = vmatprep.subr.mxu0 0.0
    %4654 = vmatpush1.msra.mxu0 0.0
    %4655 = vmatprep.subr.mxu0 0.0
    %4656 = vmatpush1.msra.mxu0 0.0
    %4657 = vmatprep.subr.mxu0 0.0
    %4658 = vmatpush1.msra.mxu0 0.0
    %4659 = vmatprep.subr.mxu0 0.0
    %4660 = vmatpush1.msra.mxu0 0.0
    %4661 = vmatprep.subr.mxu0 0.0
    %4662 = vmatpush1.msra.mxu0 0.0
    %4663 = vmatprep.subr.mxu0 0.0
    %4664 = vmatpush1.msra.mxu0 0.0
    %4665 = vmatprep.subr.mxu0 0.0
    %4666 = vmatpush1.msra.mxu0 0.0
    %4667 = vmatprep.subr.mxu0 0.0
    %4668 = vmatpush1.msra.mxu0 0.0
    %4669 = vmatprep.subr.mxu0 0.0
    %4670 = vmatpush1.msra.mxu0 0.0
    %4671 = vmatprep.subr.mxu0 0.0
    %4672 = vmatpush1.msra.mxu0 0.0
    %4673 = vmatprep.subr.mxu0 0.0
    %4674 = vmatpush1.msra.mxu0 0.0
    %4675 = vmatprep.subr.mxu0 0.0
    %4676 = vmatpush1.msra.mxu0 0.0
    %4677 = vmatprep.subr.mxu0 0.0
    %4678 = vmatpush1.msra.mxu0 0.0
    %4679 = vmatprep.subr.mxu0 0.0
    %4680 = vmatpush1.msra.mxu0 0.0
    %4681 = vmatprep.subr.mxu0 0.0
    %4682 = vmatpush1.msra.mxu0 0.0
    %4683 = vmatprep.subr.mxu0 0.0
    %4684 = vmatpush1.msra.mxu0 0.0
    %4685 = vmatprep.subr.mxu0 0.0
    %4686 = vmatpush1.msra.mxu0 0.0
    %4687 = vmatprep.subr.mxu0 0.0
    %4688 = vmatpush1.msra.mxu0 0.0
    %4689 = vmatprep.subr.mxu0 0.0
    %4690 = vmatpush1.msra.mxu0 0.0
    %4691 = vmatprep.subr.mxu0 0.0
    %4692 = vmatpush1.msra.mxu0 0.0
    %4693 = vmatprep.subr.mxu0 0.0
    %4694 = vmatpush1.msra.mxu0 0.0
    %4695 = vmatprep.subr.mxu0 0.0
    %4696 = vmatpush1.msra.mxu0 0.0
    %4697 = vmatprep.subr.mxu0 0.0
    %4698 = vmatpush1.msra.mxu0 0.0
    %4699 = vmatprep.subr.mxu0 0.0
    %4700 = vmatpush1.msra.mxu0 0.0
    %4701 = vmatprep.subr.mxu0 0.0
    %4702 = vmatpush1.msra.mxu0 0.0
    %4703 = vmatprep.mubr.f32.mxu0 0.0
    %v4704 = vand.u32 %v4538, 4294901760
    %4705 = vmatmul.mubr.f32.gmra.mrb[0].mxu0 %v4704
    %v4706 = vpop.f32.mrb[0].mxu0
    %v4707 = vadd.f32 %v4616, %v4706
    %v4708 = vpop.f32.mrb[0].mxu0
    %4709 = vdwg.mxu0
    %4710 = vmatprep.subr.mxu0 0.0
    %v4711 = vand.u32 %v1097, 4294901760
    %v4712 = vsub.f32 %v1097, %v4711
    %4713 = vmatpush1.msra.mxu0 %v4712
    %4714 = vmatprep.subr.mxu0 0.0
    %v4715 = vand.u32 %v1098, 4294901760
    %v4716 = vsub.f32 %v1098, %v4715
    %4717 = vmatpush1.msra.mxu0 %v4716
    %4718 = vmatprep.subr.mxu0 0.0
    %v4719 = vand.u32 %v1099, 4294901760
    %v4720 = vsub.f32 %v1099, %v4719
    %4721 = vmatpush1.msra.mxu0 %v4720
    %4722 = vmatprep.subr.mxu0 0.0
    %v4723 = vand.u32 %v1100, 4294901760
    %v4724 = vsub.f32 %v1100, %v4723
    %4725 = vmatpush1.msra.mxu0 %v4724
    %4726 = vmatprep.subr.mxu0 0.0
    %4727 = vmatpush1.msra.mxu0 0.0
    %4728 = vmatprep.subr.mxu0 0.0
    %4729 = vmatpush1.msra.mxu0 0.0
    %4730 = vmatprep.subr.mxu0 0.0
    %4731 = vmatpush1.msra.mxu0 0.0
    %4732 = vmatprep.subr.mxu0 0.0
    %4733 = vmatpush1.msra.mxu0 0.0
    %4734 = vmatprep.subr.mxu0 0.0
    %4735 = vmatpush1.msra.mxu0 0.0
    %4736 = vmatprep.subr.mxu0 0.0
    %4737 = vmatpush1.msra.mxu0 0.0
    %4738 = vmatprep.subr.mxu0 0.0
    %4739 = vmatpush1.msra.mxu0 0.0
    %4740 = vmatprep.subr.mxu0 0.0
    %4741 = vmatpush1.msra.mxu0 0.0
    %4742 = vmatprep.subr.mxu0 0.0
    %4743 = vmatpush1.msra.mxu0 0.0
    %4744 = vmatprep.subr.mxu0 0.0
    %4745 = vmatpush1.msra.mxu0 0.0
    %4746 = vmatprep.subr.mxu0 0.0
    %4747 = vmatpush1.msra.mxu0 0.0
    %4748 = vmatprep.subr.mxu0 0.0
    %4749 = vmatpush1.msra.mxu0 0.0
    %4750 = vmatprep.subr.mxu0 0.0
    %4751 = vmatpush1.msra.mxu0 0.0
    %4752 = vmatprep.subr.mxu0 0.0
    %4753 = vmatpush1.msra.mxu0 0.0
    %4754 = vmatprep.subr.mxu0 0.0
    %4755 = vmatpush1.msra.mxu0 0.0
    %4756 = vmatprep.subr.mxu0 0.0
    %4757 = vmatpush1.msra.mxu0 0.0
    %4758 = vmatprep.subr.mxu0 0.0
    %4759 = vmatpush1.msra.mxu0 0.0
    %4760 = vmatprep.subr.mxu0 0.0
    %4761 = vmatpush1.msra.mxu0 0.0
    %4762 = vmatprep.subr.mxu0 0.0
    %4763 = vmatpush1.msra.mxu0 0.0
    %4764 = vmatprep.subr.mxu0 0.0
    %4765 = vmatpush1.msra.mxu0 0.0
    %4766 = vmatprep.subr.mxu0 0.0
    %4767 = vmatpush1.msra.mxu0 0.0
    %4768 = vmatprep.subr.mxu0 0.0
    %4769 = vmatpush1.msra.mxu0 0.0
    %4770 = vmatprep.subr.mxu0 0.0
    %4771 = vmatpush1.msra.mxu0 0.0
    %4772 = vmatprep.subr.mxu0 0.0
    %4773 = vmatpush1.msra.mxu0 0.0
    %4774 = vmatprep.subr.mxu0 0.0
    %4775 = vmatpush1.msra.mxu0 0.0
    %4776 = vmatprep.subr.mxu0 0.0
    %4777 = vmatpush1.msra.mxu0 0.0
    %4778 = vmatprep.subr.mxu0 0.0
    %4779 = vmatpush1.msra.mxu0 0.0
    %4780 = vmatprep.subr.mxu0 0.0
    %4781 = vmatpush1.msra.mxu0 0.0
    %4782 = vmatprep.mubr.f32.mxu0 0.0
    %v4783 = vand.u32 %v4538, 4294901760
    %v4784 = vsub.f32 %v4538, %v4783
    %4785 = vmatmul.mubr.f32.gmra.mrb[0].mxu0 %v4784
    %v4786 = vpop.f32.mrb[0].mxu0
    %v4787 = vadd.f32 %v4707, %v4786
    %v4788 = vpop.f32.mrb[0].mxu0
    %4789 = vdwg.mxu0
    %4790 = vmatprep.subr.mxu0 0.0
    %v4791 = vand.u32 %v1097, 4294901760
    %4792 = vmatpush1.msra.mxu0 %v4791
    %4793 = vmatprep.subr.mxu0 0.0
    %v4794 = vand.u32 %v1098, 4294901760
    %4795 = vmatpush1.msra.mxu0 %v4794
    %4796 = vmatprep.subr.mxu0 0.0
    %v4797 = vand.u32 %v1099, 4294901760
    %4798 = vmatpush1.msra.mxu0 %v4797
    %4799 = vmatprep.subr.mxu0 0.0
    %v4800 = vand.u32 %v1100, 4294901760
    %4801 = vmatpush1.msra.mxu0 %v4800
    %4802 = vmatprep.subr.mxu0 0.0
    %4803 = vmatpush1.msra.mxu0 0.0
    %4804 = vmatprep.subr.mxu0 0.0
    %4805 = vmatpush1.msra.mxu0 0.0
    %4806 = vmatprep.subr.mxu0 0.0
    %4807 = vmatpush1.msra.mxu0 0.0
    %4808 = vmatprep.subr.mxu0 0.0
    %4809 = vmatpush1.msra.mxu0 0.0
    %4810 = vmatprep.subr.mxu0 0.0
    %4811 = vmatpush1.msra.mxu0 0.0
    %4812 = vmatprep.subr.mxu0 0.0
    %4813 = vmatpush1.msra.mxu0 0.0
    %4814 = vmatprep.subr.mxu0 0.0
    %4815 = vmatpush1.msra.mxu0 0.0
    %4816 = vmatprep.subr.mxu0 0.0
    %4817 = vmatpush1.msra.mxu0 0.0
    %4818 = vmatprep.subr.mxu0 0.0
    %4819 = vmatpush1.msra.mxu0 0.0
    %4820 = vmatprep.subr.mxu0 0.0
    %4821 = vmatpush1.msra.mxu0 0.0
    %4822 = vmatprep.subr.mxu0 0.0
    %4823 = vmatpush1.msra.mxu0 0.0
    %4824 = vmatprep.subr.mxu0 0.0
    %4825 = vmatpush1.msra.mxu0 0.0
    %4826 = vmatprep.subr.mxu0 0.0
    %4827 = vmatpush1.msra.mxu0 0.0
    %4828 = vmatprep.subr.mxu0 0.0
    %4829 = vmatpush1.msra.mxu0 0.0
    %4830 = vmatprep.subr.mxu0 0.0
    %4831 = vmatpush1.msra.mxu0 0.0
    %4832 = vmatprep.subr.mxu0 0.0
    %4833 = vmatpush1.msra.mxu0 0.0
    %4834 = vmatprep.subr.mxu0 0.0
    %4835 = vmatpush1.msra.mxu0 0.0
    %4836 = vmatprep.subr.mxu0 0.0
    %4837 = vmatpush1.msra.mxu0 0.0
    %4838 = vmatprep.subr.mxu0 0.0
    %4839 = vmatpush1.msra.mxu0 0.0
    %4840 = vmatprep.subr.mxu0 0.0
    %4841 = vmatpush1.msra.mxu0 0.0
    %4842 = vmatprep.subr.mxu0 0.0
    %4843 = vmatpush1.msra.mxu0 0.0
    %4844 = vmatprep.subr.mxu0 0.0
    %4845 = vmatpush1.msra.mxu0 0.0
    %4846 = vmatprep.subr.mxu0 0.0
    %4847 = vmatpush1.msra.mxu0 0.0
    %4848 = vmatprep.subr.mxu0 0.0
    %4849 = vmatpush1.msra.mxu0 0.0
    %4850 = vmatprep.subr.mxu0 0.0
    %4851 = vmatpush1.msra.mxu0 0.0
    %4852 = vmatprep.subr.mxu0 0.0
    %4853 = vmatpush1.msra.mxu0 0.0
    %4854 = vmatprep.subr.mxu0 0.0
    %4855 = vmatpush1.msra.mxu0 0.0
    %4856 = vmatprep.subr.mxu0 0.0
    %4857 = vmatpush1.msra.mxu0 0.0
    %4858 = vmatprep.mubr.f32.mxu0 0.0
    %v4859 = vand.u32 %v4538, 4294901760
    %v4860 = vsub.f32 %v4538, %v4859
    %v4861 = vand.u32 %v4860, 4294901760
    %4862 = vmatmul.mubr.f32.gmra.mrb[0].mxu0 %v4861
    %v4863 = vpop.f32.mrb[0].mxu0
    %v4864 = vadd.f32 %v4787, %v4863
    %v4865 = vpop.f32.mrb[0].mxu0
    %4866 = vdwg.mxu0
    %4867 = vmatprep.subr.mxu0 0.0
    %v4868 = vand.u32 %v1097, 4294901760
    %v4869 = vsub.f32 %v1097, %v4868
    %v4870 = vand.u32 %v4869, 4294901760
    %4871 = vmatpush1.msra.mxu0 %v4870
    %4872 = vmatprep.subr.mxu0 0.0
    %v4873 = vand.u32 %v1098, 4294901760
    %v4874 = vsub.f32 %v1098, %v4873
    %v4875 = vand.u32 %v4874, 4294901760
    %4876 = vmatpush1.msra.mxu0 %v4875
    %4877 = vmatprep.subr.mxu0 0.0
    %v4878 = vand.u32 %v1099, 4294901760
    %v4879 = vsub.f32 %v1099, %v4878
    %v4880 = vand.u32 %v4879, 4294901760
    %4881 = vmatpush1.msra.mxu0 %v4880
    %4882 = vmatprep.subr.mxu0 0.0
    %v4883 = vand.u32 %v1100, 4294901760
    %v4884 = vsub.f32 %v1100, %v4883
    %v4885 = vand.u32 %v4884, 4294901760
    %4886 = vmatpush1.msra.mxu0 %v4885
    %4887 = vmatprep.subr.mxu0 0.0
    %4888 = vmatpush1.msra.mxu0 0.0
    %4889 = vmatprep.subr.mxu0 0.0
    %4890 = vmatpush1.msra.mxu0 0.0
    %4891 = vmatprep.subr.mxu0 0.0
    %4892 = vmatpush1.msra.mxu0 0.0
    %4893 = vmatprep.subr.mxu0 0.0
    %4894 = vmatpush1.msra.mxu0 0.0
    %4895 = vmatprep.subr.mxu0 0.0
    %4896 = vmatpush1.msra.mxu0 0.0
    %4897 = vmatprep.subr.mxu0 0.0
    %4898 = vmatpush1.msra.mxu0 0.0
    %4899 = vmatprep.subr.mxu0 0.0
    %4900 = vmatpush1.msra.mxu0 0.0
    %4901 = vmatprep.subr.mxu0 0.0
    %4902 = vmatpush1.msra.mxu0 0.0
    %4903 = vmatprep.subr.mxu0 0.0
    %4904 = vmatpush1.msra.mxu0 0.0
    %4905 = vmatprep.subr.mxu0 0.0
    %4906 = vmatpush1.msra.mxu0 0.0
    %4907 = vmatprep.subr.mxu0 0.0
    %4908 = vmatpush1.msra.mxu0 0.0
    %4909 = vmatprep.subr.mxu0 0.0
    %4910 = vmatpush1.msra.mxu0 0.0
    %4911 = vmatprep.subr.mxu0 0.0
    %4912 = vmatpush1.msra.mxu0 0.0
    %4913 = vmatprep.subr.mxu0 0.0
    %4914 = vmatpush1.msra.mxu0 0.0
    %4915 = vmatprep.subr.mxu0 0.0
    %4916 = vmatpush1.msra.mxu0 0.0
    %4917 = vmatprep.subr.mxu0 0.0
    %4918 = vmatpush1.msra.mxu0 0.0
    %4919 = vmatprep.subr.mxu0 0.0
    %4920 = vmatpush1.msra.mxu0 0.0
    %4921 = vmatprep.subr.mxu0 0.0
    %4922 = vmatpush1.msra.mxu0 0.0
    %4923 = vmatprep.subr.mxu0 0.0
    %4924 = vmatpush1.msra.mxu0 0.0
    %4925 = vmatprep.subr.mxu0 0.0
    %4926 = vmatpush1.msra.mxu0 0.0
    %4927 = vmatprep.subr.mxu0 0.0
    %4928 = vmatpush1.msra.mxu0 0.0
    %4929 = vmatprep.subr.mxu0 0.0
    %4930 = vmatpush1.msra.mxu0 0.0
    %4931 = vmatprep.subr.mxu0 0.0
    %4932 = vmatpush1.msra.mxu0 0.0
    %4933 = vmatprep.subr.mxu0 0.0
    %4934 = vmatpush1.msra.mxu0 0.0
    %4935 = vmatprep.subr.mxu0 0.0
    %4936 = vmatpush1.msra.mxu0 0.0
    %4937 = vmatprep.subr.mxu0 0.0
    %4938 = vmatpush1.msra.mxu0 0.0
    %4939 = vmatprep.subr.mxu0 0.0
    %4940 = vmatpush1.msra.mxu0 0.0
    %4941 = vmatprep.subr.mxu0 0.0
    %4942 = vmatpush1.msra.mxu0 0.0
    %4943 = vmatprep.mubr.f32.mxu0 0.0
    %v4944 = vand.u32 %v4538, 4294901760
    %4945 = vmatmul.mubr.f32.gmra.mrb[0].mxu0 %v4944
    %v4946 = vpop.f32.mrb[0].mxu0
    %v4947 = vadd.f32 %v4864, %v4946
    %v4948 = vpop.f32.mrb[0].mxu0
    %4949 = vdwg.mxu0
    %4950 = vmatprep.subr.mxu0 0.0
    %v4951 = vand.u32 %v1097, 4294901760
    %4952 = vmatpush1.msra.mxu0 %v4951
    %4953 = vmatprep.subr.mxu0 0.0
    %v4954 = vand.u32 %v1098, 4294901760
    %4955 = vmatpush1.msra.mxu0 %v4954
    %4956 = vmatprep.subr.mxu0 0.0
    %v4957 = vand.u32 %v1099, 4294901760
    %4958 = vmatpush1.msra.mxu0 %v4957
    %4959 = vmatprep.subr.mxu0 0.0
    %v4960 = vand.u32 %v1100, 4294901760
    %4961 = vmatpush1.msra.mxu0 %v4960
    %4962 = vmatprep.subr.mxu0 0.0
    %4963 = vmatpush1.msra.mxu0 0.0
    %4964 = vmatprep.subr.mxu0 0.0
    %4965 = vmatpush1.msra.mxu0 0.0
    %4966 = vmatprep.subr.mxu0 0.0
    %4967 = vmatpush1.msra.mxu0 0.0
    %4968 = vmatprep.subr.mxu0 0.0
    %4969 = vmatpush1.msra.mxu0 0.0
    %4970 = vmatprep.subr.mxu0 0.0
    %4971 = vmatpush1.msra.mxu0 0.0
    %4972 = vmatprep.subr.mxu0 0.0
    %4973 = vmatpush1.msra.mxu0 0.0
    %4974 = vmatprep.subr.mxu0 0.0
    %4975 = vmatpush1.msra.mxu0 0.0
    %4976 = vmatprep.subr.mxu0 0.0
    %4977 = vmatpush1.msra.mxu0 0.0
    %4978 = vmatprep.subr.mxu0 0.0
    %4979 = vmatpush1.msra.mxu0 0.0
    %4980 = vmatprep.subr.mxu0 0.0
    %4981 = vmatpush1.msra.mxu0 0.0
    %4982 = vmatprep.subr.mxu0 0.0
    %4983 = vmatpush1.msra.mxu0 0.0
    %4984 = vmatprep.subr.mxu0 0.0
    %4985 = vmatpush1.msra.mxu0 0.0
    %4986 = vmatprep.subr.mxu0 0.0
    %4987 = vmatpush1.msra.mxu0 0.0
    %4988 = vmatprep.subr.mxu0 0.0
    %4989 = vmatpush1.msra.mxu0 0.0
    %4990 = vmatprep.subr.mxu0 0.0
    %4991 = vmatpush1.msra.mxu0 0.0
    %4992 = vmatprep.subr.mxu0 0.0
    %4993 = vmatpush1.msra.mxu0 0.0
    %4994 = vmatprep.subr.mxu0 0.0
    %4995 = vmatpush1.msra.mxu0 0.0
    %4996 = vmatprep.subr.mxu0 0.0
    %4997 = vmatpush1.msra.mxu0 0.0
    %4998 = vmatprep.subr.mxu0 0.0
    %4999 = vmatpush1.msra.mxu0 0.0
    %5000 = vmatprep.subr.mxu0 0.0
    %5001 = vmatpush1.msra.mxu0 0.0
    %5002 = vmatprep.subr.mxu0 0.0
    %5003 = vmatpush1.msra.mxu0 0.0
    %5004 = vmatprep.subr.mxu0 0.0
    %5005 = vmatpush1.msra.mxu0 0.0
    %5006 = vmatprep.subr.mxu0 0.0
    %5007 = vmatpush1.msra.mxu0 0.0
    %5008 = vmatprep.subr.mxu0 0.0
    %5009 = vmatpush1.msra.mxu0 0.0
    %5010 = vmatprep.subr.mxu0 0.0
    %5011 = vmatpush1.msra.mxu0 0.0
    %5012 = vmatprep.subr.mxu0 0.0
    %5013 = vmatpush1.msra.mxu0 0.0
    %5014 = vmatprep.subr.mxu0 0.0
    %5015 = vmatpush1.msra.mxu0 0.0
    %5016 = vmatprep.subr.mxu0 0.0
    %5017 = vmatpush1.msra.mxu0 0.0
    %5018 = vmatprep.mubr.f32.mxu0 0.0
    %v5019 = vand.u32 %v4538, 4294901760
    %5020 = vmatmul.mubr.f32.gmra.mrb[0].mxu0 %v5019
    %v5021 = vpop.f32.mrb[0].mxu0
    %v5022 = vadd.f32 %v4947, %v5021
    %v5023 = vpop.f32.mrb[0].mxu0
    %5024 = vdwg.mxu0
    %v5026 = vrot.slane %v5022, 2
    %v5027 = vrot.slane %v5022, 3
    %v5030 = vadd.f32 %v1095, %v5026
    %v5031 = vadd.f32 %v1096, %v5027
    %v5032 = vxor.u32 %v5030, 2147483648
    %v5033 = vxor.u32 %v5031, 2147483648
    %v5034 = vmul.f32 %v5032, 1.442695
    %v5035 = vpow.pop %v5034
    %v5036 = vmul.f32 %v5033, 1.442695
    %v5037 = vpow.pop %v5036
    %v5038 = vadd.f32 %v5035, 1.0
    %v5039 = vadd.f32 %v5037, 1.0
    %v5040 = vrcp.pop %v5038
    %v5041 = vmul.f32 1.0, %v5040
    %v5042 = vrcp.pop %v5039
    %v5043 = vmul.f32 1.0, %v5042
    %v5044 = vmul.f32 %v5041, 2.0
    %v5045 = vmul.f32 %v5043, 2.0
    %v5046 = vsub.f32 %v5044, 1.0
    %v5047 = vsub.f32 %v5045, 1.0
    %v5050 = vrot.slane %v4503, 7
    %v5051 = vrot.slane %v4504, 7
    %v5054 = vmul.f32 %v5041, %v5050
    %v5055 = vmul.f32 %v5043, %v5051
    %5058 = vrot.lane.b32.xlu0 %v5046, 64
    %v5059 = vpop.permute.xlu0 %5058
    %5060 = vrot.lane.b32.xlu0 %v5047, 64
    %v5061 = vpop.permute.xlu0 %5060
    %v5064 = vmul.f32 %v5041, %v5059
    %v5065 = vmul.f32 %v5043, %v5061
    %5068 = vrot.lane.b32.xlu0 %v5064, 32
    %v5069 = vpop.permute.xlu0 %5068
    %5070 = vrot.lane.b32.xlu0 %v5065, 32
    %v5071 = vpop.permute.xlu0 %5070
    %v5074 = vadd.f32 %v5054, %v5069
    %v5075 = vadd.f32 %v5055, %v5071
    %v5076 = vtanh.pop %v5074
    %v5077 = vtanh.pop %v5075
    %5080 = vrot.lane.b32.xlu0 %v5076, 64
    %v5081 = vpop.permute.xlu0 %5080
    %5082 = vrot.lane.b32.xlu0 %v5077, 64
    %v5083 = vpop.permute.xlu0 %5082
    %v5086 = vmul.f32 %v5041, %v5081
    %v5087 = vmul.f32 %v5043, %v5083
    %v5088 = vmul.f32 %v5086, %v1663
    %v5089 = vmul.f32 %v5087, %v1663
    %v5092 = vrot.slane %v5089, 7
    %vm5093 = vcmask 1047559
    %v5094 = vsel %vm5093, %v5092, %v5088
    %5095 = vrot.lane.b32.xlu0 %v5094, 32
    %v5096 = vpop.permute.xlu0 %5095
    %vm5098 = vcmask 261126
    %v5099 = vsel %vm5098, %v5096, 0.0
    %5100 = vadd.xlane.f32.xlu0 %v5099
    %v5101 = vpop.xlane.xlu0 %5100
    %v5104 = vrot.slane %v5086, 6
    %v5105 = vrot.slane %v5087, 5
    %v5106 = vsel %vm1670, %v5105, %v5104
    %5107 = vrot.lane.b32.xlu0 %v5106, 32
    %v5108 = vpop.permute.xlu0 %5107
    %v5109 = vsel %vm1104, %v5108, 0
    %5111 = vmatprep.subr.mxu0 0.0
    %v5112 = vand.u32 %v1097, 4294901760
    %5113 = vmatpush1.msra.mxu0 %v5112
    %5114 = vmatprep.subr.mxu0 0.0
    %v5115 = vand.u32 %v1098, 4294901760
    %5116 = vmatpush1.msra.mxu0 %v5115
    %5117 = vmatprep.subr.mxu0 0.0
    %v5118 = vand.u32 %v1099, 4294901760
    %5119 = vmatpush1.msra.mxu0 %v5118
    %5120 = vmatprep.subr.mxu0 0.0
    %v5121 = vand.u32 %v1100, 4294901760
    %5122 = vmatpush1.msra.mxu0 %v5121
    %5123 = vmatprep.subr.mxu0 0.0
    %5124 = vmatpush1.msra.mxu0 0.0
    %5125 = vmatprep.subr.mxu0 0.0
    %5126 = vmatpush1.msra.mxu0 0.0
    %5127 = vmatprep.subr.mxu0 0.0
    %5128 = vmatpush1.msra.mxu0 0.0
    %5129 = vmatprep.subr.mxu0 0.0
    %5130 = vmatpush1.msra.mxu0 0.0
    %5131 = vmatprep.subr.mxu0 0.0
    %5132 = vmatpush1.msra.mxu0 0.0
    %5133 = vmatprep.subr.mxu0 0.0
    %5134 = vmatpush1.msra.mxu0 0.0
    %5135 = vmatprep.subr.mxu0 0.0
    %5136 = vmatpush1.msra.mxu0 0.0
    %5137 = vmatprep.subr.mxu0 0.0
    %5138 = vmatpush1.msra.mxu0 0.0
    %5139 = vmatprep.subr.mxu0 0.0
    %5140 = vmatpush1.msra.mxu0 0.0
    %5141 = vmatprep.subr.mxu0 0.0
    %5142 = vmatpush1.msra.mxu0 0.0
    %5143 = vmatprep.subr.mxu0 0.0
    %5144 = vmatpush1.msra.mxu0 0.0
    %5145 = vmatprep.subr.mxu0 0.0
    %5146 = vmatpush1.msra.mxu0 0.0
    %5147 = vmatprep.subr.mxu0 0.0
    %5148 = vmatpush1.msra.mxu0 0.0
    %5149 = vmatprep.subr.mxu0 0.0
    %5150 = vmatpush1.msra.mxu0 0.0
    %5151 = vmatprep.subr.mxu0 0.0
    %5152 = vmatpush1.msra.mxu0 0.0
    %5153 = vmatprep.subr.mxu0 0.0
    %5154 = vmatpush1.msra.mxu0 0.0
    %5155 = vmatprep.subr.mxu0 0.0
    %5156 = vmatpush1.msra.mxu0 0.0
    %5157 = vmatprep.subr.mxu0 0.0
    %5158 = vmatpush1.msra.mxu0 0.0
    %5159 = vmatprep.subr.mxu0 0.0
    %5160 = vmatpush1.msra.mxu0 0.0
    %5161 = vmatprep.subr.mxu0 0.0
    %5162 = vmatpush1.msra.mxu0 0.0
    %5163 = vmatprep.subr.mxu0 0.0
    %5164 = vmatpush1.msra.mxu0 0.0
    %5165 = vmatprep.subr.mxu0 0.0
    %5166 = vmatpush1.msra.mxu0 0.0
    %5167 = vmatprep.subr.mxu0 0.0
    %5168 = vmatpush1.msra.mxu0 0.0
    %5169 = vmatprep.subr.mxu0 0.0
    %5170 = vmatpush1.msra.mxu0 0.0
    %5171 = vmatprep.subr.mxu0 0.0
    %5172 = vmatpush1.msra.mxu0 0.0
    %5173 = vmatprep.subr.mxu0 0.0
    %5174 = vmatpush1.msra.mxu0 0.0
    %5175 = vmatprep.subr.mxu0 0.0
    %5176 = vmatpush1.msra.mxu0 0.0
    %5177 = vmatprep.subr.mxu0 0.0
    %5178 = vmatpush1.msra.mxu0 0.0
    %5179 = vmatprep.mubr.f32.mxu0 0.0
    %v5180 = vand.u32 %v5109, 4294901760
    %v5181 = vsub.f32 %v5109, %v5180
    %v5182 = vand.u32 %v5181, 4294901760
    %v5183 = vsub.f32 %v5181, %v5182
    %v5184 = vand.u32 %v5183, 4294901760
    %5185 = vmatmul.mubr.f32.gmra.mrb[0].mxu0 %v5184
    %v5186 = vpop.f32.mrb[0].mxu0
    %v5187 = vadd.f32 0.0, %v5186
    %v5188 = vpop.f32.mrb[0].mxu0
    %5189 = vdwg.mxu0
    %5190 = vmatprep.subr.mxu0 0.0
    %v5191 = vand.u32 %v1097, 4294901760
    %v5192 = vsub.f32 %v1097, %v5191
    %v5193 = vand.u32 %v5192, 4294901760
    %v5194 = vsub.f32 %v5192, %v5193
    %v5195 = vand.u32 %v5194, 4294901760
    %5196 = vmatpush1.msra.mxu0 %v5195
    %5197 = vmatprep.subr.mxu0 0.0
    %v5198 = vand.u32 %v1098, 4294901760
    %v5199 = vsub.f32 %v1098, %v5198
    %v5200 = vand.u32 %v5199, 4294901760
    %v5201 = vsub.f32 %v5199, %v5200
    %v5202 = vand.u32 %v5201, 4294901760
    %5203 = vmatpush1.msra.mxu0 %v5202
    %5204 = vmatprep.subr.mxu0 0.0
    %v5205 = vand.u32 %v1099, 4294901760
    %v5206 = vsub.f32 %v1099, %v5205
    %v5207 = vand.u32 %v5206, 4294901760
    %v5208 = vsub.f32 %v5206, %v5207
    %v5209 = vand.u32 %v5208, 4294901760
    %5210 = vmatpush1.msra.mxu0 %v5209
    %5211 = vmatprep.subr.mxu0 0.0
    %v5212 = vand.u32 %v1100, 4294901760
    %v5213 = vsub.f32 %v1100, %v5212
    %v5214 = vand.u32 %v5213, 4294901760
    %v5215 = vsub.f32 %v5213, %v5214
    %v5216 = vand.u32 %v5215, 4294901760
    %5217 = vmatpush1.msra.mxu0 %v5216
    %5218 = vmatprep.subr.mxu0 0.0
    %5219 = vmatpush1.msra.mxu0 0.0
    %5220 = vmatprep.subr.mxu0 0.0
    %5221 = vmatpush1.msra.mxu0 0.0
    %5222 = vmatprep.subr.mxu0 0.0
    %5223 = vmatpush1.msra.mxu0 0.0
    %5224 = vmatprep.subr.mxu0 0.0
    %5225 = vmatpush1.msra.mxu0 0.0
    %5226 = vmatprep.subr.mxu0 0.0
    %5227 = vmatpush1.msra.mxu0 0.0
    %5228 = vmatprep.subr.mxu0 0.0
    %5229 = vmatpush1.msra.mxu0 0.0
    %5230 = vmatprep.subr.mxu0 0.0
    %5231 = vmatpush1.msra.mxu0 0.0
    %5232 = vmatprep.subr.mxu0 0.0
    %5233 = vmatpush1.msra.mxu0 0.0
    %5234 = vmatprep.subr.mxu0 0.0
    %5235 = vmatpush1.msra.mxu0 0.0
    %5236 = vmatprep.subr.mxu0 0.0
    %5237 = vmatpush1.msra.mxu0 0.0
    %5238 = vmatprep.subr.mxu0 0.0
    %5239 = vmatpush1.msra.mxu0 0.0
    %5240 = vmatprep.subr.mxu0 0.0
    %5241 = vmatpush1.msra.mxu0 0.0
    %5242 = vmatprep.subr.mxu0 0.0
    %5243 = vmatpush1.msra.mxu0 0.0
    %5244 = vmatprep.subr.mxu0 0.0
    %5245 = vmatpush1.msra.mxu0 0.0
    %5246 = vmatprep.subr.mxu0 0.0
    %5247 = vmatpush1.msra.mxu0 0.0
    %5248 = vmatprep.subr.mxu0 0.0
    %5249 = vmatpush1.msra.mxu0 0.0
    %5250 = vmatprep.subr.mxu0 0.0
    %5251 = vmatpush1.msra.mxu0 0.0
    %5252 = vmatprep.subr.mxu0 0.0
    %5253 = vmatpush1.msra.mxu0 0.0
    %5254 = vmatprep.subr.mxu0 0.0
    %5255 = vmatpush1.msra.mxu0 0.0
    %5256 = vmatprep.subr.mxu0 0.0
    %5257 = vmatpush1.msra.mxu0 0.0
    %5258 = vmatprep.subr.mxu0 0.0
    %5259 = vmatpush1.msra.mxu0 0.0
    %5260 = vmatprep.subr.mxu0 0.0
    %5261 = vmatpush1.msra.mxu0 0.0
    %5262 = vmatprep.subr.mxu0 0.0
    %5263 = vmatpush1.msra.mxu0 0.0
    %5264 = vmatprep.subr.mxu0 0.0
    %5265 = vmatpush1.msra.mxu0 0.0
    %5266 = vmatprep.subr.mxu0 0.0
    %5267 = vmatpush1.msra.mxu0 0.0
    %5268 = vmatprep.subr.mxu0 0.0
    %5269 = vmatpush1.msra.mxu0 0.0
    %5270 = vmatprep.subr.mxu0 0.0
    %5271 = vmatpush1.msra.mxu0 0.0
    %5272 = vmatprep.subr.mxu0 0.0
    %5273 = vmatpush1.msra.mxu0 0.0
    %5274 = vmatprep.mubr.f32.mxu0 0.0
    %v5275 = vand.u32 %v5109, 4294901760
    %5276 = vmatmul.mubr.f32.gmra.mrb[0].mxu0 %v5275
    %v5277 = vpop.f32.mrb[0].mxu0
    %v5278 = vadd.f32 %v5187, %v5277
    %v5279 = vpop.f32.mrb[0].mxu0
    %5280 = vdwg.mxu0
    %5281 = vmatprep.subr.mxu0 0.0
    %v5282 = vand.u32 %v1097, 4294901760
    %v5283 = vsub.f32 %v1097, %v5282
    %5284 = vmatpush1.msra.mxu0 %v5283
    %5285 = vmatprep.subr.mxu0 0.0
    %v5286 = vand.u32 %v1098, 4294901760
    %v5287 = vsub.f32 %v1098, %v5286
    %5288 = vmatpush1.msra.mxu0 %v5287
    %5289 = vmatprep.subr.mxu0 0.0
    %v5290 = vand.u32 %v1099, 4294901760
    %v5291 = vsub.f32 %v1099, %v5290
    %5292 = vmatpush1.msra.mxu0 %v5291
    %5293 = vmatprep.subr.mxu0 0.0
    %v5294 = vand.u32 %v1100, 4294901760
    %v5295 = vsub.f32 %v1100, %v5294
    %5296 = vmatpush1.msra.mxu0 %v5295
    %5297 = vmatprep.subr.mxu0 0.0
    %5298 = vmatpush1.msra.mxu0 0.0
    %5299 = vmatprep.subr.mxu0 0.0
    %5300 = vmatpush1.msra.mxu0 0.0
    %5301 = vmatprep.subr.mxu0 0.0
    %5302 = vmatpush1.msra.mxu0 0.0
    %5303 = vmatprep.subr.mxu0 0.0
    %5304 = vmatpush1.msra.mxu0 0.0
    %5305 = vmatprep.subr.mxu0 0.0
    %5306 = vmatpush1.msra.mxu0 0.0
    %5307 = vmatprep.subr.mxu0 0.0
    %5308 = vmatpush1.msra.mxu0 0.0
    %5309 = vmatprep.subr.mxu0 0.0
    %5310 = vmatpush1.msra.mxu0 0.0
    %5311 = vmatprep.subr.mxu0 0.0
    %5312 = vmatpush1.msra.mxu0 0.0
    %5313 = vmatprep.subr.mxu0 0.0
    %5314 = vmatpush1.msra.mxu0 0.0
    %5315 = vmatprep.subr.mxu0 0.0
    %5316 = vmatpush1.msra.mxu0 0.0
    %5317 = vmatprep.subr.mxu0 0.0
    %5318 = vmatpush1.msra.mxu0 0.0
    %5319 = vmatprep.subr.mxu0 0.0
    %5320 = vmatpush1.msra.mxu0 0.0
    %5321 = vmatprep.subr.mxu0 0.0
    %5322 = vmatpush1.msra.mxu0 0.0
    %5323 = vmatprep.subr.mxu0 0.0
    %5324 = vmatpush1.msra.mxu0 0.0
    %5325 = vmatprep.subr.mxu0 0.0
    %5326 = vmatpush1.msra.mxu0 0.0
    %5327 = vmatprep.subr.mxu0 0.0
    %5328 = vmatpush1.msra.mxu0 0.0
    %5329 = vmatprep.subr.mxu0 0.0
    %5330 = vmatpush1.msra.mxu0 0.0
    %5331 = vmatprep.subr.mxu0 0.0
    %5332 = vmatpush1.msra.mxu0 0.0
    %5333 = vmatprep.subr.mxu0 0.0
    %5334 = vmatpush1.msra.mxu0 0.0
    %5335 = vmatprep.subr.mxu0 0.0
    %5336 = vmatpush1.msra.mxu0 0.0
    %5337 = vmatprep.subr.mxu0 0.0
    %5338 = vmatpush1.msra.mxu0 0.0
    %5339 = vmatprep.subr.mxu0 0.0
    %5340 = vmatpush1.msra.mxu0 0.0
    %5341 = vmatprep.subr.mxu0 0.0
    %5342 = vmatpush1.msra.mxu0 0.0
    %5343 = vmatprep.subr.mxu0 0.0
    %5344 = vmatpush1.msra.mxu0 0.0
    %5345 = vmatprep.subr.mxu0 0.0
    %5346 = vmatpush1.msra.mxu0 0.0
    %5347 = vmatprep.subr.mxu0 0.0
    %5348 = vmatpush1.msra.mxu0 0.0
    %5349 = vmatprep.subr.mxu0 0.0
    %5350 = vmatpush1.msra.mxu0 0.0
    %5351 = vmatprep.subr.mxu0 0.0
    %5352 = vmatpush1.msra.mxu0 0.0
    %5353 = vmatprep.mubr.f32.mxu0 0.0
    %v5354 = vand.u32 %v5109, 4294901760
    %v5355 = vsub.f32 %v5109, %v5354
    %5356 = vmatmul.mubr.f32.gmra.mrb[0].mxu0 %v5355
    %v5357 = vpop.f32.mrb[0].mxu0
    %v5358 = vadd.f32 %v5278, %v5357
    %v5359 = vpop.f32.mrb[0].mxu0
    %5360 = vdwg.mxu0
    %5361 = vmatprep.subr.mxu0 0.0
    %v5362 = vand.u32 %v1097, 4294901760
    %5363 = vmatpush1.msra.mxu0 %v5362
    %5364 = vmatprep.subr.mxu0 0.0
    %v5365 = vand.u32 %v1098, 4294901760
    %5366 = vmatpush1.msra.mxu0 %v5365
    %5367 = vmatprep.subr.mxu0 0.0
    %v5368 = vand.u32 %v1099, 4294901760
    %5369 = vmatpush1.msra.mxu0 %v5368
    %5370 = vmatprep.subr.mxu0 0.0
    %v5371 = vand.u32 %v1100, 4294901760
    %5372 = vmatpush1.msra.mxu0 %v5371
    %5373 = vmatprep.subr.mxu0 0.0
    %5374 = vmatpush1.msra.mxu0 0.0
    %5375 = vmatprep.subr.mxu0 0.0
    %5376 = vmatpush1.msra.mxu0 0.0
    %5377 = vmatprep.subr.mxu0 0.0
    %5378 = vmatpush1.msra.mxu0 0.0
    %5379 = vmatprep.subr.mxu0 0.0
    %5380 = vmatpush1.msra.mxu0 0.0
    %5381 = vmatprep.subr.mxu0 0.0
    %5382 = vmatpush1.msra.mxu0 0.0
    %5383 = vmatprep.subr.mxu0 0.0
    %5384 = vmatpush1.msra.mxu0 0.0
    %5385 = vmatprep.subr.mxu0 0.0
    %5386 = vmatpush1.msra.mxu0 0.0
    %5387 = vmatprep.subr.mxu0 0.0
    %5388 = vmatpush1.msra.mxu0 0.0
    %5389 = vmatprep.subr.mxu0 0.0
    %5390 = vmatpush1.msra.mxu0 0.0
    %5391 = vmatprep.subr.mxu0 0.0
    %5392 = vmatpush1.msra.mxu0 0.0
    %5393 = vmatprep.subr.mxu0 0.0
    %5394 = vmatpush1.msra.mxu0 0.0
    %5395 = vmatprep.subr.mxu0 0.0
    %5396 = vmatpush1.msra.mxu0 0.0
    %5397 = vmatprep.subr.mxu0 0.0
    %5398 = vmatpush1.msra.mxu0 0.0
    %5399 = vmatprep.subr.mxu0 0.0
    %5400 = vmatpush1.msra.mxu0 0.0
    %5401 = vmatprep.subr.mxu0 0.0
    %5402 = vmatpush1.msra.mxu0 0.0
    %5403 = vmatprep.subr.mxu0 0.0
    %5404 = vmatpush1.msra.mxu0 0.0
    %5405 = vmatprep.subr.mxu0 0.0
    %5406 = vmatpush1.msra.mxu0 0.0
    %5407 = vmatprep.subr.mxu0 0.0
    %5408 = vmatpush1.msra.mxu0 0.0
    %5409 = vmatprep.subr.mxu0 0.0
    %5410 = vmatpush1.msra.mxu0 0.0
    %5411 = vmatprep.subr.mxu0 0.0
    %5412 = vmatpush1.msra.mxu0 0.0
    %5413 = vmatprep.subr.mxu0 0.0
    %5414 = vmatpush1.msra.mxu0 0.0
    %5415 = vmatprep.subr.mxu0 0.0
    %5416 = vmatpush1.msra.mxu0 0.0
    %5417 = vmatprep.subr.mxu0 0.0
    %5418 = vmatpush1.msra.mxu0 0.0
    %5419 = vmatprep.subr.mxu0 0.0
    %5420 = vmatpush1.msra.mxu0 0.0
    %5421 = vmatprep.subr.mxu0 0.0
    %5422 = vmatpush1.msra.mxu0 0.0
    %5423 = vmatprep.subr.mxu0 0.0
    %5424 = vmatpush1.msra.mxu0 0.0
    %5425 = vmatprep.subr.mxu0 0.0
    %5426 = vmatpush1.msra.mxu0 0.0
    %5427 = vmatprep.subr.mxu0 0.0
    %5428 = vmatpush1.msra.mxu0 0.0
    %5429 = vmatprep.mubr.f32.mxu0 0.0
    %v5430 = vand.u32 %v5109, 4294901760
    %v5431 = vsub.f32 %v5109, %v5430
    %v5432 = vand.u32 %v5431, 4294901760
    %5433 = vmatmul.mubr.f32.gmra.mrb[0].mxu0 %v5432
    %v5434 = vpop.f32.mrb[0].mxu0
    %v5435 = vadd.f32 %v5358, %v5434
    %v5436 = vpop.f32.mrb[0].mxu0
    %5437 = vdwg.mxu0
    %5438 = vmatprep.subr.mxu0 0.0
    %v5439 = vand.u32 %v1097, 4294901760
    %v5440 = vsub.f32 %v1097, %v5439
    %v5441 = vand.u32 %v5440, 4294901760
    %5442 = vmatpush1.msra.mxu0 %v5441
    %5443 = vmatprep.subr.mxu0 0.0
    %v5444 = vand.u32 %v1098, 4294901760
    %v5445 = vsub.f32 %v1098, %v5444
    %v5446 = vand.u32 %v5445, 4294901760
    %5447 = vmatpush1.msra.mxu0 %v5446
    %5448 = vmatprep.subr.mxu0 0.0
    %v5449 = vand.u32 %v1099, 4294901760
    %v5450 = vsub.f32 %v1099, %v5449
    %v5451 = vand.u32 %v5450, 4294901760
    %5452 = vmatpush1.msra.mxu0 %v5451
    %5453 = vmatprep.subr.mxu0 0.0
    %v5454 = vand.u32 %v1100, 4294901760
    %v5455 = vsub.f32 %v1100, %v5454
    %v5456 = vand.u32 %v5455, 4294901760
    %5457 = vmatpush1.msra.mxu0 %v5456
    %5458 = vmatprep.subr.mxu0 0.0
    %5459 = vmatpush1.msra.mxu0 0.0
    %5460 = vmatprep.subr.mxu0 0.0
    %5461 = vmatpush1.msra.mxu0 0.0
    %5462 = vmatprep.subr.mxu0 0.0
    %5463 = vmatpush1.msra.mxu0 0.0
    %5464 = vmatprep.subr.mxu0 0.0
    %5465 = vmatpush1.msra.mxu0 0.0
    %5466 = vmatprep.subr.mxu0 0.0
    %5467 = vmatpush1.msra.mxu0 0.0
    %5468 = vmatprep.subr.mxu0 0.0
    %5469 = vmatpush1.msra.mxu0 0.0
    %5470 = vmatprep.subr.mxu0 0.0
    %5471 = vmatpush1.msra.mxu0 0.0
    %5472 = vmatprep.subr.mxu0 0.0
    %5473 = vmatpush1.msra.mxu0 0.0
    %5474 = vmatprep.subr.mxu0 0.0
    %5475 = vmatpush1.msra.mxu0 0.0
    %5476 = vmatprep.subr.mxu0 0.0
    %5477 = vmatpush1.msra.mxu0 0.0
    %5478 = vmatprep.subr.mxu0 0.0
    %5479 = vmatpush1.msra.mxu0 0.0
    %5480 = vmatprep.subr.mxu0 0.0
    %5481 = vmatpush1.msra.mxu0 0.0
    %5482 = vmatprep.subr.mxu0 0.0
    %5483 = vmatpush1.msra.mxu0 0.0
    %5484 = vmatprep.subr.mxu0 0.0
    %5485 = vmatpush1.msra.mxu0 0.0
    %5486 = vmatprep.subr.mxu0 0.0
    %5487 = vmatpush1.msra.mxu0 0.0
    %5488 = vmatprep.subr.mxu0 0.0
    %5489 = vmatpush1.msra.mxu0 0.0
    %5490 = vmatprep.subr.mxu0 0.0
    %5491 = vmatpush1.msra.mxu0 0.0
    %5492 = vmatprep.subr.mxu0 0.0
    %5493 = vmatpush1.msra.mxu0 0.0
    %5494 = vmatprep.subr.mxu0 0.0
    %5495 = vmatpush1.msra.mxu0 0.0
    %5496 = vmatprep.subr.mxu0 0.0
    %5497 = vmatpush1.msra.mxu0 0.0
    %5498 = vmatprep.subr.mxu0 0.0
    %5499 = vmatpush1.msra.mxu0 0.0
    %5500 = vmatprep.subr.mxu0 0.0
    %5501 = vmatpush1.msra.mxu0 0.0
    %5502 = vmatprep.subr.mxu0 0.0
    %5503 = vmatpush1.msra.mxu0 0.0
    %5504 = vmatprep.subr.mxu0 0.0
    %5505 = vmatpush1.msra.mxu0 0.0
    %5506 = vmatprep.subr.mxu0 0.0
    %5507 = vmatpush1.msra.mxu0 0.0
    %5508 = vmatprep.subr.mxu0 0.0
    %5509 = vmatpush1.msra.mxu0 0.0
    %5510 = vmatprep.subr.mxu0 0.0
    %5511 = vmatpush1.msra.mxu0 0.0
    %5512 = vmatprep.subr.mxu0 0.0
    %5513 = vmatpush1.msra.mxu0 0.0
    %5514 = vmatprep.mubr.f32.mxu0 0.0
    %v5515 = vand.u32 %v5109, 4294901760
    %5516 = vmatmul.mubr.f32.gmra.mrb[0].mxu0 %v5515
    %v5517 = vpop.f32.mrb[0].mxu0
    %v5518 = vadd.f32 %v5435, %v5517
    %v5519 = vpop.f32.mrb[0].mxu0
    %5520 = vdwg.mxu0
    %5521 = vmatprep.subr.mxu0 0.0
    %v5522 = vand.u32 %v1097, 4294901760
    %5523 = vmatpush1.msra.mxu0 %v5522
    %5524 = vmatprep.subr.mxu0 0.0
    %v5525 = vand.u32 %v1098, 4294901760
    %5526 = vmatpush1.msra.mxu0 %v5525
    %5527 = vmatprep.subr.mxu0 0.0
    %v5528 = vand.u32 %v1099, 4294901760
    %5529 = vmatpush1.msra.mxu0 %v5528
    %5530 = vmatprep.subr.mxu0 0.0
    %v5531 = vand.u32 %v1100, 4294901760
    %5532 = vmatpush1.msra.mxu0 %v5531
    %5533 = vmatprep.subr.mxu0 0.0
    %5534 = vmatpush1.msra.mxu0 0.0
    %5535 = vmatprep.subr.mxu0 0.0
    %5536 = vmatpush1.msra.mxu0 0.0
    %5537 = vmatprep.subr.mxu0 0.0
    %5538 = vmatpush1.msra.mxu0 0.0
    %5539 = vmatprep.subr.mxu0 0.0
    %5540 = vmatpush1.msra.mxu0 0.0
    %5541 = vmatprep.subr.mxu0 0.0
    %5542 = vmatpush1.msra.mxu0 0.0
    %5543 = vmatprep.subr.mxu0 0.0
    %5544 = vmatpush1.msra.mxu0 0.0
    %5545 = vmatprep.subr.mxu0 0.0
    %5546 = vmatpush1.msra.mxu0 0.0
    %5547 = vmatprep.subr.mxu0 0.0
    %5548 = vmatpush1.msra.mxu0 0.0
    %5549 = vmatprep.subr.mxu0 0.0
    %5550 = vmatpush1.msra.mxu0 0.0
    %5551 = vmatprep.subr.mxu0 0.0
    %5552 = vmatpush1.msra.mxu0 0.0
    %5553 = vmatprep.subr.mxu0 0.0
    %5554 = vmatpush1.msra.mxu0 0.0
    %5555 = vmatprep.subr.mxu0 0.0
    %5556 = vmatpush1.msra.mxu0 0.0
    %5557 = vmatprep.subr.mxu0 0.0
    %5558 = vmatpush1.msra.mxu0 0.0
    %5559 = vmatprep.subr.mxu0 0.0
    %5560 = vmatpush1.msra.mxu0 0.0
    %5561 = vmatprep.subr.mxu0 0.0
    %5562 = vmatpush1.msra.mxu0 0.0
    %5563 = vmatprep.subr.mxu0 0.0
    %5564 = vmatpush1.msra.mxu0 0.0
    %5565 = vmatprep.subr.mxu0 0.0
    %5566 = vmatpush1.msra.mxu0 0.0
    %5567 = vmatprep.subr.mxu0 0.0
    %5568 = vmatpush1.msra.mxu0 0.0
    %5569 = vmatprep.subr.mxu0 0.0
    %5570 = vmatpush1.msra.mxu0 0.0
    %5571 = vmatprep.subr.mxu0 0.0
    %5572 = vmatpush1.msra.mxu0 0.0
    %5573 = vmatprep.subr.mxu0 0.0
    %5574 = vmatpush1.msra.mxu0 0.0
    %5575 = vmatprep.subr.mxu0 0.0
    %5576 = vmatpush1.msra.mxu0 0.0
    %5577 = vmatprep.subr.mxu0 0.0
    %5578 = vmatpush1.msra.mxu0 0.0
    %5579 = vmatprep.subr.mxu0 0.0
    %5580 = vmatpush1.msra.mxu0 0.0
    %5581 = vmatprep.subr.mxu0 0.0
    %5582 = vmatpush1.msra.mxu0 0.0
    %5583 = vmatprep.subr.mxu0 0.0
    %5584 = vmatpush1.msra.mxu0 0.0
    %5585 = vmatprep.subr.mxu0 0.0
    %5586 = vmatpush1.msra.mxu0 0.0
    %5587 = vmatprep.subr.mxu0 0.0
    %5588 = vmatpush1.msra.mxu0 0.0
    %5589 = vmatprep.mubr.f32.mxu0 0.0
    %v5590 = vand.u32 %v5109, 4294901760
    %5591 = vmatmul.mubr.f32.gmra.mrb[0].mxu0 %v5590
    %v5592 = vpop.f32.mrb[0].mxu0
    %v5593 = vadd.f32 %v5518, %v5592
    %v5594 = vpop.f32.mrb[0].mxu0
    %5595 = vdwg.mxu0
    %v5597 = vrot.slane %v5593, 1
    %v5598 = vrot.slane %v5593, 2
    %v5601 = vadd.f32 %v1095, %v5597
    %v5602 = vadd.f32 %v1096, %v5598
    %v5603 = vxor.u32 %v5601, 2147483648
    %v5604 = vxor.u32 %v5602, 2147483648
    %v5605 = vmul.f32 %v5603, 1.442695
    %v5606 = vpow.pop %v5605
    %v5607 = vmul.f32 %v5604, 1.442695
    %v5608 = vpow.pop %v5607
    %v5609 = vadd.f32 %v5606, 1.0
    %v5610 = vadd.f32 %v5608, 1.0
    %v5611 = vrcp.pop %v5609
    %v5612 = vmul.f32 1.0, %v5611
    %v5613 = vrcp.pop %v5610
    %v5614 = vmul.f32 1.0, %v5613
    %v5615 = vmul.f32 %v5612, 2.0
    %v5616 = vmul.f32 %v5614, 2.0
    %v5617 = vsub.f32 %v5615, 1.0
    %v5618 = vsub.f32 %v5616, 1.0
    %v5621 = vrot.slane %v5074, 7
    %v5622 = vrot.slane %v5075, 7
    %v5625 = vmul.f32 %v5612, %v5621
    %v5626 = vmul.f32 %v5614, %v5622
    %5629 = vrot.lane.b32.xlu0 %v5617, 64
    %v5630 = vpop.permute.xlu0 %5629
    %5631 = vrot.lane.b32.xlu0 %v5618, 64
    %v5632 = vpop.permute.xlu0 %5631
    %v5635 = vmul.f32 %v5612, %v5630
    %v5636 = vmul.f32 %v5614, %v5632
    %5639 = vrot.lane.b32.xlu0 %v5635, 32
    %v5640 = vpop.permute.xlu0 %5639
    %5641 = vrot.lane.b32.xlu0 %v5636, 32
    %v5642 = vpop.permute.xlu0 %5641
    %v5645 = vadd.f32 %v5625, %v5640
    %v5646 = vadd.f32 %v5626, %v5642
    %v5647 = vtanh.pop %v5645
    %v5648 = vtanh.pop %v5646
    %5651 = vrot.lane.b32.xlu0 %v5647, 64
    %v5652 = vpop.permute.xlu0 %5651
    %5653 = vrot.lane.b32.xlu0 %v5648, 64
    %v5654 = vpop.permute.xlu0 %5653
    %v5657 = vmul.f32 %v5612, %v5652
    %v5658 = vmul.f32 %v5614, %v5654
    %v5659 = vmul.f32 %v5657, %v1663
    %v5660 = vmul.f32 %v5658, %v1663
    %v5663 = vrot.slane %v5660, 7
    %5664 = vrot.lane.b32.xlu0 %v5659, 32
    %v5665 = vpop.permute.xlu0 %5664
    %5666 = vrot.lane.b32.xlu0 %v5663, 32
    %v5667 = vpop.permute.xlu0 %5666
    %vm5670 = vcmask 261127
    %v5671 = vsel %vm5670, %v5665, 0.0
    %5672 = vadd.xlane.f32.xlu0 %v5671
    %v5673 = vpop.xlane.xlu0 %5672
    %vm5674 = vcmask 253952
    %v5675 = vsel %vm5674, %v5667, 0.0
    %5676 = vadd.xlane.f32.xlu0 %v5675
    %v5677 = vpop.xlane.xlu0 %5676
    %v5680 = vrot.slane %v5658, 7
    %5681 = vrot.lane.b32.xlu0 %v5657, 32
    %v5682 = vpop.permute.xlu0 %5681
    %5683 = vrot.lane.b32.xlu0 %v5680, 32
    %v5684 = vpop.permute.xlu0 %5683
    %5687 = vst.msk [vmem:[#allocation9 - $0x7] sm:$0x80] %vm5670, %v5682
    %5688 = vst.msk [vmem:[#allocation9 + $0x1] sm:$0x1] %vm5674, %v5684
    %v5691 = vrot.slane %v5646, 7
    %5692 = vrot.lane.b32.xlu0 %v5645, 96
    %v5693 = vpop.permute.xlu0 %5692
    %5694 = vrot.lane.b32.xlu0 %v5691, 96
    %v5695 = vpop.permute.xlu0 %5694
    %5698 = vst.msk [vmem:[#allocation11 - $0x7] sm:$0x80] %vm5670, %v5693
    %5699 = vst.msk [vmem:[#allocation11 + $0x1] sm:$0x1] %vm5674, %v5695
    %v5701 = vrot.slane %v2247, 1
    %v5704 = vrot.slane %v2817, 2
    %v5707 = vrot.slane %v3388, 3
    %v5710 = vrot.slane %v3959, 4
    %v5713 = vrot.slane %v4530, 5
    %v5716 = vrot.slane %v5101, 6
    %vm5720 = vcmask 1040384
    %v5721 = vrot.slane %v5673, 7
    %v5722 = vrot.slane %v5677, 7
    %v5723 = vsel %vm5720, %v5721, %v5722
    %vm5725 = vcmask 7168
    %v5726 = vsel %vm5725, %v1678, %v5701
    %vm5727 = vcmask 15360
    %v5728 = vsel %vm5727, %v5726, %v5704
    %vm5729 = vcmask 23552
    %v5730 = vsel %vm5729, %v5728, %v5707
    %v5731 = vsel %vm76, %v5730, %v5710
    %vm5732 = vcmask 39936
    %v5733 = vsel %vm5732, %v5731, %v5713
    %vm5734 = vcmask 48128
    %v5735 = vsel %vm5734, %v5733, %v5716
    %vm5736 = vcmask 56320
    %v5737 = vsel %vm5736, %v5735, %v5723
    %s5738 = sld [smem:[#allocation2]]
    %v5739 = vstv %s5738
    %v5740 = vadd.f32 %v5737, %v5739
    %vm5741 = vcmask 58368
    %5742 = vst.msk [vmem:[#allocation8] sm:$0x3] %vm5741, %v5740
    // Predicated region
    $region50: #{tpu_custom_call.1} parent=1 // pred_check
      _
    $region51: #{tpu_custom_call.1} parent=1 // pred_check_branch
      %5744 = sbr.rel (0) target = $region53
    $region52: #{tpu_custom_call.1} parent=1 // pred_region
      %s5746 = ssub.s32 32, 32
      %5747 = vsyncadd [#allocation5], %s5746
      %s5749 = sshll.u32 [#allocation8], 4
      %s5750 = int_to_ptr.vmem [resolvable:$true] %s5749
      %5752 = dma.vmem_to_hbm [thread:$0]  %s5750, 32, %s10, [#allocation5]
    $region53: #{tpu_custom_call.1} parent=1 // pred_fallthru
      _
    // Predicated region
    $region54: #{tpu_custom_call.1} parent=1 // pred_check
      _
    $region55: #{tpu_custom_call.1} parent=1 // pred_check_branch
      %5754 = sbr.rel (0) target = $region57
    $region56: #{tpu_custom_call.1} parent=1 // pred_region
      %s5756 = ssub.s32 32, 32
      %5757 = vsyncadd [#allocation10], %s5756
      %s5759 = sshll.u32 [#allocation9], 4
      %s5760 = int_to_ptr.vmem [resolvable:$true] %s5759
      %5762 = dma.vmem_to_hbm [thread:$0]  %s5760, 32, %s11, [#allocation10]
    $region57: #{tpu_custom_call.1} parent=1 // pred_fallthru
      _
    // Predicated region
    $region58: #{tpu_custom_call.1} parent=1 // pred_check
      _
    $region59: #{tpu_custom_call.1} parent=1 // pred_check_branch
      %5764 = sbr.rel (0) target = $region61
    $region60: #{tpu_custom_call.1} parent=1 // pred_region
      %s5766 = ssub.s32 32, 32
      %5767 = vsyncadd [#allocation10], %s5766
      %s5769 = sshll.u32 [#allocation11], 4
      %s5770 = int_to_ptr.vmem [resolvable:$true] %s5769
      %5772 = dma.vmem_to_hbm [thread:$0]  %s5770, 32, %s12, [#allocation10]
    $region61: #{tpu_custom_call.1} parent=1 // pred_fallthru
      _
    // Predicated region
    $region62: #{tpu_custom_call.1} parent=1 // pred_check
      _
    $region63: #{tpu_custom_call.1} parent=1 // pred_check_branch
      %5774 = sbr.rel (0) target = $region65
    $region64: #{tpu_custom_call.1} parent=1 // pred_region
      %5775 = dma.done [#allocation5], 32
    $region65: #{tpu_custom_call.1} parent=1 // pred_fallthru
      _
    // Predicated region
    $region66: #{tpu_custom_call.1} parent=1 // pred_check
      _
    $region67: #{tpu_custom_call.1} parent=1 // pred_check_branch
      %5777 = sbr.rel (0) target = $region69
    $region68: #{tpu_custom_call.1} parent=1 // pred_region
      %5778 = dma.done [#allocation10], 32
    $region69: #{tpu_custom_call.1} parent=1 // pred_fallthru
      _
    // Predicated region
    $region70: #{tpu_custom_call.1} parent=1 // pred_check
      _
    $region71: #{tpu_custom_call.1} parent=1 // pred_check_branch
      %5780 = sbr.rel (0) target = $region73
    $region72: #{tpu_custom_call.1} parent=1 // pred_region
      %5781 = dma.done [#allocation10], 32
    $region73: #{tpu_custom_call.1} parent=1 // pred_fallthru
      _
    %5782 = vsyncpa [#allocation4], 1
    %5783 = vsyncpa [#allocation7], 1
    %5784 = vsyncpa [#allocation5], 1
    %5785 = vsyncpa [#allocation10], 1

</llo_original>
